<compile_context>
chip_gen: v7x
topology: tpu7x:2x2x1
jax: 0.10.0
libtpu: 0.0.40
codegen_flags: <defaults>
</compile_context>

<pallas_src>
import functools

import jax
import jax.numpy as jnp
from jax.experimental import pallas as pl
from jax.experimental.pallas import tpu as pltpu


# ---------------------------------------------------------------------------
# Fused Pallas kernel: 1x1-conv Q/K/V projection + strided-window attention
# ---------------------------------------------------------------------------
def _fused_sow_attention_kernel(
    xq_ref, xk_ref, xv_ref,                              # (Gt, L, Cin/Cv) bf16 blocks
    wq_ref, bq_ref, wk_ref, bk_ref, wv_ref, bv_ref,      # resident weights / biases
    o_ref,                                               # (Gt, L, Co) f32 block
    *, num_heads, scaling):
    Gt, L, _ = xq_ref.shape
    Cp = wq_ref.shape[1]
    Co = wv_ref.shape[1]
    hd = Cp // num_heads
    vd = Co // num_heads
    GtL = Gt * L

    # --- 1x1-conv projections: one MXU matmul over all Gt*L pixels of the block
    #     (bf16 operands, f32 accumulation, f32 bias add). ---
    xq = xq_ref[...].reshape(GtL, -1)
    xk = xk_ref[...].reshape(GtL, -1)
    xv = xv_ref[...].reshape(GtL, -1)
    q = jnp.dot(xq, wq_ref[...], preferred_element_type=jnp.float32) + bq_ref[...]
    k = jnp.dot(xk, wk_ref[...], preferred_element_type=jnp.float32) + bk_ref[...]
    v = jnp.dot(xv, wv_ref[...], preferred_element_type=jnp.float32) + bv_ref[...]

    # Fold the softmax scaling into q (Cp columns << L score columns -> fewer VPU muls).
    q = (q * scaling).astype(jnp.bfloat16).reshape(Gt, L, Cp)
    k = k.astype(jnp.bfloat16).reshape(Gt, L, Cp)
    v = v.astype(jnp.bfloat16).reshape(Gt, L, Co)

    # --- per-head attention, batched over the Gt window groups of this block ---
    outs = []
    for h in range(num_heads):                           # static, small
        qh = q[:, :, h * hd:(h + 1) * hd]
        kh = k[:, :, h * hd:(h + 1) * hd]
        vh = v[:, :, h * vd:(h + 1) * vd]
        # scores: contract head_dim directly (no materialized k^T), batch over groups
        s = jnp.einsum("gqd,gkd->gqk", qh, kh,
                       preferred_element_type=jnp.float32)          # (Gt, L, L) f32
        m = jnp.max(s, axis=-1, keepdims=True)
        e = jnp.exp(s - m)
        p = e * pl.reciprocal(jnp.sum(e, axis=-1, keepdims=True), approx=True)
        outs.append(jnp.einsum("gqk,gkd->gqd", p.astype(jnp.bfloat16), vh,
                               preferred_element_type=jnp.float32))  # (Gt, L, vd)
    # Single full-width store: all heads packed into the out_channels lane dim.
    o_ref[...] = jnp.concatenate(outs, axis=-1).astype(o_ref.dtype)


# ---------------------------------------------------------------------------
# Window packing (plain JAX, applied to the narrow raw inputs / final output)
# ---------------------------------------------------------------------------
def _window_rows(x, stride):
    """(B, C, H, W) -> (B*S*S, L, C); group=(b, sh, sw), row l=(h//S, w//S)."""
    B, C, H, W = x.shape
    S = stride
    x = x.reshape(B, C, H // S, S, W // S, S)
    x = jnp.transpose(x, (0, 3, 5, 2, 4, 1))             # (B, S, S, H/S, W/S, C)
    return x.reshape(B * S * S, (H // S) * (W // S), C)


def _dewindow_rows(y, stride, B, H, W):
    """Inverse of _window_rows: (B*S*S, L, C) -> (B, C, H, W)."""
    S = stride
    C = y.shape[-1]
    y = y.reshape(B, S, S, H // S, W // S, C)
    y = jnp.transpose(y, (0, 5, 3, 1, 4, 2))             # (B, C, H/S, S, W/S, S)
    return y.reshape(B, C, H, W)


# Reference-path helpers (mirror the PyTorch make_window / demake_window exactly).
def make_window(x, stride, num_heads):
    B, C, H, W = x.shape
    hd = C // num_heads
    x = x.reshape(B, num_heads, hd, H // stride, stride, W // stride, stride)
    x = jnp.transpose(x, (0, 1, 4, 6, 3, 5, 2))
    return x.reshape(B, num_heads, stride, stride, (H // stride) * (W // stride), hd)


def demake_window(x, stride, num_heads, H, W):
    B = x.shape[0]
    dh = x.shape[-1]
    x = x.reshape(B, num_heads, stride, stride, H // stride, W // stride, dh)
    x = jnp.transpose(x, (0, 1, 6, 4, 2, 5, 3))
    return x.reshape(B, dh * num_heads, H, W)


# ---------------------------------------------------------------------------
# Module wrapper
# ---------------------------------------------------------------------------
class StridedwindowAttentionPallas:
    def __init__(self, stride, in_channels, proj_channels, value_channels,
                 out_channels, num_heads=1, groups_per_block=8, key=None):
        self.stride = stride
        self.num_heads = num_heads
        self.in_channels = in_channels
        self.proj_channels = proj_channels
        self.value_channels = value_channels
        self.out_channels = out_channels
        self.groups_per_block = groups_per_block
        head_dim = proj_channels // num_heads
        assert head_dim * num_heads == proj_channels
        assert out_channels // num_heads * num_heads == out_channels
        self.scaling = float(head_dim) ** (-0.5)

        key = jax.random.PRNGKey(0) if key is None else key
        ks = jax.random.split(key, 6)
        s = 0.1
        # Conv2d(Cin, Cout, 1) weights stored as (Cin, Cout) matmul weights + (Cout,) bias.
        self.q_w = s * jax.random.normal(ks[0], (in_channels, proj_channels), jnp.float32)
        self.q_b = s * jax.random.normal(ks[1], (proj_channels,), jnp.float32)
        self.k_w = s * jax.random.normal(ks[2], (in_channels, proj_channels), jnp.float32)
        self.k_b = s * jax.random.normal(ks[3], (proj_channels,), jnp.float32)
        self.v_w = s * jax.random.normal(ks[4], (value_channels, out_channels), jnp.float32)
        self.v_b = s * jax.random.normal(ks[5], (out_channels,), jnp.float32)

    def __call__(self, fea_q, fea_k, fea_v):
        B, _, H, W = fea_q.shape
        S = self.stride
        L = (H // S) * (W // S)
        G = B * S * S
        Cin, Cv = self.in_channels, self.value_channels
        Cp, Co = self.proj_channels, self.out_channels

        # Strided-window rearrangement on the *narrow* raw inputs (one pass),
        # cast to bf16 to halve HBM traffic into the fused kernel.
        xq = _window_rows(fea_q, S).astype(jnp.bfloat16)
        xk = _window_rows(fea_k, S).astype(jnp.bfloat16)
        xv = _window_rows(fea_v, S).astype(jnp.bfloat16)

        Gt = min(self.groups_per_block, G)
        G_pad = ((G + Gt - 1) // Gt) * Gt
        if G_pad != G:
            pad = ((0, G_pad - G), (0, 0), (0, 0))
            xq, xk, xv = jnp.pad(xq, pad), jnp.pad(xk, pad), jnp.pad(xv, pad)

        wq = self.q_w.astype(jnp.bfloat16)
        wk = self.k_w.astype(jnp.bfloat16)
        wv = self.v_w.astype(jnp.bfloat16)
        bq = self.q_b.reshape(1, Cp)
        bk = self.k_b.reshape(1, Cp)
        bv = self.v_b.reshape(1, Co)

        # VMEM budget: double-buffered in/out blocks + f32 in-kernel temporaries,
        # clamped well below v7x's 64 MiB physical VMEM.
        block_bytes = (Gt * L * (2 * Cin + Cv) * 2          # bf16 input blocks
                       + Gt * L * Co * 4                    # f32 output block
                       + (2 * Cin * Cp + Cv * Co) * 2       # bf16 weights
                       + (2 * Cp + Co) * 4)                 # f32 biases
        vmem_limit = int(min(max(6 * block_bytes + (8 << 20), 16 << 20), 48 << 20))

        out = pl.pallas_call(
            functools.partial(_fused_sow_attention_kernel,
                              num_heads=self.num_heads, scaling=self.scaling),
            out_shape=jax.ShapeDtypeStruct((G_pad, L, Co), jnp.float32),
            grid=(G_pad // Gt,),
            in_specs=[
                pl.BlockSpec((Gt, L, Cin), lambda g: (g, 0, 0)),
                pl.BlockSpec((Gt, L, Cin), lambda g: (g, 0, 0)),
                pl.BlockSpec((Gt, L, Cv), lambda g: (g, 0, 0)),
                # tiny projection weights/biases: constant index_map -> stay resident in VMEM
                pl.BlockSpec((Cin, Cp), lambda g: (0, 0)),
                pl.BlockSpec((1, Cp), lambda g: (0, 0)),
                pl.BlockSpec((Cin, Cp), lambda g: (0, 0)),
                pl.BlockSpec((1, Cp), lambda g: (0, 0)),
                pl.BlockSpec((Cv, Co), lambda g: (0, 0)),
                pl.BlockSpec((1, Co), lambda g: (0, 0)),
            ],
            out_specs=pl.BlockSpec((Gt, L, Co), lambda g: (g, 0, 0)),
            compiler_params=pltpu.CompilerParams(
                dimension_semantics=("parallel",),
                vmem_limit_bytes=vmem_limit,
            ),
        )(xq, xk, xv, wq, bq, wk, bk, wv, bv)

        if G_pad != G:
            out = out[:G]
        return _dewindow_rows(out, S, B, H, W)

    # pure-JAX (f32) reference of the same forward, for a correctness check
    def reference(self, fea_q, fea_k, fea_v):
        B, _, H, W = fea_q.shape

        def ref_conv(x, w, b):
            return jnp.einsum("bchw,cd->bdhw", x, w) + b[None, :, None, None]

        query = ref_conv(fea_q, self.q_w, self.q_b)
        key = ref_conv(fea_k, self.k_w, self.k_b)
        value = ref_conv(fea_v, self.v_w, self.v_b)
        q_w = make_window(query, self.stride, self.num_heads)
        k_w = make_window(key, self.stride, self.num_heads)
        v_w = make_window(value, self.stride, self.num_heads)
        s = jnp.einsum("...qd,...kd->...qk", q_w, k_w) * self.scaling
        p = jax.nn.softmax(s, axis=-1)
        out_w = jnp.einsum("...qk,...kd->...qd", p, v_w)
        return demake_window(out_w, self.stride, self.num_heads, H, W)


if __name__ == "__main__":
    # Small shapes: B=2, in_channels=4, value_channels=4, H=W=16,
    # proj_channels=32, out_channels=32, num_heads=2, stride=2 -> L=64, G=B*S*S=8.
    B, Cin, Cv, H, W = 2, 4, 4, 16, 16
    module = StridedwindowAttentionPallas(
        stride=2, in_channels=Cin, proj_channels=32, value_channels=Cv,
        out_channels=32, num_heads=2,
        groups_per_block=4,   # toy G=8 -> grid of 2; use 8-16 groups/step at realistic sizes
        key=jax.random.PRNGKey(0),
    )

    kq, kk, kv = jax.random.split(jax.random.PRNGKey(0), 3)
    fea_q = jax.random.normal(kq, (B, Cin, H, W), jnp.float32)
    fea_k = jax.random.normal(kk, (B, Cin, H, W), jnp.float32)
    fea_v = jax.random.normal(kv, (B, Cv, H, W), jnp.float32)

    out = jax.block_until_ready(module(fea_q, fea_k, fea_v))
    assert out.shape == (B, module.out_channels, H, W), out.shape

    ref = jax.block_until_ready(module.reference(fea_q, fea_k, fea_v))
    max_err = float(jnp.max(jnp.abs(out - ref)))
    # bf16 MXU inputs with f32 accumulation -> small mixed-precision tolerance.
    assert jnp.allclose(out, ref, atol=2e-2, rtol=2e-2), max_err

    print("KERNEL_OK")
</pallas_src>

<mosaic_0001>
module attributes {stable_mosaic.version = 11 : i64} {
  func.func @_fused_sow_attention_kernel(%arg0: i32, %arg1: memref<4x64x4xbf16, #tpu.memory_space<vmem>>, %arg2: memref<4x64x4xbf16, #tpu.memory_space<vmem>>, %arg3: memref<4x64x4xbf16, #tpu.memory_space<vmem>>, %arg4: memref<4x32xbf16, #tpu.memory_space<vmem>>, %arg5: memref<1x32xf32, #tpu.memory_space<vmem>>, %arg6: memref<4x32xbf16, #tpu.memory_space<vmem>>, %arg7: memref<1x32xf32, #tpu.memory_space<vmem>>, %arg8: memref<4x32xbf16, #tpu.memory_space<vmem>>, %arg9: memref<1x32xf32, #tpu.memory_space<vmem>>, %arg10: memref<4x64x32xf32, #tpu.memory_space<vmem>>) attributes {dimension_semantics = [#tpu.dimension_semantics<parallel>], iteration_bounds = array<i64: 2>, scalar_prefetch = 0 : i64, scratch_operands = 0 : i64, tpu.core_type = #tpu.core_type<tc>, window_params = [{transform_indices = @transform_0, window_bounds = array<i64: 4, 64, 4>}, {transform_indices = @transform_1, window_bounds = array<i64: 4, 64, 4>}, {transform_indices = @transform_2, window_bounds = array<i64: 4, 64, 4>}, {pipeline_mode = #tpu.pipeline_mode<synchronous>, transform_indices = @transform_3, window_bounds = array<i64: 4, 32>}, {pipeline_mode = #tpu.pipeline_mode<synchronous>, transform_indices = @transform_4, window_bounds = array<i64: 1, 32>}, {pipeline_mode = #tpu.pipeline_mode<synchronous>, transform_indices = @transform_5, window_bounds = array<i64: 4, 32>}, {pipeline_mode = #tpu.pipeline_mode<synchronous>, transform_indices = @transform_6, window_bounds = array<i64: 1, 32>}, {pipeline_mode = #tpu.pipeline_mode<synchronous>, transform_indices = @transform_7, window_bounds = array<i64: 4, 32>}, {pipeline_mode = #tpu.pipeline_mode<synchronous>, transform_indices = @transform_8, window_bounds = array<i64: 1, 32>}, {transform_indices = @transform_9, window_bounds = array<i64: 4, 64, 32>}]} {
    %c0 = arith.constant 0 : index
    %c0_0 = arith.constant 0 : index
    %c0_1 = arith.constant 0 : index
    %0 = vector.load %arg1[%c0, %c0_0, %c0_1] : memref<4x64x4xbf16, #tpu.memory_space<vmem>>, vector<4x64x4xbf16>
    %1 = vector.shape_cast %0 : vector<4x64x4xbf16> to vector<256x4xbf16>
    %c0_2 = arith.constant 0 : index
    %c0_3 = arith.constant 0 : index
    %c0_4 = arith.constant 0 : index
    %2 = vector.load %arg2[%c0_2, %c0_3, %c0_4] : memref<4x64x4xbf16, #tpu.memory_space<vmem>>, vector<4x64x4xbf16>
    %3 = vector.shape_cast %2 : vector<4x64x4xbf16> to vector<256x4xbf16>
    %c0_5 = arith.constant 0 : index
    %c0_6 = arith.constant 0 : index
    %c0_7 = arith.constant 0 : index
    %4 = vector.load %arg3[%c0_5, %c0_6, %c0_7] : memref<4x64x4xbf16, #tpu.memory_space<vmem>>, vector<4x64x4xbf16>
    %5 = vector.shape_cast %4 : vector<4x64x4xbf16> to vector<256x4xbf16>
    %c0_8 = arith.constant 0 : index
    %c0_9 = arith.constant 0 : index
    %6 = vector.load %arg4[%c0_8, %c0_9] : memref<4x32xbf16, #tpu.memory_space<vmem>>, vector<4x32xbf16>
    %cst = arith.constant dense<0.000000e+00> : vector<256x32xf32>
    %7 = tpu.matmul %1, %6, %cst {dimension_numbers = #tpu.dot_dimension_numbers<[1], [0], [0], [1], [0, 0, 1, 1], [], []>} : vector<256x4xbf16>, vector<4x32xbf16>, vector<256x32xf32> -> vector<256x32xf32>
    %c0_10 = arith.constant 0 : index
    %c0_11 = arith.constant 0 : index
    %8 = vector.load %arg5[%c0_10, %c0_11] : memref<1x32xf32, #tpu.memory_space<vmem>>, vector<1x32xf32>
    %9 = vector.broadcast %8 : vector<1x32xf32> to vector<256x32xf32>
    %10 = arith.addf %7, %9 : vector<256x32xf32>
    %c0_12 = arith.constant 0 : index
    %c0_13 = arith.constant 0 : index
    %11 = vector.load %arg6[%c0_12, %c0_13] : memref<4x32xbf16, #tpu.memory_space<vmem>>, vector<4x32xbf16>
    %cst_14 = arith.constant dense<0.000000e+00> : vector<256x32xf32>
    %12 = tpu.matmul %3, %11, %cst_14 {dimension_numbers = #tpu.dot_dimension_numbers<[1], [0], [0], [1], [0, 0, 1, 1], [], []>} : vector<256x4xbf16>, vector<4x32xbf16>, vector<256x32xf32> -> vector<256x32xf32>
    %c0_15 = arith.constant 0 : index
    %c0_16 = arith.constant 0 : index
    %13 = vector.load %arg7[%c0_15, %c0_16] : memref<1x32xf32, #tpu.memory_space<vmem>>, vector<1x32xf32>
    %14 = vector.broadcast %13 : vector<1x32xf32> to vector<256x32xf32>
    %15 = arith.addf %12, %14 : vector<256x32xf32>
    %c0_17 = arith.constant 0 : index
    %c0_18 = arith.constant 0 : index
    %16 = vector.load %arg8[%c0_17, %c0_18] : memref<4x32xbf16, #tpu.memory_space<vmem>>, vector<4x32xbf16>
    %cst_19 = arith.constant dense<0.000000e+00> : vector<256x32xf32>
    %17 = tpu.matmul %5, %16, %cst_19 {dimension_numbers = #tpu.dot_dimension_numbers<[1], [0], [0], [1], [0, 0, 1, 1], [], []>} : vector<256x4xbf16>, vector<4x32xbf16>, vector<256x32xf32> -> vector<256x32xf32>
    %c0_20 = arith.constant 0 : index
    %c0_21 = arith.constant 0 : index
    %18 = vector.load %arg9[%c0_20, %c0_21] : memref<1x32xf32, #tpu.memory_space<vmem>>, vector<1x32xf32>
    %19 = vector.broadcast %18 : vector<1x32xf32> to vector<256x32xf32>
    %20 = arith.addf %17, %19 : vector<256x32xf32>
    %cst_22 = arith.constant 2.500000e-01 : f32
    %21 = vector.broadcast %cst_22 : f32 to vector<256x32xf32>
    %22 = arith.mulf %10, %21 : vector<256x32xf32>
    %23 = arith.truncf %22 : vector<256x32xf32> to vector<256x32xbf16>
    %24 = vector.shape_cast %23 : vector<256x32xbf16> to vector<4x64x32xbf16>
    %25 = arith.truncf %15 : vector<256x32xf32> to vector<256x32xbf16>
    %26 = vector.shape_cast %25 : vector<256x32xbf16> to vector<4x64x32xbf16>
    %27 = arith.truncf %20 : vector<256x32xf32> to vector<256x32xbf16>
    %28 = vector.shape_cast %27 : vector<256x32xbf16> to vector<4x64x32xbf16>
    %29 = vector.extract_strided_slice %24 {offsets = [0, 0, 0], sizes = [4, 64, 16], strides = [1, 1, 1]} : vector<4x64x32xbf16> to vector<4x64x16xbf16>
    %30 = vector.extract_strided_slice %26 {offsets = [0, 0, 0], sizes = [4, 64, 16], strides = [1, 1, 1]} : vector<4x64x32xbf16> to vector<4x64x16xbf16>
    %31 = vector.extract_strided_slice %28 {offsets = [0, 0, 0], sizes = [4, 64, 16], strides = [1, 1, 1]} : vector<4x64x32xbf16> to vector<4x64x16xbf16>
    "tpu.trace_start"() <{level = 10 : i32, message = "gqd,gkd->gqk"}> : () -> ()
    %cst_23 = arith.constant dense<0.000000e+00> : vector<4x64x64xf32>
    %32 = tpu.matmul %29, %30, %cst_23 {dimension_numbers = #tpu.dot_dimension_numbers<[2], [2], [1], [1], [0, 0, 0, 1, 1, 1], [0], [0]>} : vector<4x64x16xbf16>, vector<4x64x16xbf16>, vector<4x64x64xf32> -> vector<4x64x64xf32>
    "tpu.trace_stop"() : () -> ()
    %cst_24 = arith.constant dense<0xFF800000> : vector<4x64xf32>
    %33 = vector.multi_reduction <maximumf>, %32, %cst_24 [2] : vector<4x64x64xf32> to vector<4x64xf32>
    %34 = vector.shape_cast %33 : vector<4x64xf32> to vector<4x64x1xf32>
    %35 = vector.broadcast %34 : vector<4x64x1xf32> to vector<4x64x64xf32>
    %36 = arith.subf %32, %35 : vector<4x64x64xf32>
    %37 = math.exp %36 : vector<4x64x64xf32>
    %cst_25 = arith.constant dense<0.000000e+00> : vector<4x64xf32>
    %38 = vector.multi_reduction <add>, %37, %cst_25 [2] : vector<4x64x64xf32> to vector<4x64xf32>
    %39 = vector.shape_cast %38 : vector<4x64xf32> to vector<4x64x1xf32>
    %40 = tpu.reciprocal %39 {approx = true} : vector<4x64x1xf32> -> vector<4x64x1xf32>
    %41 = vector.broadcast %40 : vector<4x64x1xf32> to vector<4x64x64xf32>
    %42 = arith.mulf %37, %41 : vector<4x64x64xf32>
    %43 = arith.truncf %42 : vector<4x64x64xf32> to vector<4x64x64xbf16>
    "tpu.trace_start"() <{level = 10 : i32, message = "gqk,gkd->gqd"}> : () -> ()
    %cst_26 = arith.constant dense<0.000000e+00> : vector<4x64x16xf32>
    %44 = tpu.matmul %43, %31, %cst_26 {dimension_numbers = #tpu.dot_dimension_numbers<[2], [1], [1], [2], [0, 0, 0, 1, 1, 2], [0], [0]>} : vector<4x64x64xbf16>, vector<4x64x16xbf16>, vector<4x64x16xf32> -> vector<4x64x16xf32>
    "tpu.trace_stop"() : () -> ()
    %45 = vector.extract_strided_slice %24 {offsets = [0, 0, 16], sizes = [4, 64, 16], strides = [1, 1, 1]} : vector<4x64x32xbf16> to vector<4x64x16xbf16>
    %46 = vector.extract_strided_slice %26 {offsets = [0, 0, 16], sizes = [4, 64, 16], strides = [1, 1, 1]} : vector<4x64x32xbf16> to vector<4x64x16xbf16>
    %47 = vector.extract_strided_slice %28 {offsets = [0, 0, 16], sizes = [4, 64, 16], strides = [1, 1, 1]} : vector<4x64x32xbf16> to vector<4x64x16xbf16>
    "tpu.trace_start"() <{level = 10 : i32, message = "gqd,gkd->gqk"}> : () -> ()
    %cst_27 = arith.constant dense<0.000000e+00> : vector<4x64x64xf32>
    %48 = tpu.matmul %45, %46, %cst_27 {dimension_numbers = #tpu.dot_dimension_numbers<[2], [2], [1], [1], [0, 0, 0, 1, 1, 1], [0], [0]>} : vector<4x64x16xbf16>, vector<4x64x16xbf16>, vector<4x64x64xf32> -> vector<4x64x64xf32>
    "tpu.trace_stop"() : () -> ()
    %cst_28 = arith.constant dense<0xFF800000> : vector<4x64xf32>
    %49 = vector.multi_reduction <maximumf>, %48, %cst_28 [2] : vector<4x64x64xf32> to vector<4x64xf32>
    %50 = vector.shape_cast %49 : vector<4x64xf32> to vector<4x64x1xf32>
    %51 = vector.broadcast %50 : vector<4x64x1xf32> to vector<4x64x64xf32>
    %52 = arith.subf %48, %51 : vector<4x64x64xf32>
    %53 = math.exp %52 : vector<4x64x64xf32>
    %cst_29 = arith.constant dense<0.000000e+00> : vector<4x64xf32>
    %54 = vector.multi_reduction <add>, %53, %cst_29 [2] : vector<4x64x64xf32> to vector<4x64xf32>
    %55 = vector.shape_cast %54 : vector<4x64xf32> to vector<4x64x1xf32>
    %56 = tpu.reciprocal %55 {approx = true} : vector<4x64x1xf32> -> vector<4x64x1xf32>
    %57 = vector.broadcast %56 : vector<4x64x1xf32> to vector<4x64x64xf32>
    %58 = arith.mulf %53, %57 : vector<4x64x64xf32>
    %59 = arith.truncf %58 : vector<4x64x64xf32> to vector<4x64x64xbf16>
    "tpu.trace_start"() <{level = 10 : i32, message = "gqk,gkd->gqd"}> : () -> ()
    %cst_30 = arith.constant dense<0.000000e+00> : vector<4x64x16xf32>
    %60 = tpu.matmul %59, %47, %cst_30 {dimension_numbers = #tpu.dot_dimension_numbers<[2], [1], [1], [2], [0, 0, 0, 1, 1, 2], [0], [0]>} : vector<4x64x64xbf16>, vector<4x64x16xbf16>, vector<4x64x16xf32> -> vector<4x64x16xf32>
    "tpu.trace_stop"() : () -> ()
    %61 = tpu.concatenate %44, %60 in 2 : vector<4x64x16xf32>, vector<4x64x16xf32> -> vector<4x64x32xf32>
    %c0_31 = arith.constant 0 : index
    %c0_32 = arith.constant 0 : index
    %c0_33 = arith.constant 0 : index
    %62 = vector.load %arg10[%c0_31, %c0_32, %c0_33] : memref<4x64x32xf32, #tpu.memory_space<vmem>>, vector<4x64x32xf32>
    tpu.vector_store %arg10[%c0_31, %c0_32, %c0_33], %61 {strides = array<i32>} : memref<4x64x32xf32, #tpu.memory_space<vmem>>, vector<4x64x32xf32>,
    return
  }
  func.func @transform_0(%arg0: i32) -> (i32, i32, i32) {
    %c0_i32 = arith.constant 0 : i32
    %c0_i32_0 = arith.constant 0 : i32
    %c0_i32_1 = arith.constant 0 : i32
    return %arg0, %c0_i32, %c0_i32_0 : i32, i32, i32
  }
  func.func @transform_1(%arg0: i32) -> (i32, i32, i32) {
    %c0_i32 = arith.constant 0 : i32
    %c0_i32_0 = arith.constant 0 : i32
    %c0_i32_1 = arith.constant 0 : i32
    return %arg0, %c0_i32, %c0_i32_0 : i32, i32, i32
  }
  func.func @transform_2(%arg0: i32) -> (i32, i32, i32) {
    %c0_i32 = arith.constant 0 : i32
    %c0_i32_0 = arith.constant 0 : i32
    %c0_i32_1 = arith.constant 0 : i32
    return %arg0, %c0_i32, %c0_i32_0 : i32, i32, i32
  }
  func.func @transform_3(%arg0: i32) -> (i32, i32) {
    %c0_i32 = arith.constant 0 : i32
    %c0_i32_0 = arith.constant 0 : i32
    %c0_i32_1 = arith.constant 0 : i32
    return %c0_i32, %c0_i32_0 : i32, i32
  }
  func.func @transform_4(%arg0: i32) -> (i32, i32) {
    %c0_i32 = arith.constant 0 : i32
    %c0_i32_0 = arith.constant 0 : i32
    %c0_i32_1 = arith.constant 0 : i32
    return %c0_i32, %c0_i32_0 : i32, i32
  }
  func.func @transform_5(%arg0: i32) -> (i32, i32) {
    %c0_i32 = arith.constant 0 : i32
    %c0_i32_0 = arith.constant 0 : i32
    %c0_i32_1 = arith.constant 0 : i32
    return %c0_i32, %c0_i32_0 : i32, i32
  }
  func.func @transform_6(%arg0: i32) -> (i32, i32) {
    %c0_i32 = arith.constant 0 : i32
    %c0_i32_0 = arith.constant 0 : i32
    %c0_i32_1 = arith.constant 0 : i32
    return %c0_i32, %c0_i32_0 : i32, i32
  }
  func.func @transform_7(%arg0: i32) -> (i32, i32) {
    %c0_i32 = arith.constant 0 : i32
    %c0_i32_0 = arith.constant 0 : i32
    %c0_i32_1 = arith.constant 0 : i32
    return %c0_i32, %c0_i32_0 : i32, i32
  }
  func.func @transform_8(%arg0: i32) -> (i32, i32) {
    %c0_i32 = arith.constant 0 : i32
    %c0_i32_0 = arith.constant 0 : i32
    %c0_i32_1 = arith.constant 0 : i32
    return %c0_i32, %c0_i32_0 : i32, i32
  }
  func.func @transform_9(%arg0: i32) -> (i32, i32, i32) {
    %c0_i32 = arith.constant 0 : i32
    %c0_i32_0 = arith.constant 0 : i32
    %c0_i32_1 = arith.constant 0 : i32
    return %arg0, %c0_i32, %c0_i32_0 : i32, i32, i32
  }
}

</mosaic_0001>

<llo_original>
// kernel: tpu_custom_call.1
$region0: #{tpu_custom_call.1}
  #allocation0 [shape = 'u32[]', space=smem, size = 0x4, offset = 0x4, fixed_abs, tag = 'smem constant byte address 0x4 - core index']
  #allocation1 [shape = 'u32[144,128]{1,0:T(1,128)}', space=vmem, size = 0x12000, scoped, tag = 'internal scratch']
  %s0 = inlined_call_operand.vmem [shape: bf16[8,64,4], index: 0, kind: input, shape index: {}]
  %s1 = inlined_call_operand.vmem [shape: bf16[8,64,4], index: 1, kind: input, shape index: {}]
  %s2 = inlined_call_operand.vmem [shape: bf16[8,64,4], index: 2, kind: input, shape index: {}]
  %s3 = inlined_call_operand.vmem [shape: bf16[4,32], index: 3, kind: input, shape index: {}]
  %s4 = inlined_call_operand.vmem [shape: f32[1,32], index: 4, kind: input, shape index: {}]
  %s5 = inlined_call_operand.vmem [shape: bf16[4,32], index: 5, kind: input, shape index: {}]
  %s6 = inlined_call_operand.vmem [shape: f32[1,32], index: 6, kind: input, shape index: {}]
  %s7 = inlined_call_operand.vmem [shape: bf16[4,32], index: 7, kind: input, shape index: {}]
  %s8 = inlined_call_operand.vmem [shape: f32[1,32], index: 8, kind: input, shape index: {}]
  %s9 = inlined_call_operand.vmem [shape: f32[8,64,32], index: 9, kind: output, shape index: {}]
  %s10 = sld [smem:[#allocation0]]
  $region69: #{tpu_custom_call.1} parent=0
    _
  %s12 = ssub.s32 1, %s10
  %s13 = scalar_select 0, %s12, %s10
  loop: start=0, step=1, limit=4
  $region2: #{tpu_custom_call.1} parent=0 // loop_pre_header
    _
  $region3: #{tpu_custom_call.1} parent=0 // loop_header
    %s15 = sphi 0, %s19
    %p16 = scmp.ge.s32.totalorder %s15, 4
    %s25 = sphi 0, %s27
    %s28 = sphi 0, %s25
    %s29 = sphi 0, %s28
    %s45 = sphi 0, %s29
    %s51 = sphi 0, %s53
    %s54 = sphi 0, %s51
    %s55 = sphi 0, %s54
    %s71 = sphi 0, %s55
    %s77 = sphi 0, %s79
    %s80 = sphi 0, %s77
    %s81 = sphi 0, %s80
    %s97 = sphi 0, %s81
    %s101 = sphi 0, %s101
    %s103 = sphi 0, %s101
    %s104 = sphi 0, %s103
    %s118 = sphi 0, %s104
    %s122 = sphi 0, %s122
    %s124 = sphi 0, %s122
    %s125 = sphi 0, %s124
    %s139 = sphi 0, %s125
    %s143 = sphi 0, %s143
    %s145 = sphi 0, %s143
    %s146 = sphi 0, %s145
    %s160 = sphi 0, %s146
    %s164 = sphi 0, %s164
    %s166 = sphi 0, %s164
    %s167 = sphi 0, %s166
    %s181 = sphi 0, %s167
    %s185 = sphi 0, %s185
    %s187 = sphi 0, %s185
    %s188 = sphi 0, %s187
    %s202 = sphi 0, %s188
    %s206 = sphi 0, %s206
    %s208 = sphi 0, %s206
    %s209 = sphi 0, %s208
    %s223 = sphi 0, %s209
    %s229 = sphi 0, %s231
    %s232 = sphi 0, %s229
    %s233 = sphi 0, %s232
    %s249 = sphi 0, %s233
  $region4: #{tpu_custom_call.1} parent=0 // loop_header_branch
    %18 = sbr.rel (%p16) target = $region8
  $region5: #{tpu_custom_call.1} parent=0 // loop_body
    %s20 = ssub.s32 %s15, 1
    %s21 = ssub.s32 %s15, 2
    %s22 = sadd.s32 %s15, 1
    %s23 = ssub.s32 %s15, %s22
    %p24 = scmp.eq.s32.totalorder %s23, 0
    %s26 = sadd.s32 %s25, 1
    %s27 = scalar_select %p24, %s25, %s26
    %p30 = pneg %p24
    %p31 = scmp.eq.s32.totalorder %s15, 1
    %p32 = por %p30, %p31
    %p33 = scmp.ne.s32.totalorder %s25, %s28
    %p34 = scmp.eq.s32.totalorder %s15, 0
    %p35 = por %p33, %p34
    %p36 = scmp.ne.s32.totalorder %s25, %s28
    %p37 = scmp.eq.s32.totalorder %s20, 1
    %p38 = por %p36, %p37
    %p39 = scmp.ne.s32.totalorder %s28, %s29
    %p40 = scmp.eq.s32.totalorder %s20, 0
    %p41 = por %p39, %p40
    %p42 = scmp.ne.s32.totalorder %s28, %s29
    %p43 = scmp.eq.s32.totalorder %s21, 1
    %p44 = por %p42, %p43
    %p46 = scmp.ne.s32.totalorder %s29, %s45
    %p47 = scmp.eq.s32.totalorder %s21, 0
    %p48 = por %p46, %p47
    %s49 = ssub.s32 %s15, %s22
    %p50 = scmp.eq.s32.totalorder %s49, 0
    %s52 = sadd.s32 %s51, 1
    %s53 = scalar_select %p50, %s51, %s52
    %p56 = pneg %p50
    %p57 = scmp.eq.s32.totalorder %s15, 1
    %p58 = por %p56, %p57
    %p59 = scmp.ne.s32.totalorder %s51, %s54
    %p60 = scmp.eq.s32.totalorder %s15, 0
    %p61 = por %p59, %p60
    %p62 = scmp.ne.s32.totalorder %s51, %s54
    %p63 = scmp.eq.s32.totalorder %s20, 1
    %p64 = por %p62, %p63
    %p65 = scmp.ne.s32.totalorder %s54, %s55
    %p66 = scmp.eq.s32.totalorder %s20, 0
    %p67 = por %p65, %p66
    %p68 = scmp.ne.s32.totalorder %s54, %s55
    %p69 = scmp.eq.s32.totalorder %s21, 1
    %p70 = por %p68, %p69
    %p72 = scmp.ne.s32.totalorder %s55, %s71
    %p73 = scmp.eq.s32.totalorder %s21, 0
    %p74 = por %p72, %p73
    %s75 = ssub.s32 %s15, %s22
    %p76 = scmp.eq.s32.totalorder %s75, 0
    %s78 = sadd.s32 %s77, 1
    %s79 = scalar_select %p76, %s77, %s78
    %p82 = pneg %p76
    %p83 = scmp.eq.s32.totalorder %s15, 1
    %p84 = por %p82, %p83
    %p85 = scmp.ne.s32.totalorder %s77, %s80
    %p86 = scmp.eq.s32.totalorder %s15, 0
    %p87 = por %p85, %p86
    %p88 = scmp.ne.s32.totalorder %s77, %s80
    %p89 = scmp.eq.s32.totalorder %s20, 1
    %p90 = por %p88, %p89
    %p91 = scmp.ne.s32.totalorder %s80, %s81
    %p92 = scmp.eq.s32.totalorder %s20, 0
    %p93 = por %p91, %p92
    %p94 = scmp.ne.s32.totalorder %s80, %s81
    %p95 = scmp.eq.s32.totalorder %s21, 1
    %p96 = por %p94, %p95
    %p98 = scmp.ne.s32.totalorder %s81, %s97
    %p99 = scmp.eq.s32.totalorder %s21, 0
    %p100 = por %p98, %p99
    %s102 = sadd.s32 %s101, 1
    %p105 = scmp.eq.s32.totalorder %s15, 1
    %p106 = scmp.ne.s32.totalorder %s101, %s103
    %p107 = scmp.eq.s32.totalorder %s15, 0
    %p108 = por %p106, %p107
    %p109 = scmp.ne.s32.totalorder %s101, %s103
    %p110 = scmp.eq.s32.totalorder %s20, 1
    %p111 = por %p109, %p110
    %p112 = scmp.ne.s32.totalorder %s103, %s104
    %p113 = scmp.eq.s32.totalorder %s20, 0
    %p114 = por %p112, %p113
    %p115 = scmp.ne.s32.totalorder %s103, %s104
    %p116 = scmp.eq.s32.totalorder %s21, 1
    %p117 = por %p115, %p116
    %p119 = scmp.ne.s32.totalorder %s104, %s118
    %p120 = scmp.eq.s32.totalorder %s21, 0
    %p121 = por %p119, %p120
    %s123 = sadd.s32 %s122, 1
    %p126 = scmp.eq.s32.totalorder %s15, 1
    %p127 = scmp.ne.s32.totalorder %s122, %s124
    %p128 = scmp.eq.s32.totalorder %s15, 0
    %p129 = por %p127, %p128
    %p130 = scmp.ne.s32.totalorder %s122, %s124
    %p131 = scmp.eq.s32.totalorder %s20, 1
    %p132 = por %p130, %p131
    %p133 = scmp.ne.s32.totalorder %s124, %s125
    %p134 = scmp.eq.s32.totalorder %s20, 0
    %p135 = por %p133, %p134
    %p136 = scmp.ne.s32.totalorder %s124, %s125
    %p137 = scmp.eq.s32.totalorder %s21, 1
    %p138 = por %p136, %p137
    %p140 = scmp.ne.s32.totalorder %s125, %s139
    %p141 = scmp.eq.s32.totalorder %s21, 0
    %p142 = por %p140, %p141
    %s144 = sadd.s32 %s143, 1
    %p147 = scmp.eq.s32.totalorder %s15, 1
    %p148 = scmp.ne.s32.totalorder %s143, %s145
    %p149 = scmp.eq.s32.totalorder %s15, 0
    %p150 = por %p148, %p149
    %p151 = scmp.ne.s32.totalorder %s143, %s145
    %p152 = scmp.eq.s32.totalorder %s20, 1
    %p153 = por %p151, %p152
    %p154 = scmp.ne.s32.totalorder %s145, %s146
    %p155 = scmp.eq.s32.totalorder %s20, 0
    %p156 = por %p154, %p155
    %p157 = scmp.ne.s32.totalorder %s145, %s146
    %p158 = scmp.eq.s32.totalorder %s21, 1
    %p159 = por %p157, %p158
    %p161 = scmp.ne.s32.totalorder %s146, %s160
    %p162 = scmp.eq.s32.totalorder %s21, 0
    %p163 = por %p161, %p162
    %s165 = sadd.s32 %s164, 1
    %p168 = scmp.eq.s32.totalorder %s15, 1
    %p169 = scmp.ne.s32.totalorder %s164, %s166
    %p170 = scmp.eq.s32.totalorder %s15, 0
    %p171 = por %p169, %p170
    %p172 = scmp.ne.s32.totalorder %s164, %s166
    %p173 = scmp.eq.s32.totalorder %s20, 1
    %p174 = por %p172, %p173
    %p175 = scmp.ne.s32.totalorder %s166, %s167
    %p176 = scmp.eq.s32.totalorder %s20, 0
    %p177 = por %p175, %p176
    %p178 = scmp.ne.s32.totalorder %s166, %s167
    %p179 = scmp.eq.s32.totalorder %s21, 1
    %p180 = por %p178, %p179
    %p182 = scmp.ne.s32.totalorder %s167, %s181
    %p183 = scmp.eq.s32.totalorder %s21, 0
    %p184 = por %p182, %p183
    %s186 = sadd.s32 %s185, 1
    %p189 = scmp.eq.s32.totalorder %s15, 1
    %p190 = scmp.ne.s32.totalorder %s185, %s187
    %p191 = scmp.eq.s32.totalorder %s15, 0
    %p192 = por %p190, %p191
    %p193 = scmp.ne.s32.totalorder %s185, %s187
    %p194 = scmp.eq.s32.totalorder %s20, 1
    %p195 = por %p193, %p194
    %p196 = scmp.ne.s32.totalorder %s187, %s188
    %p197 = scmp.eq.s32.totalorder %s20, 0
    %p198 = por %p196, %p197
    %p199 = scmp.ne.s32.totalorder %s187, %s188
    %p200 = scmp.eq.s32.totalorder %s21, 1
    %p201 = por %p199, %p200
    %p203 = scmp.ne.s32.totalorder %s188, %s202
    %p204 = scmp.eq.s32.totalorder %s21, 0
    %p205 = por %p203, %p204
    %s207 = sadd.s32 %s206, 1
    %p210 = scmp.eq.s32.totalorder %s15, 1
    %p211 = scmp.ne.s32.totalorder %s206, %s208
    %p212 = scmp.eq.s32.totalorder %s15, 0
    %p213 = por %p211, %p212
    %p214 = scmp.ne.s32.totalorder %s206, %s208
    %p215 = scmp.eq.s32.totalorder %s20, 1
    %p216 = por %p214, %p215
    %p217 = scmp.ne.s32.totalorder %s208, %s209
    %p218 = scmp.eq.s32.totalorder %s20, 0
    %p219 = por %p217, %p218
    %p220 = scmp.ne.s32.totalorder %s208, %s209
    %p221 = scmp.eq.s32.totalorder %s21, 1
    %p222 = por %p220, %p221
    %p224 = scmp.ne.s32.totalorder %s209, %s223
    %p225 = scmp.eq.s32.totalorder %s21, 0
    %p226 = por %p224, %p225
    %s227 = ssub.s32 %s15, %s22
    %p228 = scmp.eq.s32.totalorder %s227, 0
    %s230 = sadd.s32 %s229, 1
    %s231 = scalar_select %p228, %s229, %s230
    %p234 = pneg %p228
    %p235 = scmp.eq.s32.totalorder %s15, 1
    %p236 = por %p234, %p235
    %p237 = scmp.ne.s32.totalorder %s229, %s232
    %p238 = scmp.eq.s32.totalorder %s15, 0
    %p239 = por %p237, %p238
    %p240 = scmp.ne.s32.totalorder %s229, %s232
    %p241 = scmp.eq.s32.totalorder %s20, 1
    %p242 = por %p240, %p241
    %p243 = scmp.ne.s32.totalorder %s232, %s233
    %p244 = scmp.eq.s32.totalorder %s20, 0
    %p245 = por %p243, %p244
    %p246 = scmp.ne.s32.totalorder %s232, %s233
    %p247 = scmp.eq.s32.totalorder %s21, 1
    %p248 = por %p246, %p247
    %p250 = scmp.ne.s32.totalorder %s233, %s249
    %p251 = scmp.eq.s32.totalorder %s21, 0
    %p252 = por %p250, %p251
    %p253 = scmp.le.s32.totalorder 1, %s15
    %p254 = scmp.lt.s32.totalorder %s15, 3
    %p255 = pnand %p253, %p254
    %p256 = pneg %p255
    // Predicated region
    $region9: #{tpu_custom_call.1} parent=5 // pred_check
      _
    $region10: #{tpu_custom_call.1} parent=5 // pred_check_branch
      %258 = sbr.rel (%p255) target = $region12
    $region11: #{tpu_custom_call.1} parent=5 // pred_region
      %s259 = ssub.s32 %s15, 1
      // Predicated region
      $region13: #{tpu_custom_call.1} parent=11 // pred_check
        %p260 = pneg %p114
      $region14: #{tpu_custom_call.1} parent=11 // pred_check_branch
        %262 = sbr.rel (%p260) target = $region16
      $region15: #{tpu_custom_call.1} parent=11 // pred_region
        _
      $region16: #{tpu_custom_call.1} parent=11 // pred_fallthru
        _
      // Predicated region
      $region17: #{tpu_custom_call.1} parent=11 // pred_check
        %p263 = pneg %p135
      $region18: #{tpu_custom_call.1} parent=11 // pred_check_branch
        %265 = sbr.rel (%p263) target = $region20
      $region19: #{tpu_custom_call.1} parent=11 // pred_region
        _
      $region20: #{tpu_custom_call.1} parent=11 // pred_fallthru
        _
      // Predicated region
      $region21: #{tpu_custom_call.1} parent=11 // pred_check
        %p266 = pneg %p156
      $region22: #{tpu_custom_call.1} parent=11 // pred_check_branch
        %268 = sbr.rel (%p266) target = $region24
      $region23: #{tpu_custom_call.1} parent=11 // pred_region
        _
      $region24: #{tpu_custom_call.1} parent=11 // pred_fallthru
        _
      // Predicated region
      $region25: #{tpu_custom_call.1} parent=11 // pred_check
        %p269 = pneg %p177
      $region26: #{tpu_custom_call.1} parent=11 // pred_check_branch
        %271 = sbr.rel (%p269) target = $region28
      $region27: #{tpu_custom_call.1} parent=11 // pred_region
        _
      $region28: #{tpu_custom_call.1} parent=11 // pred_fallthru
        _
      // Predicated region
      $region29: #{tpu_custom_call.1} parent=11 // pred_check
        %p272 = pneg %p198
      $region30: #{tpu_custom_call.1} parent=11 // pred_check_branch
        %274 = sbr.rel (%p272) target = $region32
      $region31: #{tpu_custom_call.1} parent=11 // pred_region
        _
      $region32: #{tpu_custom_call.1} parent=11 // pred_fallthru
        _
      // Predicated region
      $region33: #{tpu_custom_call.1} parent=11 // pred_check
        %p275 = pneg %p219
      $region34: #{tpu_custom_call.1} parent=11 // pred_check_branch
        %277 = sbr.rel (%p275) target = $region36
      $region35: #{tpu_custom_call.1} parent=11 // pred_region
        _
      $region36: #{tpu_custom_call.1} parent=11 // pred_fallthru
        _
    $region12: #{tpu_custom_call.1} parent=5 // pred_fallthru
      _
    %p278 = scmp.lt.s32.totalorder %s15, 2
    // Predicated region
    $region37: #{tpu_custom_call.1} parent=5 // pred_check
      %p279 = pneg %p278
    $region38: #{tpu_custom_call.1} parent=5 // pred_check_branch
      %281 = sbr.rel (%p279) target = $region40
    $region39: #{tpu_custom_call.1} parent=5 // pred_region
      // Predicated region
      $region41: #{tpu_custom_call.1} parent=39 // pred_check
        %p282 = pneg %p35
      $region42: #{tpu_custom_call.1} parent=39 // pred_check_branch
        %284 = sbr.rel (%p282) target = $region44
      $region43: #{tpu_custom_call.1} parent=39 // pred_region
        %s285 = smul.u32 4, %s15
        %p286 = scmp.lt.s32.totalorder %s285, 7
        %s287 = scalar_select %p286, %s285, 7
        %s288 = smul.addr %s287, 8
        %s289 = smul.addr %s288, 4
        %s290 = scalar_lea.vmem %s0, %s289
        %s291 = smul.u32 4, %s15
      $region44: #{tpu_custom_call.1} parent=39 // pred_fallthru
        _
      // Predicated region
      $region45: #{tpu_custom_call.1} parent=39 // pred_check
        %p292 = pneg %p61
      $region46: #{tpu_custom_call.1} parent=39 // pred_check_branch
        %294 = sbr.rel (%p292) target = $region48
      $region47: #{tpu_custom_call.1} parent=39 // pred_region
        %s295 = smul.u32 4, %s15
        %p296 = scmp.lt.s32.totalorder %s295, 7
        %s297 = scalar_select %p296, %s295, 7
        %s298 = smul.addr %s297, 8
        %s299 = smul.addr %s298, 4
        %s300 = scalar_lea.vmem %s1, %s299
        %s301 = smul.u32 4, %s15
      $region48: #{tpu_custom_call.1} parent=39 // pred_fallthru
        _
      // Predicated region
      $region49: #{tpu_custom_call.1} parent=39 // pred_check
        %p302 = pneg %p87
      $region50: #{tpu_custom_call.1} parent=39 // pred_check_branch
        %304 = sbr.rel (%p302) target = $region52
      $region51: #{tpu_custom_call.1} parent=39 // pred_region
        %s305 = smul.u32 4, %s15
        %p306 = scmp.lt.s32.totalorder %s305, 7
        %s307 = scalar_select %p306, %s305, 7
        %s308 = smul.addr %s307, 8
        %s309 = smul.addr %s308, 4
        %s310 = scalar_lea.vmem %s2, %s309
        %s311 = smul.u32 4, %s15
      $region52: #{tpu_custom_call.1} parent=39 // pred_fallthru
        _
    $region40: #{tpu_custom_call.1} parent=5 // pred_fallthru
      _
    %p312 = scmp.le.s32.totalorder 1, %s15
    %p313 = scmp.lt.s32.totalorder %s15, 3
    %p314 = pnand %p312, %p313
    %p315 = pneg %p314
    // Predicated region
    $region53: #{tpu_custom_call.1} parent=5 // pred_check
      _
    $region54: #{tpu_custom_call.1} parent=5 // pred_check_branch
      %317 = sbr.rel (%p314) target = $region56
    $region55: #{tpu_custom_call.1} parent=5 // pred_region
      %s318 = ssub.s32 %s15, 1
      %s319 = smul.u32 4, %s20
      %p320 = scmp.lt.s32.totalorder %s319, 7
      %s321 = scalar_select %p320, %s319, 7
      %s322 = smul.addr %s321, 8
      %s323 = smul.addr %s322, 4
      %s324 = scalar_lea.vmem %s0, %s323
      %p325 = pneg %p41
      %p326 = pneg %p38
      %s327 = smul.u32 4, %s20
      %p328 = scmp.lt.s32.totalorder %s327, 7
      %s329 = scalar_select %p328, %s327, 7
      %s330 = smul.addr %s329, 8
      %s331 = smul.addr %s330, 4
      %s332 = scalar_lea.vmem %s1, %s331
      %p333 = pneg %p67
      %p334 = pneg %p64
      %s335 = smul.u32 4, %s20
      %p336 = scmp.lt.s32.totalorder %s335, 7
      %s337 = scalar_select %p336, %s335, 7
      %s338 = smul.addr %s337, 8
      %s339 = smul.addr %s338, 4
      %s340 = scalar_lea.vmem %s2, %s339
      %p341 = pneg %p93
      %p342 = pneg %p90
      %p343 = pneg %p114
      %p344 = pneg %p111
      %p345 = pneg %p135
      %p346 = pneg %p132
      %p347 = pneg %p156
      %p348 = pneg %p153
      %p349 = pneg %p177
      %p350 = pneg %p174
      %p351 = pneg %p198
      %p352 = pneg %p195
      %p353 = pneg %p219
      %p354 = pneg %p216
      %p355 = pneg %p245
      %p356 = pneg %p242
      %s357 = smul.u32 4, %s20
      %p358 = scmp.lt.s32.totalorder %s357, 7
      %s359 = scalar_select %p358, %s357, 7
      %s360 = smul.addr %s359, 8
      %s361 = smul.addr %s360, 8
      %s362 = scalar_lea.vmem %s9, %s361
      %s363 = smul.u32 4, %s20
      %p364 = scmp.lt.s32.totalorder %s363, 7
      %s365 = scalar_select %p364, %s363, 7
      %s366 = smul.addr %s365, 8
      %s367 = smul.addr %s366, 4
      %s368 = scalar_lea.vmem %s0, %s367
      %s369 = smul.u32 4, %s20
      %s370 = smul.u32 4, %s20
      %p371 = scmp.lt.s32.totalorder %s370, 7
      %s372 = scalar_select %p371, %s370, 7
      %s373 = smul.addr %s372, 8
      %s374 = smul.addr %s373, 4
      %s375 = scalar_lea.vmem %s1, %s374
      %s376 = smul.u32 4, %s20
      %s377 = smul.u32 4, %s20
      %p378 = scmp.lt.s32.totalorder %s377, 7
      %s379 = scalar_select %p378, %s377, 7
      %s380 = smul.addr %s379, 8
      %s381 = smul.addr %s380, 4
      %s382 = scalar_lea.vmem %s2, %s381
      %s383 = smul.u32 4, %s20
      %s384 = smul.u32 4, %s20
      %p385 = scmp.lt.s32.totalorder %s384, 7
      %s386 = scalar_select %p385, %s384, 7
      %s387 = smul.addr %s386, 8
      %s388 = smul.addr %s387, 8
      %s389 = scalar_lea.vmem %s9, %s388
      %s390 = smul.u32 4, %s20
      %v392 = vld [vmem:[%s368] sm:$0xf]
      %v393 = vld [vmem:[%s368 + $0x4] sm:$0xf]
      %v394 = vld [vmem:[%s368 + $0x8] sm:$0xf]
      %v395 = vld [vmem:[%s368 + $0xc] sm:$0xf]
      %v396 = vld [vmem:[%s368 + $0x10] sm:$0xf]
      %v397 = vld [vmem:[%s368 + $0x14] sm:$0xf]
      %v398 = vld [vmem:[%s368 + $0x18] sm:$0xf]
      %v399 = vld [vmem:[%s368 + $0x1c] sm:$0xf]
      %v400 = vld [vmem:[%s368 + $0x20] sm:$0xf]
      %v401 = vld [vmem:[%s368 + $0x24] sm:$0xf]
      %v402 = vld [vmem:[%s368 + $0x28] sm:$0xf]
      %v403 = vld [vmem:[%s368 + $0x2c] sm:$0xf]
      %v404 = vld [vmem:[%s368 + $0x30] sm:$0xf]
      %v405 = vld [vmem:[%s368 + $0x34] sm:$0xf]
      %v406 = vld [vmem:[%s368 + $0x38] sm:$0xf]
      %v407 = vld [vmem:[%s368 + $0x3c] sm:$0xf]
      %v408 = vld [vmem:[%s368 + $0x40] sm:$0xf]
      %v409 = vld [vmem:[%s368 + $0x44] sm:$0xf]
      %v410 = vld [vmem:[%s368 + $0x48] sm:$0xf]
      %v411 = vld [vmem:[%s368 + $0x4c] sm:$0xf]
      %v412 = vld [vmem:[%s368 + $0x50] sm:$0xf]
      %v413 = vld [vmem:[%s368 + $0x54] sm:$0xf]
      %v414 = vld [vmem:[%s368 + $0x58] sm:$0xf]
      %v415 = vld [vmem:[%s368 + $0x5c] sm:$0xf]
      %v416 = vld [vmem:[%s368 + $0x60] sm:$0xf]
      %v417 = vld [vmem:[%s368 + $0x64] sm:$0xf]
      %v418 = vld [vmem:[%s368 + $0x68] sm:$0xf]
      %v419 = vld [vmem:[%s368 + $0x6c] sm:$0xf]
      %v420 = vld [vmem:[%s368 + $0x70] sm:$0xf]
      %v421 = vld [vmem:[%s368 + $0x74] sm:$0xf]
      %v422 = vld [vmem:[%s368 + $0x78] sm:$0xf]
      %v423 = vld [vmem:[%s368 + $0x7c] sm:$0xf]
      %v424 = vld [vmem:[%s375] sm:$0xf]
      %v425 = vld [vmem:[%s375 + $0x4] sm:$0xf]
      %v426 = vld [vmem:[%s375 + $0x8] sm:$0xf]
      %v427 = vld [vmem:[%s375 + $0xc] sm:$0xf]
      %v428 = vld [vmem:[%s375 + $0x10] sm:$0xf]
      %v429 = vld [vmem:[%s375 + $0x14] sm:$0xf]
      %v430 = vld [vmem:[%s375 + $0x18] sm:$0xf]
      %v431 = vld [vmem:[%s375 + $0x1c] sm:$0xf]
      %v432 = vld [vmem:[%s375 + $0x20] sm:$0xf]
      %v433 = vld [vmem:[%s375 + $0x24] sm:$0xf]
      %v434 = vld [vmem:[%s375 + $0x28] sm:$0xf]
      %v435 = vld [vmem:[%s375 + $0x2c] sm:$0xf]
      %v436 = vld [vmem:[%s375 + $0x30] sm:$0xf]
      %v437 = vld [vmem:[%s375 + $0x34] sm:$0xf]
      %v438 = vld [vmem:[%s375 + $0x38] sm:$0xf]
      %v439 = vld [vmem:[%s375 + $0x3c] sm:$0xf]
      %v440 = vld [vmem:[%s375 + $0x40] sm:$0xf]
      %v441 = vld [vmem:[%s375 + $0x44] sm:$0xf]
      %v442 = vld [vmem:[%s375 + $0x48] sm:$0xf]
      %v443 = vld [vmem:[%s375 + $0x4c] sm:$0xf]
      %v444 = vld [vmem:[%s375 + $0x50] sm:$0xf]
      %v445 = vld [vmem:[%s375 + $0x54] sm:$0xf]
      %v446 = vld [vmem:[%s375 + $0x58] sm:$0xf]
      %v447 = vld [vmem:[%s375 + $0x5c] sm:$0xf]
      %v448 = vld [vmem:[%s375 + $0x60] sm:$0xf]
      %v449 = vld [vmem:[%s375 + $0x64] sm:$0xf]
      %v450 = vld [vmem:[%s375 + $0x68] sm:$0xf]
      %v451 = vld [vmem:[%s375 + $0x6c] sm:$0xf]
      %v452 = vld [vmem:[%s375 + $0x70] sm:$0xf]
      %v453 = vld [vmem:[%s375 + $0x74] sm:$0xf]
      %v454 = vld [vmem:[%s375 + $0x78] sm:$0xf]
      %v455 = vld [vmem:[%s375 + $0x7c] sm:$0xf]
      %v456 = vld [vmem:[%s382] sm:$0xf]
      %v457 = vld [vmem:[%s382 + $0x4] sm:$0xf]
      %v458 = vld [vmem:[%s382 + $0x8] sm:$0xf]
      %v459 = vld [vmem:[%s382 + $0xc] sm:$0xf]
      %v460 = vld [vmem:[%s382 + $0x10] sm:$0xf]
      %v461 = vld [vmem:[%s382 + $0x14] sm:$0xf]
      %v462 = vld [vmem:[%s382 + $0x18] sm:$0xf]
      %v463 = vld [vmem:[%s382 + $0x1c] sm:$0xf]
      %v464 = vld [vmem:[%s382 + $0x20] sm:$0xf]
      %v465 = vld [vmem:[%s382 + $0x24] sm:$0xf]
      %v466 = vld [vmem:[%s382 + $0x28] sm:$0xf]
      %v467 = vld [vmem:[%s382 + $0x2c] sm:$0xf]
      %v468 = vld [vmem:[%s382 + $0x30] sm:$0xf]
      %v469 = vld [vmem:[%s382 + $0x34] sm:$0xf]
      %v470 = vld [vmem:[%s382 + $0x38] sm:$0xf]
      %v471 = vld [vmem:[%s382 + $0x3c] sm:$0xf]
      %v472 = vld [vmem:[%s382 + $0x40] sm:$0xf]
      %v473 = vld [vmem:[%s382 + $0x44] sm:$0xf]
      %v474 = vld [vmem:[%s382 + $0x48] sm:$0xf]
      %v475 = vld [vmem:[%s382 + $0x4c] sm:$0xf]
      %v476 = vld [vmem:[%s382 + $0x50] sm:$0xf]
      %v477 = vld [vmem:[%s382 + $0x54] sm:$0xf]
      %v478 = vld [vmem:[%s382 + $0x58] sm:$0xf]
      %v479 = vld [vmem:[%s382 + $0x5c] sm:$0xf]
      %v480 = vld [vmem:[%s382 + $0x60] sm:$0xf]
      %v481 = vld [vmem:[%s382 + $0x64] sm:$0xf]
      %v482 = vld [vmem:[%s382 + $0x68] sm:$0xf]
      %v483 = vld [vmem:[%s382 + $0x6c] sm:$0xf]
      %v484 = vld [vmem:[%s382 + $0x70] sm:$0xf]
      %v485 = vld [vmem:[%s382 + $0x74] sm:$0xf]
      %v486 = vld [vmem:[%s382 + $0x78] sm:$0xf]
      %v487 = vld [vmem:[%s382 + $0x7c] sm:$0xf]
      %v488 = vld [vmem:[%s3] sm:$0x3]
      %v489 = vld [vmem:[%s4] sm:$0x1]
      %v491 = vlaneseq
      %v492 = vshrl.u32 %v491, 7
      %v493 = vsub.s32 0, %v492
      %v494 = vrot.slane %v489, %v493
      %v528 = vunpack.c.l.b16 %v392
      %v529 = vunpack.c.l.b16 %v393
      %v530 = vunpack.c.l.b16 %v394
      %v531 = vunpack.c.l.b16 %v395
      %v532 = vunpack.c.l.b16 %v396
      %v533 = vunpack.c.l.b16 %v397
      %v534 = vunpack.c.l.b16 %v398
      %v535 = vunpack.c.l.b16 %v399
      %v536 = vunpack.c.l.b16 %v400
      %v537 = vunpack.c.l.b16 %v401
      %v538 = vunpack.c.l.b16 %v402
      %v539 = vunpack.c.l.b16 %v403
      %v540 = vunpack.c.l.b16 %v404
      %v541 = vunpack.c.l.b16 %v405
      %v542 = vunpack.c.l.b16 %v406
      %v543 = vunpack.c.l.b16 %v407
      %v544 = vunpack.c.l.b16 %v408
      %v545 = vunpack.c.l.b16 %v409
      %v546 = vunpack.c.l.b16 %v410
      %v547 = vunpack.c.l.b16 %v411
      %v548 = vunpack.c.l.b16 %v412
      %v549 = vunpack.c.l.b16 %v413
      %v550 = vunpack.c.l.b16 %v414
      %v551 = vunpack.c.l.b16 %v415
      %v552 = vunpack.c.l.b16 %v416
      %v553 = vunpack.c.l.b16 %v417
      %v554 = vunpack.c.l.b16 %v418
      %v555 = vunpack.c.l.b16 %v419
      %v556 = vunpack.c.l.b16 %v420
      %v557 = vunpack.c.l.b16 %v421
      %v558 = vunpack.c.l.b16 %v422
      %v559 = vunpack.c.l.b16 %v423
      %v560 = vpack.c.b16 %v529, %v528
      %v561 = vpack.c.b16 %v531, %v530
      %v562 = vpack.c.b16 %v533, %v532
      %v563 = vpack.c.b16 %v535, %v534
      %v564 = vpack.c.b16 %v537, %v536
      %v565 = vpack.c.b16 %v539, %v538
      %v566 = vpack.c.b16 %v541, %v540
      %v567 = vpack.c.b16 %v543, %v542
      %v568 = vpack.c.b16 %v545, %v544
      %v569 = vpack.c.b16 %v547, %v546
      %v570 = vpack.c.b16 %v549, %v548
      %v571 = vpack.c.b16 %v551, %v550
      %v572 = vpack.c.b16 %v553, %v552
      %v573 = vpack.c.b16 %v555, %v554
      %v574 = vpack.c.b16 %v557, %v556
      %v575 = vpack.c.b16 %v559, %v558
      %vm576 = vcmask 31744
      %v578 = vsel %vm576, %v560, 0
      %v581 = vsel %vm576, %v561, 0
      %v584 = vsel %vm576, %v562, 0
      %v587 = vsel %vm576, %v563, 0
      %v590 = vsel %vm576, %v564, 0
      %v593 = vsel %vm576, %v565, 0
      %v596 = vsel %vm576, %v566, 0
      %v599 = vsel %vm576, %v567, 0
      %v602 = vsel %vm576, %v568, 0
      %v605 = vsel %vm576, %v569, 0
      %v608 = vsel %vm576, %v570, 0
      %v611 = vsel %vm576, %v571, 0
      %v614 = vsel %vm576, %v572, 0
      %v617 = vsel %vm576, %v573, 0
      %v620 = vsel %vm576, %v574, 0
      %v623 = vsel %vm576, %v575, 0
      %vm625 = vcmask 1041408
      %v627 = vsel %vm625, %v488, 0
      %629 = vmatprep.subr.bf16.mxu0 0
      %630 = vmatpush1.bf16.msra.mxu0 %v627
      %631 = vmatprep.subr.bf16.mxu0 0
      %632 = vmatpush1.bf16.msra.mxu0 0
      %633 = vmatprep.subr.bf16.mxu0 0
      %634 = vmatpush1.bf16.msra.mxu0 0
      %635 = vmatprep.subr.bf16.mxu0 0
      %636 = vmatpush1.bf16.msra.mxu0 0
      %637 = vmatprep.subr.bf16.mxu0 0
      %638 = vmatpush1.bf16.msra.mxu0 0
      %639 = vmatprep.subr.bf16.mxu0 0
      %640 = vmatpush1.bf16.msra.mxu0 0
      %641 = vmatprep.subr.bf16.mxu0 0
      %642 = vmatpush1.bf16.msra.mxu0 0
      %643 = vmatprep.subr.bf16.mxu0 0
      %644 = vmatpush1.bf16.msra.mxu0 0
      %645 = vmatprep.subr.bf16.mxu0 0
      %646 = vmatpush1.bf16.msra.mxu0 0
      %647 = vmatprep.subr.bf16.mxu0 0
      %648 = vmatpush1.bf16.msra.mxu0 0
      %649 = vmatprep.subr.bf16.mxu0 0
      %650 = vmatpush1.bf16.msra.mxu0 0
      %651 = vmatprep.subr.bf16.mxu0 0
      %652 = vmatpush1.bf16.msra.mxu0 0
      %653 = vmatprep.subr.bf16.mxu0 0
      %654 = vmatpush1.bf16.msra.mxu0 0
      %655 = vmatprep.subr.bf16.mxu0 0
      %656 = vmatpush1.bf16.msra.mxu0 0
      %657 = vmatprep.subr.bf16.mxu0 0
      %658 = vmatpush1.bf16.msra.mxu0 0
      %659 = vmatprep.subr.bf16.mxu0 0
      %660 = vmatpush1.bf16.msra.mxu0 0
      %661 = vmatprep.mubr.bf16.mxu0 0
      %662 = vmatmul.mubr.bf16.gmra.mrb[0].mxu0 %v578
      %v663 = vpop.f32.mrb[0].mxu0
      %v664 = vadd.f32 %v494, %v663
      %v665 = vpop.f32.mrb[0].mxu0
      %v666 = vpop.f32.mrb[0].mxu0
      %v667 = vadd.f32 %v494, %v666
      %v668 = vpop.f32.mrb[0].mxu0
      %669 = vmatprep.mubr.bf16.mxu0 0
      %670 = vmatmul.mubr.bf16.gmra.mrb[0].mxu0 %v581
      %v671 = vpop.f32.mrb[0].mxu0
      %v672 = vadd.f32 %v494, %v671
      %v673 = vpop.f32.mrb[0].mxu0
      %v674 = vpop.f32.mrb[0].mxu0
      %v675 = vadd.f32 %v494, %v674
      %v676 = vpop.f32.mrb[0].mxu0
      %677 = vmatprep.mubr.bf16.mxu0 0
      %678 = vmatmul.mubr.bf16.gmra.mrb[0].mxu0 %v584
      %v679 = vpop.f32.mrb[0].mxu0
      %v680 = vadd.f32 %v494, %v679
      %v681 = vpop.f32.mrb[0].mxu0
      %v682 = vpop.f32.mrb[0].mxu0
      %v683 = vadd.f32 %v494, %v682
      %v684 = vpop.f32.mrb[0].mxu0
      %685 = vmatprep.mubr.bf16.mxu0 0
      %686 = vmatmul.mubr.bf16.gmra.mrb[0].mxu0 %v587
      %v687 = vpop.f32.mrb[0].mxu0
      %v688 = vadd.f32 %v494, %v687
      %v689 = vpop.f32.mrb[0].mxu0
      %v690 = vpop.f32.mrb[0].mxu0
      %v691 = vadd.f32 %v494, %v690
      %v692 = vpop.f32.mrb[0].mxu0
      %693 = vmatprep.mubr.bf16.mxu0 0
      %694 = vmatmul.mubr.bf16.gmra.mrb[0].mxu0 %v590
      %v695 = vpop.f32.mrb[0].mxu0
      %v696 = vadd.f32 %v494, %v695
      %v697 = vpop.f32.mrb[0].mxu0
      %v698 = vpop.f32.mrb[0].mxu0
      %v699 = vadd.f32 %v494, %v698
      %v700 = vpop.f32.mrb[0].mxu0
      %701 = vmatprep.mubr.bf16.mxu0 0
      %702 = vmatmul.mubr.bf16.gmra.mrb[0].mxu0 %v593
      %v703 = vpop.f32.mrb[0].mxu0
      %v704 = vadd.f32 %v494, %v703
      %v705 = vpop.f32.mrb[0].mxu0
      %v706 = vpop.f32.mrb[0].mxu0
      %v707 = vadd.f32 %v494, %v706
      %v708 = vpop.f32.mrb[0].mxu0
      %709 = vmatprep.mubr.bf16.mxu0 0
      %710 = vmatmul.mubr.bf16.gmra.mrb[0].mxu0 %v596
      %v711 = vpop.f32.mrb[0].mxu0
      %v712 = vadd.f32 %v494, %v711
      %v713 = vpop.f32.mrb[0].mxu0
      %v714 = vpop.f32.mrb[0].mxu0
      %v715 = vadd.f32 %v494, %v714
      %v716 = vpop.f32.mrb[0].mxu0
      %717 = vmatprep.mubr.bf16.mxu0 0
      %718 = vmatmul.mubr.bf16.gmra.mrb[0].mxu0 %v599
      %v719 = vpop.f32.mrb[0].mxu0
      %v720 = vadd.f32 %v494, %v719
      %v721 = vpop.f32.mrb[0].mxu0
      %v722 = vpop.f32.mrb[0].mxu0
      %v723 = vadd.f32 %v494, %v722
      %v724 = vpop.f32.mrb[0].mxu0
      %725 = vmatprep.mubr.bf16.mxu0 0
      %726 = vmatmul.mubr.bf16.gmra.mrb[0].mxu0 %v602
      %v727 = vpop.f32.mrb[0].mxu0
      %v728 = vadd.f32 %v494, %v727
      %v729 = vpop.f32.mrb[0].mxu0
      %v730 = vpop.f32.mrb[0].mxu0
      %v731 = vadd.f32 %v494, %v730
      %v732 = vpop.f32.mrb[0].mxu0
      %733 = vmatprep.mubr.bf16.mxu0 0
      %734 = vmatmul.mubr.bf16.gmra.mrb[0].mxu0 %v605
      %v735 = vpop.f32.mrb[0].mxu0
      %v736 = vadd.f32 %v494, %v735
      %v737 = vpop.f32.mrb[0].mxu0
      %v738 = vpop.f32.mrb[0].mxu0
      %v739 = vadd.f32 %v494, %v738
      %v740 = vpop.f32.mrb[0].mxu0
      %741 = vmatprep.mubr.bf16.mxu0 0
      %742 = vmatmul.mubr.bf16.gmra.mrb[0].mxu0 %v608
      %v743 = vpop.f32.mrb[0].mxu0
      %v744 = vadd.f32 %v494, %v743
      %v745 = vpop.f32.mrb[0].mxu0
      %v746 = vpop.f32.mrb[0].mxu0
      %v747 = vadd.f32 %v494, %v746
      %v748 = vpop.f32.mrb[0].mxu0
      %749 = vmatprep.mubr.bf16.mxu0 0
      %750 = vmatmul.mubr.bf16.gmra.mrb[0].mxu0 %v611
      %v751 = vpop.f32.mrb[0].mxu0
      %v752 = vadd.f32 %v494, %v751
      %v753 = vpop.f32.mrb[0].mxu0
      %v754 = vpop.f32.mrb[0].mxu0
      %v755 = vadd.f32 %v494, %v754
      %v756 = vpop.f32.mrb[0].mxu0
      %757 = vmatprep.mubr.bf16.mxu0 0
      %758 = vmatmul.mubr.bf16.gmra.mrb[0].mxu0 %v614
      %v759 = vpop.f32.mrb[0].mxu0
      %v760 = vadd.f32 %v494, %v759
      %v761 = vpop.f32.mrb[0].mxu0
      %v762 = vpop.f32.mrb[0].mxu0
      %v763 = vadd.f32 %v494, %v762
      %v764 = vpop.f32.mrb[0].mxu0
      %765 = vmatprep.mubr.bf16.mxu0 0
      %766 = vmatmul.mubr.bf16.gmra.mrb[0].mxu0 %v617
      %v767 = vpop.f32.mrb[0].mxu0
      %v768 = vadd.f32 %v494, %v767
      %v769 = vpop.f32.mrb[0].mxu0
      %v770 = vpop.f32.mrb[0].mxu0
      %v771 = vadd.f32 %v494, %v770
      %v772 = vpop.f32.mrb[0].mxu0
      %773 = vmatprep.mubr.bf16.mxu0 0
      %774 = vmatmul.mubr.bf16.gmra.mrb[0].mxu0 %v620
      %v775 = vpop.f32.mrb[0].mxu0
      %v776 = vadd.f32 %v494, %v775
      %v777 = vpop.f32.mrb[0].mxu0
      %v778 = vpop.f32.mrb[0].mxu0
      %v779 = vadd.f32 %v494, %v778
      %v780 = vpop.f32.mrb[0].mxu0
      %781 = vmatprep.mubr.bf16.mxu0 0
      %782 = vmatmul.mubr.bf16.gmra.mrb[0].mxu0 %v623
      %v783 = vpop.f32.mrb[0].mxu0
      %v784 = vadd.f32 %v494, %v783
      %v785 = vpop.f32.mrb[0].mxu0
      %v786 = vpop.f32.mrb[0].mxu0
      %v787 = vadd.f32 %v494, %v786
      %v788 = vpop.f32.mrb[0].mxu0
      %789 = vdwg.mxu0
      %v790 = vld [vmem:[%s5] sm:$0x3]
      %v791 = vld [vmem:[%s6] sm:$0x1]
      %v793 = vlaneseq
      %v794 = vshrl.u32 %v793, 7
      %v795 = vsub.s32 0, %v794
      %v796 = vrot.slane %v791, %v795
      %v830 = vunpack.c.l.b16 %v424
      %v831 = vunpack.c.l.b16 %v425
      %v832 = vunpack.c.l.b16 %v426
      %v833 = vunpack.c.l.b16 %v427
      %v834 = vunpack.c.l.b16 %v428
      %v835 = vunpack.c.l.b16 %v429
      %v836 = vunpack.c.l.b16 %v430
      %v837 = vunpack.c.l.b16 %v431
      %v838 = vunpack.c.l.b16 %v432
      %v839 = vunpack.c.l.b16 %v433
      %v840 = vunpack.c.l.b16 %v434
      %v841 = vunpack.c.l.b16 %v435
      %v842 = vunpack.c.l.b16 %v436
      %v843 = vunpack.c.l.b16 %v437
      %v844 = vunpack.c.l.b16 %v438
      %v845 = vunpack.c.l.b16 %v439
      %v846 = vunpack.c.l.b16 %v440
      %v847 = vunpack.c.l.b16 %v441
      %v848 = vunpack.c.l.b16 %v442
      %v849 = vunpack.c.l.b16 %v443
      %v850 = vunpack.c.l.b16 %v444
      %v851 = vunpack.c.l.b16 %v445
      %v852 = vunpack.c.l.b16 %v446
      %v853 = vunpack.c.l.b16 %v447
      %v854 = vunpack.c.l.b16 %v448
      %v855 = vunpack.c.l.b16 %v449
      %v856 = vunpack.c.l.b16 %v450
      %v857 = vunpack.c.l.b16 %v451
      %v858 = vunpack.c.l.b16 %v452
      %v859 = vunpack.c.l.b16 %v453
      %v860 = vunpack.c.l.b16 %v454
      %v861 = vunpack.c.l.b16 %v455
      %v862 = vpack.c.b16 %v831, %v830
      %v863 = vpack.c.b16 %v833, %v832
      %v864 = vpack.c.b16 %v835, %v834
      %v865 = vpack.c.b16 %v837, %v836
      %v866 = vpack.c.b16 %v839, %v838
      %v867 = vpack.c.b16 %v841, %v840
      %v868 = vpack.c.b16 %v843, %v842
      %v869 = vpack.c.b16 %v845, %v844
      %v870 = vpack.c.b16 %v847, %v846
      %v871 = vpack.c.b16 %v849, %v848
      %v872 = vpack.c.b16 %v851, %v850
      %v873 = vpack.c.b16 %v853, %v852
      %v874 = vpack.c.b16 %v855, %v854
      %v875 = vpack.c.b16 %v857, %v856
      %v876 = vpack.c.b16 %v859, %v858
      %v877 = vpack.c.b16 %v861, %v860
      %v879 = vsel %vm576, %v862, 0
      %v882 = vsel %vm576, %v863, 0
      %v885 = vsel %vm576, %v864, 0
      %v888 = vsel %vm576, %v865, 0
      %v891 = vsel %vm576, %v866, 0
      %v894 = vsel %vm576, %v867, 0
      %v897 = vsel %vm576, %v868, 0
      %v900 = vsel %vm576, %v869, 0
      %v903 = vsel %vm576, %v870, 0
      %v906 = vsel %vm576, %v871, 0
      %v909 = vsel %vm576, %v872, 0
      %v912 = vsel %vm576, %v873, 0
      %v915 = vsel %vm576, %v874, 0
      %v918 = vsel %vm576, %v875, 0
      %v921 = vsel %vm576, %v876, 0
      %v924 = vsel %vm576, %v877, 0
      %v927 = vsel %vm625, %v790, 0
      %929 = vmatprep.subr.bf16.mxu0 0
      %930 = vmatpush1.bf16.msra.mxu0 %v927
      %931 = vmatprep.subr.bf16.mxu0 0
      %932 = vmatpush1.bf16.msra.mxu0 0
      %933 = vmatprep.subr.bf16.mxu0 0
      %934 = vmatpush1.bf16.msra.mxu0 0
      %935 = vmatprep.subr.bf16.mxu0 0
      %936 = vmatpush1.bf16.msra.mxu0 0
      %937 = vmatprep.subr.bf16.mxu0 0
      %938 = vmatpush1.bf16.msra.mxu0 0
      %939 = vmatprep.subr.bf16.mxu0 0
      %940 = vmatpush1.bf16.msra.mxu0 0
      %941 = vmatprep.subr.bf16.mxu0 0
      %942 = vmatpush1.bf16.msra.mxu0 0
      %943 = vmatprep.subr.bf16.mxu0 0
      %944 = vmatpush1.bf16.msra.mxu0 0
      %945 = vmatprep.subr.bf16.mxu0 0
      %946 = vmatpush1.bf16.msra.mxu0 0
      %947 = vmatprep.subr.bf16.mxu0 0
      %948 = vmatpush1.bf16.msra.mxu0 0
      %949 = vmatprep.subr.bf16.mxu0 0
      %950 = vmatpush1.bf16.msra.mxu0 0
      %951 = vmatprep.subr.bf16.mxu0 0
      %952 = vmatpush1.bf16.msra.mxu0 0
      %953 = vmatprep.subr.bf16.mxu0 0
      %954 = vmatpush1.bf16.msra.mxu0 0
      %955 = vmatprep.subr.bf16.mxu0 0
      %956 = vmatpush1.bf16.msra.mxu0 0
      %957 = vmatprep.subr.bf16.mxu0 0
      %958 = vmatpush1.bf16.msra.mxu0 0
      %959 = vmatprep.subr.bf16.mxu0 0
      %960 = vmatpush1.bf16.msra.mxu0 0
      %961 = vmatprep.mubr.bf16.mxu0 0
      %962 = vmatmul.mubr.bf16.gmra.mrb[0].mxu0 %v879
      %v963 = vpop.f32.mrb[0].mxu0
      %v964 = vadd.f32 %v796, %v963
      %v965 = vpop.f32.mrb[0].mxu0
      %v966 = vpop.f32.mrb[0].mxu0
      %v967 = vadd.f32 %v796, %v966
      %v968 = vpop.f32.mrb[0].mxu0
      %969 = vmatprep.mubr.bf16.mxu0 0
      %970 = vmatmul.mubr.bf16.gmra.mrb[0].mxu0 %v882
      %v971 = vpop.f32.mrb[0].mxu0
      %v972 = vadd.f32 %v796, %v971
      %v973 = vpop.f32.mrb[0].mxu0
      %v974 = vpop.f32.mrb[0].mxu0
      %v975 = vadd.f32 %v796, %v974
      %v976 = vpop.f32.mrb[0].mxu0
      %977 = vmatprep.mubr.bf16.mxu0 0
      %978 = vmatmul.mubr.bf16.gmra.mrb[0].mxu0 %v885
      %v979 = vpop.f32.mrb[0].mxu0
      %v980 = vadd.f32 %v796, %v979
      %v981 = vpop.f32.mrb[0].mxu0
      %v982 = vpop.f32.mrb[0].mxu0
      %v983 = vadd.f32 %v796, %v982
      %v984 = vpop.f32.mrb[0].mxu0
      %985 = vmatprep.mubr.bf16.mxu0 0
      %986 = vmatmul.mubr.bf16.gmra.mrb[0].mxu0 %v888
      %v987 = vpop.f32.mrb[0].mxu0
      %v988 = vadd.f32 %v796, %v987
      %v989 = vpop.f32.mrb[0].mxu0
      %v990 = vpop.f32.mrb[0].mxu0
      %v991 = vadd.f32 %v796, %v990
      %v992 = vpop.f32.mrb[0].mxu0
      %993 = vmatprep.mubr.bf16.mxu0 0
      %994 = vmatmul.mubr.bf16.gmra.mrb[0].mxu0 %v891
      %v995 = vpop.f32.mrb[0].mxu0
      %v996 = vadd.f32 %v796, %v995
      %v997 = vpop.f32.mrb[0].mxu0
      %v998 = vpop.f32.mrb[0].mxu0
      %v999 = vadd.f32 %v796, %v998
      %v1000 = vpop.f32.mrb[0].mxu0
      %1001 = vmatprep.mubr.bf16.mxu0 0
      %1002 = vmatmul.mubr.bf16.gmra.mrb[0].mxu0 %v894
      %v1003 = vpop.f32.mrb[0].mxu0
      %v1004 = vadd.f32 %v796, %v1003
      %v1005 = vpop.f32.mrb[0].mxu0
      %v1006 = vpop.f32.mrb[0].mxu0
      %v1007 = vadd.f32 %v796, %v1006
      %v1008 = vpop.f32.mrb[0].mxu0
      %1009 = vmatprep.mubr.bf16.mxu0 0
      %1010 = vmatmul.mubr.bf16.gmra.mrb[0].mxu0 %v897
      %v1011 = vpop.f32.mrb[0].mxu0
      %v1012 = vadd.f32 %v796, %v1011
      %v1013 = vpop.f32.mrb[0].mxu0
      %v1014 = vpop.f32.mrb[0].mxu0
      %v1015 = vadd.f32 %v796, %v1014
      %v1016 = vpop.f32.mrb[0].mxu0
      %1017 = vmatprep.mubr.bf16.mxu0 0
      %1018 = vmatmul.mubr.bf16.gmra.mrb[0].mxu0 %v900
      %v1019 = vpop.f32.mrb[0].mxu0
      %v1020 = vadd.f32 %v796, %v1019
      %v1021 = vpop.f32.mrb[0].mxu0
      %v1022 = vpop.f32.mrb[0].mxu0
      %v1023 = vadd.f32 %v796, %v1022
      %v1024 = vpop.f32.mrb[0].mxu0
      %1025 = vmatprep.mubr.bf16.mxu0 0
      %1026 = vmatmul.mubr.bf16.gmra.mrb[0].mxu0 %v903
      %v1027 = vpop.f32.mrb[0].mxu0
      %v1028 = vadd.f32 %v796, %v1027
      %v1029 = vpop.f32.mrb[0].mxu0
      %v1030 = vpop.f32.mrb[0].mxu0
      %v1031 = vadd.f32 %v796, %v1030
      %v1032 = vpop.f32.mrb[0].mxu0
      %1033 = vmatprep.mubr.bf16.mxu0 0
      %1034 = vmatmul.mubr.bf16.gmra.mrb[0].mxu0 %v906
      %v1035 = vpop.f32.mrb[0].mxu0
      %v1036 = vadd.f32 %v796, %v1035
      %v1037 = vpop.f32.mrb[0].mxu0
      %v1038 = vpop.f32.mrb[0].mxu0
      %v1039 = vadd.f32 %v796, %v1038
      %v1040 = vpop.f32.mrb[0].mxu0
      %1041 = vmatprep.mubr.bf16.mxu0 0
      %1042 = vmatmul.mubr.bf16.gmra.mrb[0].mxu0 %v909
      %v1043 = vpop.f32.mrb[0].mxu0
      %v1044 = vadd.f32 %v796, %v1043
      %v1045 = vpop.f32.mrb[0].mxu0
      %v1046 = vpop.f32.mrb[0].mxu0
      %v1047 = vadd.f32 %v796, %v1046
      %v1048 = vpop.f32.mrb[0].mxu0
      %1049 = vmatprep.mubr.bf16.mxu0 0
      %1050 = vmatmul.mubr.bf16.gmra.mrb[0].mxu0 %v912
      %v1051 = vpop.f32.mrb[0].mxu0
      %v1052 = vadd.f32 %v796, %v1051
      %v1053 = vpop.f32.mrb[0].mxu0
      %v1054 = vpop.f32.mrb[0].mxu0
      %v1055 = vadd.f32 %v796, %v1054
      %v1056 = vpop.f32.mrb[0].mxu0
      %1057 = vmatprep.mubr.bf16.mxu0 0
      %1058 = vmatmul.mubr.bf16.gmra.mrb[0].mxu0 %v915
      %v1059 = vpop.f32.mrb[0].mxu0
      %v1060 = vadd.f32 %v796, %v1059
      %v1061 = vpop.f32.mrb[0].mxu0
      %v1062 = vpop.f32.mrb[0].mxu0
      %v1063 = vadd.f32 %v796, %v1062
      %v1064 = vpop.f32.mrb[0].mxu0
      %1065 = vmatprep.mubr.bf16.mxu0 0
      %1066 = vmatmul.mubr.bf16.gmra.mrb[0].mxu0 %v918
      %v1067 = vpop.f32.mrb[0].mxu0
      %v1068 = vadd.f32 %v796, %v1067
      %v1069 = vpop.f32.mrb[0].mxu0
      %v1070 = vpop.f32.mrb[0].mxu0
      %v1071 = vadd.f32 %v796, %v1070
      %v1072 = vpop.f32.mrb[0].mxu0
      %1073 = vmatprep.mubr.bf16.mxu0 0
      %1074 = vmatmul.mubr.bf16.gmra.mrb[0].mxu0 %v921
      %v1075 = vpop.f32.mrb[0].mxu0
      %v1076 = vadd.f32 %v796, %v1075
      %v1077 = vpop.f32.mrb[0].mxu0
      %v1078 = vpop.f32.mrb[0].mxu0
      %v1079 = vadd.f32 %v796, %v1078
      %v1080 = vpop.f32.mrb[0].mxu0
      %1081 = vmatprep.mubr.bf16.mxu0 0
      %1082 = vmatmul.mubr.bf16.gmra.mrb[0].mxu0 %v924
      %v1083 = vpop.f32.mrb[0].mxu0
      %v1084 = vadd.f32 %v796, %v1083
      %v1085 = vpop.f32.mrb[0].mxu0
      %v1086 = vpop.f32.mrb[0].mxu0
      %v1087 = vadd.f32 %v796, %v1086
      %v1088 = vpop.f32.mrb[0].mxu0
      %1089 = vdwg.mxu0
      %v1090 = vld [vmem:[%s7] sm:$0x3]
      %v1091 = vld [vmem:[%s8] sm:$0x1]
      %v1093 = vlaneseq
      %v1094 = vshrl.u32 %v1093, 7
      %v1095 = vsub.s32 0, %v1094
      %v1096 = vrot.slane %v1091, %v1095
      %v1130 = vunpack.c.l.b16 %v456
      %v1131 = vunpack.c.l.b16 %v457
      %v1132 = vunpack.c.l.b16 %v458
      %v1133 = vunpack.c.l.b16 %v459
      %v1134 = vunpack.c.l.b16 %v460
      %v1135 = vunpack.c.l.b16 %v461
      %v1136 = vunpack.c.l.b16 %v462
      %v1137 = vunpack.c.l.b16 %v463
      %v1138 = vunpack.c.l.b16 %v464
      %v1139 = vunpack.c.l.b16 %v465
      %v1140 = vunpack.c.l.b16 %v466
      %v1141 = vunpack.c.l.b16 %v467
      %v1142 = vunpack.c.l.b16 %v468
      %v1143 = vunpack.c.l.b16 %v469
      %v1144 = vunpack.c.l.b16 %v470
      %v1145 = vunpack.c.l.b16 %v471
      %v1146 = vunpack.c.l.b16 %v472
      %v1147 = vunpack.c.l.b16 %v473
      %v1148 = vunpack.c.l.b16 %v474
      %v1149 = vunpack.c.l.b16 %v475
      %v1150 = vunpack.c.l.b16 %v476
      %v1151 = vunpack.c.l.b16 %v477
      %v1152 = vunpack.c.l.b16 %v478
      %v1153 = vunpack.c.l.b16 %v479
      %v1154 = vunpack.c.l.b16 %v480
      %v1155 = vunpack.c.l.b16 %v481
      %v1156 = vunpack.c.l.b16 %v482
      %v1157 = vunpack.c.l.b16 %v483
      %v1158 = vunpack.c.l.b16 %v484
      %v1159 = vunpack.c.l.b16 %v485
      %v1160 = vunpack.c.l.b16 %v486
      %v1161 = vunpack.c.l.b16 %v487
      %v1162 = vpack.c.b16 %v1131, %v1130
      %v1163 = vpack.c.b16 %v1133, %v1132
      %v1164 = vpack.c.b16 %v1135, %v1134
      %v1165 = vpack.c.b16 %v1137, %v1136
      %v1166 = vpack.c.b16 %v1139, %v1138
      %v1167 = vpack.c.b16 %v1141, %v1140
      %v1168 = vpack.c.b16 %v1143, %v1142
      %v1169 = vpack.c.b16 %v1145, %v1144
      %v1170 = vpack.c.b16 %v1147, %v1146
      %v1171 = vpack.c.b16 %v1149, %v1148
      %v1172 = vpack.c.b16 %v1151, %v1150
      %v1173 = vpack.c.b16 %v1153, %v1152
      %v1174 = vpack.c.b16 %v1155, %v1154
      %v1175 = vpack.c.b16 %v1157, %v1156
      %v1176 = vpack.c.b16 %v1159, %v1158
      %v1177 = vpack.c.b16 %v1161, %v1160
      %v1179 = vsel %vm576, %v1162, 0
      %v1182 = vsel %vm576, %v1163, 0
      %v1185 = vsel %vm576, %v1164, 0
      %v1188 = vsel %vm576, %v1165, 0
      %v1191 = vsel %vm576, %v1166, 0
      %v1194 = vsel %vm576, %v1167, 0
      %v1197 = vsel %vm576, %v1168, 0
      %v1200 = vsel %vm576, %v1169, 0
      %v1203 = vsel %vm576, %v1170, 0
      %v1206 = vsel %vm576, %v1171, 0
      %v1209 = vsel %vm576, %v1172, 0
      %v1212 = vsel %vm576, %v1173, 0
      %v1215 = vsel %vm576, %v1174, 0
      %v1218 = vsel %vm576, %v1175, 0
      %v1221 = vsel %vm576, %v1176, 0
      %v1224 = vsel %vm576, %v1177, 0
      %v1227 = vsel %vm625, %v1090, 0
      %1229 = vmatprep.subr.bf16.mxu0 0
      %1230 = vmatpush1.bf16.msra.mxu0 %v1227
      %1231 = vmatprep.subr.bf16.mxu0 0
      %1232 = vmatpush1.bf16.msra.mxu0 0
      %1233 = vmatprep.subr.bf16.mxu0 0
      %1234 = vmatpush1.bf16.msra.mxu0 0
      %1235 = vmatprep.subr.bf16.mxu0 0
      %1236 = vmatpush1.bf16.msra.mxu0 0
      %1237 = vmatprep.subr.bf16.mxu0 0
      %1238 = vmatpush1.bf16.msra.mxu0 0
      %1239 = vmatprep.subr.bf16.mxu0 0
      %1240 = vmatpush1.bf16.msra.mxu0 0
      %1241 = vmatprep.subr.bf16.mxu0 0
      %1242 = vmatpush1.bf16.msra.mxu0 0
      %1243 = vmatprep.subr.bf16.mxu0 0
      %1244 = vmatpush1.bf16.msra.mxu0 0
      %1245 = vmatprep.subr.bf16.mxu0 0
      %1246 = vmatpush1.bf16.msra.mxu0 0
      %1247 = vmatprep.subr.bf16.mxu0 0
      %1248 = vmatpush1.bf16.msra.mxu0 0
      %1249 = vmatprep.subr.bf16.mxu0 0
      %1250 = vmatpush1.bf16.msra.mxu0 0
      %1251 = vmatprep.subr.bf16.mxu0 0
      %1252 = vmatpush1.bf16.msra.mxu0 0
      %1253 = vmatprep.subr.bf16.mxu0 0
      %1254 = vmatpush1.bf16.msra.mxu0 0
      %1255 = vmatprep.subr.bf16.mxu0 0
      %1256 = vmatpush1.bf16.msra.mxu0 0
      %1257 = vmatprep.subr.bf16.mxu0 0
      %1258 = vmatpush1.bf16.msra.mxu0 0
      %1259 = vmatprep.subr.bf16.mxu0 0
      %1260 = vmatpush1.bf16.msra.mxu0 0
      %1261 = vmatprep.mubr.bf16.mxu0 0
      %1262 = vmatmul.mubr.bf16.gmra.mrb[0].mxu0 %v1179
      %v1263 = vpop.f32.mrb[0].mxu0
      %v1264 = vadd.f32 %v1096, %v1263
      %v1265 = vpop.f32.mrb[0].mxu0
      %v1266 = vpop.f32.mrb[0].mxu0
      %v1267 = vadd.f32 %v1096, %v1266
      %v1268 = vpop.f32.mrb[0].mxu0
      %1269 = vmatprep.mubr.bf16.mxu0 0
      %1270 = vmatmul.mubr.bf16.gmra.mrb[0].mxu0 %v1182
      %v1271 = vpop.f32.mrb[0].mxu0
      %v1272 = vadd.f32 %v1096, %v1271
      %v1273 = vpop.f32.mrb[0].mxu0
      %v1274 = vpop.f32.mrb[0].mxu0
      %v1275 = vadd.f32 %v1096, %v1274
      %v1276 = vpop.f32.mrb[0].mxu0
      %1277 = vmatprep.mubr.bf16.mxu0 0
      %1278 = vmatmul.mubr.bf16.gmra.mrb[0].mxu0 %v1185
      %v1279 = vpop.f32.mrb[0].mxu0
      %v1280 = vadd.f32 %v1096, %v1279
      %v1281 = vpop.f32.mrb[0].mxu0
      %v1282 = vpop.f32.mrb[0].mxu0
      %v1283 = vadd.f32 %v1096, %v1282
      %v1284 = vpop.f32.mrb[0].mxu0
      %1285 = vmatprep.mubr.bf16.mxu0 0
      %1286 = vmatmul.mubr.bf16.gmra.mrb[0].mxu0 %v1188
      %v1287 = vpop.f32.mrb[0].mxu0
      %v1288 = vadd.f32 %v1096, %v1287
      %v1289 = vpop.f32.mrb[0].mxu0
      %v1290 = vpop.f32.mrb[0].mxu0
      %v1291 = vadd.f32 %v1096, %v1290
      %v1292 = vpop.f32.mrb[0].mxu0
      %1293 = vmatprep.mubr.bf16.mxu0 0
      %1294 = vmatmul.mubr.bf16.gmra.mrb[0].mxu0 %v1191
      %v1295 = vpop.f32.mrb[0].mxu0
      %v1296 = vadd.f32 %v1096, %v1295
      %v1297 = vpop.f32.mrb[0].mxu0
      %v1298 = vpop.f32.mrb[0].mxu0
      %v1299 = vadd.f32 %v1096, %v1298
      %v1300 = vpop.f32.mrb[0].mxu0
      %1301 = vmatprep.mubr.bf16.mxu0 0
      %1302 = vmatmul.mubr.bf16.gmra.mrb[0].mxu0 %v1194
      %v1303 = vpop.f32.mrb[0].mxu0
      %v1304 = vadd.f32 %v1096, %v1303
      %v1305 = vpop.f32.mrb[0].mxu0
      %v1306 = vpop.f32.mrb[0].mxu0
      %v1307 = vadd.f32 %v1096, %v1306
      %v1308 = vpop.f32.mrb[0].mxu0
      %1309 = vmatprep.mubr.bf16.mxu0 0
      %1310 = vmatmul.mubr.bf16.gmra.mrb[0].mxu0 %v1197
      %v1311 = vpop.f32.mrb[0].mxu0
      %v1312 = vadd.f32 %v1096, %v1311
      %v1313 = vpop.f32.mrb[0].mxu0
      %v1314 = vpop.f32.mrb[0].mxu0
      %v1315 = vadd.f32 %v1096, %v1314
      %v1316 = vpop.f32.mrb[0].mxu0
      %1317 = vmatprep.mubr.bf16.mxu0 0
      %1318 = vmatmul.mubr.bf16.gmra.mrb[0].mxu0 %v1200
      %v1319 = vpop.f32.mrb[0].mxu0
      %v1320 = vadd.f32 %v1096, %v1319
      %v1321 = vpop.f32.mrb[0].mxu0
      %v1322 = vpop.f32.mrb[0].mxu0
      %v1323 = vadd.f32 %v1096, %v1322
      %v1324 = vpop.f32.mrb[0].mxu0
      %1325 = vmatprep.mubr.bf16.mxu0 0
      %1326 = vmatmul.mubr.bf16.gmra.mrb[0].mxu0 %v1203
      %v1327 = vpop.f32.mrb[0].mxu0
      %v1328 = vadd.f32 %v1096, %v1327
      %v1329 = vpop.f32.mrb[0].mxu0
      %v1330 = vpop.f32.mrb[0].mxu0
      %v1331 = vadd.f32 %v1096, %v1330
      %v1332 = vpop.f32.mrb[0].mxu0
      %1333 = vmatprep.mubr.bf16.mxu0 0
      %1334 = vmatmul.mubr.bf16.gmra.mrb[0].mxu0 %v1206
      %v1335 = vpop.f32.mrb[0].mxu0
      %v1336 = vadd.f32 %v1096, %v1335
      %v1337 = vpop.f32.mrb[0].mxu0
      %v1338 = vpop.f32.mrb[0].mxu0
      %v1339 = vadd.f32 %v1096, %v1338
      %v1340 = vpop.f32.mrb[0].mxu0
      %1341 = vmatprep.mubr.bf16.mxu0 0
      %1342 = vmatmul.mubr.bf16.gmra.mrb[0].mxu0 %v1209
      %v1343 = vpop.f32.mrb[0].mxu0
      %v1344 = vadd.f32 %v1096, %v1343
      %v1345 = vpop.f32.mrb[0].mxu0
      %v1346 = vpop.f32.mrb[0].mxu0
      %v1347 = vadd.f32 %v1096, %v1346
      %v1348 = vpop.f32.mrb[0].mxu0
      %1349 = vmatprep.mubr.bf16.mxu0 0
      %1350 = vmatmul.mubr.bf16.gmra.mrb[0].mxu0 %v1212
      %v1351 = vpop.f32.mrb[0].mxu0
      %v1352 = vadd.f32 %v1096, %v1351
      %v1353 = vpop.f32.mrb[0].mxu0
      %v1354 = vpop.f32.mrb[0].mxu0
      %v1355 = vadd.f32 %v1096, %v1354
      %v1356 = vpop.f32.mrb[0].mxu0
      %1357 = vmatprep.mubr.bf16.mxu0 0
      %1358 = vmatmul.mubr.bf16.gmra.mrb[0].mxu0 %v1215
      %v1359 = vpop.f32.mrb[0].mxu0
      %v1360 = vadd.f32 %v1096, %v1359
      %v1361 = vpop.f32.mrb[0].mxu0
      %v1362 = vpop.f32.mrb[0].mxu0
      %v1363 = vadd.f32 %v1096, %v1362
      %v1364 = vpop.f32.mrb[0].mxu0
      %1365 = vmatprep.mubr.bf16.mxu0 0
      %1366 = vmatmul.mubr.bf16.gmra.mrb[0].mxu0 %v1218
      %v1367 = vpop.f32.mrb[0].mxu0
      %v1368 = vadd.f32 %v1096, %v1367
      %v1369 = vpop.f32.mrb[0].mxu0
      %v1370 = vpop.f32.mrb[0].mxu0
      %v1371 = vadd.f32 %v1096, %v1370
      %v1372 = vpop.f32.mrb[0].mxu0
      %1373 = vmatprep.mubr.bf16.mxu0 0
      %1374 = vmatmul.mubr.bf16.gmra.mrb[0].mxu0 %v1221
      %v1375 = vpop.f32.mrb[0].mxu0
      %v1376 = vadd.f32 %v1096, %v1375
      %v1377 = vpop.f32.mrb[0].mxu0
      %v1378 = vpop.f32.mrb[0].mxu0
      %v1379 = vadd.f32 %v1096, %v1378
      %v1380 = vpop.f32.mrb[0].mxu0
      %1381 = vmatprep.mubr.bf16.mxu0 0
      %1382 = vmatmul.mubr.bf16.gmra.mrb[0].mxu0 %v1224
      %v1383 = vpop.f32.mrb[0].mxu0
      %v1384 = vadd.f32 %v1096, %v1383
      %v1385 = vpop.f32.mrb[0].mxu0
      %v1386 = vpop.f32.mrb[0].mxu0
      %v1387 = vadd.f32 %v1096, %v1386
      %v1388 = vpop.f32.mrb[0].mxu0
      %1389 = vdwg.mxu0
      %v1390 = vmul.f32 %v664, 0.25
      %v1391 = vmul.f32 %v667, 0.25
      %v1392 = vmul.f32 %v672, 0.25
      %v1393 = vmul.f32 %v675, 0.25
      %v1394 = vmul.f32 %v680, 0.25
      %v1395 = vmul.f32 %v683, 0.25
      %v1396 = vmul.f32 %v688, 0.25
      %v1397 = vmul.f32 %v691, 0.25
      %v1398 = vmul.f32 %v696, 0.25
      %v1399 = vmul.f32 %v699, 0.25
      %v1400 = vmul.f32 %v704, 0.25
      %v1401 = vmul.f32 %v707, 0.25
      %v1402 = vmul.f32 %v712, 0.25
      %v1403 = vmul.f32 %v715, 0.25
      %v1404 = vmul.f32 %v720, 0.25
      %v1405 = vmul.f32 %v723, 0.25
      %v1406 = vmul.f32 %v728, 0.25
      %v1407 = vmul.f32 %v731, 0.25
      %v1408 = vmul.f32 %v736, 0.25
      %v1409 = vmul.f32 %v739, 0.25
      %v1410 = vmul.f32 %v744, 0.25
      %v1411 = vmul.f32 %v747, 0.25
      %v1412 = vmul.f32 %v752, 0.25
      %v1413 = vmul.f32 %v755, 0.25
      %v1414 = vmul.f32 %v760, 0.25
      %v1415 = vmul.f32 %v763, 0.25
      %v1416 = vmul.f32 %v768, 0.25
      %v1417 = vmul.f32 %v771, 0.25
      %v1418 = vmul.f32 %v776, 0.25
      %v1419 = vmul.f32 %v779, 0.25
      %v1420 = vmul.f32 %v784, 0.25
      %v1421 = vmul.f32 %v787, 0.25
      %v1422 = vpack.c.bf16 %v1391, %v1390
      %v1423 = vpack.c.bf16 %v1393, %v1392
      %v1424 = vpack.c.bf16 %v1395, %v1394
      %v1425 = vpack.c.bf16 %v1397, %v1396
      %v1426 = vpack.c.bf16 %v1399, %v1398
      %v1427 = vpack.c.bf16 %v1401, %v1400
      %v1428 = vpack.c.bf16 %v1403, %v1402
      %v1429 = vpack.c.bf16 %v1405, %v1404
      %v1430 = vpack.c.bf16 %v1407, %v1406
      %v1431 = vpack.c.bf16 %v1409, %v1408
      %v1432 = vpack.c.bf16 %v1411, %v1410
      %v1433 = vpack.c.bf16 %v1413, %v1412
      %v1434 = vpack.c.bf16 %v1415, %v1414
      %v1435 = vpack.c.bf16 %v1417, %v1416
      %v1436 = vpack.c.bf16 %v1419, %v1418
      %v1437 = vpack.c.bf16 %v1421, %v1420
      %v1438 = vpack.c.bf16 %v967, %v964
      %v1439 = vpack.c.bf16 %v975, %v972
      %v1440 = vpack.c.bf16 %v983, %v980
      %v1441 = vpack.c.bf16 %v991, %v988
      %v1442 = vpack.c.bf16 %v999, %v996
      %v1443 = vpack.c.bf16 %v1007, %v1004
      %v1444 = vpack.c.bf16 %v1015, %v1012
      %v1445 = vpack.c.bf16 %v1023, %v1020
      %v1446 = vpack.c.bf16 %v1031, %v1028
      %v1447 = vpack.c.bf16 %v1039, %v1036
      %v1448 = vpack.c.bf16 %v1047, %v1044
      %v1449 = vpack.c.bf16 %v1055, %v1052
      %v1450 = vpack.c.bf16 %v1063, %v1060
      %v1451 = vpack.c.bf16 %v1071, %v1068
      %v1452 = vpack.c.bf16 %v1079, %v1076
      %v1453 = vpack.c.bf16 %v1087, %v1084
      %v1454 = vpack.c.bf16 %v1267, %v1264
      %v1455 = vpack.c.bf16 %v1275, %v1272
      %v1456 = vpack.c.bf16 %v1283, %v1280
      %v1457 = vpack.c.bf16 %v1291, %v1288
      %v1458 = vpack.c.bf16 %v1299, %v1296
      %v1459 = vpack.c.bf16 %v1307, %v1304
      %v1460 = vpack.c.bf16 %v1315, %v1312
      %v1461 = vpack.c.bf16 %v1323, %v1320
      %v1462 = vpack.c.bf16 %v1331, %v1328
      %v1463 = vpack.c.bf16 %v1339, %v1336
      %v1464 = vpack.c.bf16 %v1347, %v1344
      %v1465 = vpack.c.bf16 %v1355, %v1352
      %v1466 = vpack.c.bf16 %v1363, %v1360
      %v1467 = vpack.c.bf16 %v1371, %v1368
      %v1468 = vpack.c.bf16 %v1379, %v1376
      %v1469 = vpack.c.bf16 %v1387, %v1384
      %vm1470 = vcmask 130048
      %v1472 = vsel %vm1470, %v1422, 0
      %v1475 = vsel %vm1470, %v1423, 0
      %v1478 = vsel %vm1470, %v1424, 0
      %v1481 = vsel %vm1470, %v1425, 0
      %v1484 = vsel %vm1470, %v1438, 0
      %v1487 = vsel %vm1470, %v1439, 0
      %v1490 = vsel %vm1470, %v1440, 0
      %v1493 = vsel %vm1470, %v1441, 0
      %1495 = vmatprep.subr.bf16.mxu0 0
      %1496 = vmatpush1.bf16.xpose.msra.mxu0 %v1484
      %1497 = vmatprep.subr.bf16.mxu0 0
      %1498 = vmatpush1.bf16.xpose.msra.mxu0 %v1487
      %1499 = vmatprep.subr.bf16.mxu0 0
      %1500 = vmatpush1.bf16.xpose.msra.mxu0 %v1490
      %1501 = vmatprep.subr.bf16.mxu0 0
      %1502 = vmatpush1.bf16.xpose.msra.mxu0 %v1493
      %1503 = vmatprep.subr.bf16.mxu0 0
      %1504 = vmatpush1.bf16.xpose.msra.mxu0 0
      %1505 = vmatprep.subr.bf16.mxu0 0
      %1506 = vmatpush1.bf16.xpose.msra.mxu0 0
      %1507 = vmatprep.subr.bf16.mxu0 0
      %1508 = vmatpush1.bf16.xpose.msra.mxu0 0
      %1509 = vmatprep.subr.bf16.mxu0 0
      %1510 = vmatpush1.bf16.xpose.msra.mxu0 0
      %1511 = vmatprep.subr.bf16.mxu0 0
      %1512 = vmatpush1.bf16.xpose.msra.mxu0 0
      %1513 = vmatprep.subr.bf16.mxu0 0
      %1514 = vmatpush1.bf16.xpose.msra.mxu0 0
      %1515 = vmatprep.subr.bf16.mxu0 0
      %1516 = vmatpush1.bf16.xpose.msra.mxu0 0
      %1517 = vmatprep.subr.bf16.mxu0 0
      %1518 = vmatpush1.bf16.xpose.msra.mxu0 0
      %1519 = vmatprep.subr.bf16.mxu0 0
      %1520 = vmatpush1.bf16.xpose.msra.mxu0 0
      %1521 = vmatprep.subr.bf16.mxu0 0
      %1522 = vmatpush1.bf16.xpose.msra.mxu0 0
      %1523 = vmatprep.subr.bf16.mxu0 0
      %1524 = vmatpush1.bf16.xpose.msra.mxu0 0
      %1525 = vmatprep.subr.bf16.mxu0 0
      %1526 = vmatpush1.bf16.xpose.msra.mxu0 0
      %1527 = vmatprep.mubr.bf16.mxu0 0
      %1528 = vmatmul.mubr.bf16.gmra.mrb[0].mxu0 %v1472
      %v1529 = vpop.f32.mrb[0].mxu0
      %v1530 = vadd.f32 0.0, %v1529
      %v1531 = vpop.f32.mrb[0].mxu0
      %v1532 = vpop.f32.mrb[0].mxu0
      %v1533 = vadd.f32 0.0, %v1532
      %v1534 = vpop.f32.mrb[0].mxu0
      %1535 = vmatprep.mubr.bf16.mxu0 0
      %1536 = vmatmul.mubr.bf16.gmra.mrb[0].mxu0 %v1475
      %v1537 = vpop.f32.mrb[0].mxu0
      %v1538 = vadd.f32 0.0, %v1537
      %v1539 = vpop.f32.mrb[0].mxu0
      %v1540 = vpop.f32.mrb[0].mxu0
      %v1541 = vadd.f32 0.0, %v1540
      %v1542 = vpop.f32.mrb[0].mxu0
      %1543 = vmatprep.mubr.bf16.mxu0 0
      %1544 = vmatmul.mubr.bf16.gmra.mrb[0].mxu0 %v1478
      %v1545 = vpop.f32.mrb[0].mxu0
      %v1546 = vadd.f32 0.0, %v1545
      %v1547 = vpop.f32.mrb[0].mxu0
      %v1548 = vpop.f32.mrb[0].mxu0
      %v1549 = vadd.f32 0.0, %v1548
      %v1550 = vpop.f32.mrb[0].mxu0
      %1551 = vmatprep.mubr.bf16.mxu0 0
      %1552 = vmatmul.mubr.bf16.gmra.mrb[0].mxu0 %v1481
      %v1553 = vpop.f32.mrb[0].mxu0
      %v1554 = vadd.f32 0.0, %v1553
      %v1555 = vpop.f32.mrb[0].mxu0
      %v1556 = vpop.f32.mrb[0].mxu0
      %v1557 = vadd.f32 0.0, %v1556
      %v1558 = vpop.f32.mrb[0].mxu0
      %1559 = vdwg.mxu0
      %v1561 = vsel %vm1470, %v1426, 0
      %v1564 = vsel %vm1470, %v1427, 0
      %v1567 = vsel %vm1470, %v1428, 0
      %v1570 = vsel %vm1470, %v1429, 0
      %v1573 = vsel %vm1470, %v1442, 0
      %v1576 = vsel %vm1470, %v1443, 0
      %v1579 = vsel %vm1470, %v1444, 0
      %v1582 = vsel %vm1470, %v1445, 0
      %1584 = vmatprep.subr.bf16.mxu0 0
      %1585 = vmatpush1.bf16.xpose.msra.mxu0 %v1573
      %1586 = vmatprep.subr.bf16.mxu0 0
      %1587 = vmatpush1.bf16.xpose.msra.mxu0 %v1576
      %1588 = vmatprep.subr.bf16.mxu0 0
      %1589 = vmatpush1.bf16.xpose.msra.mxu0 %v1579
      %1590 = vmatprep.subr.bf16.mxu0 0
      %1591 = vmatpush1.bf16.xpose.msra.mxu0 %v1582
      %1592 = vmatprep.subr.bf16.mxu0 0
      %1593 = vmatpush1.bf16.xpose.msra.mxu0 0
      %1594 = vmatprep.subr.bf16.mxu0 0
      %1595 = vmatpush1.bf16.xpose.msra.mxu0 0
      %1596 = vmatprep.subr.bf16.mxu0 0
      %1597 = vmatpush1.bf16.xpose.msra.mxu0 0
      %1598 = vmatprep.subr.bf16.mxu0 0
      %1599 = vmatpush1.bf16.xpose.msra.mxu0 0
      %1600 = vmatprep.subr.bf16.mxu0 0
      %1601 = vmatpush1.bf16.xpose.msra.mxu0 0
      %1602 = vmatprep.subr.bf16.mxu0 0
      %1603 = vmatpush1.bf16.xpose.msra.mxu0 0
      %1604 = vmatprep.subr.bf16.mxu0 0
      %1605 = vmatpush1.bf16.xpose.msra.mxu0 0
      %1606 = vmatprep.subr.bf16.mxu0 0
      %1607 = vmatpush1.bf16.xpose.msra.mxu0 0
      %1608 = vmatprep.subr.bf16.mxu0 0
      %1609 = vmatpush1.bf16.xpose.msra.mxu0 0
      %1610 = vmatprep.subr.bf16.mxu0 0
      %1611 = vmatpush1.bf16.xpose.msra.mxu0 0
      %1612 = vmatprep.subr.bf16.mxu0 0
      %1613 = vmatpush1.bf16.xpose.msra.mxu0 0
      %1614 = vmatprep.subr.bf16.mxu0 0
      %1615 = vmatpush1.bf16.xpose.msra.mxu0 0
      %1616 = vmatprep.mubr.bf16.mxu0 0
      %1617 = vmatmul.mubr.bf16.gmra.mrb[0].mxu0 %v1561
      %v1618 = vpop.f32.mrb[0].mxu0
      %v1619 = vadd.f32 0.0, %v1618
      %v1620 = vpop.f32.mrb[0].mxu0
      %v1621 = vpop.f32.mrb[0].mxu0
      %v1622 = vadd.f32 0.0, %v1621
      %v1623 = vpop.f32.mrb[0].mxu0
      %1624 = vmatprep.mubr.bf16.mxu0 0
      %1625 = vmatmul.mubr.bf16.gmra.mrb[0].mxu0 %v1564
      %v1626 = vpop.f32.mrb[0].mxu0
      %v1627 = vadd.f32 0.0, %v1626
      %v1628 = vpop.f32.mrb[0].mxu0
      %v1629 = vpop.f32.mrb[0].mxu0
      %v1630 = vadd.f32 0.0, %v1629
      %v1631 = vpop.f32.mrb[0].mxu0
      %1632 = vmatprep.mubr.bf16.mxu0 0
      %1633 = vmatmul.mubr.bf16.gmra.mrb[0].mxu0 %v1567
      %v1634 = vpop.f32.mrb[0].mxu0
      %v1635 = vadd.f32 0.0, %v1634
      %v1636 = vpop.f32.mrb[0].mxu0
      %v1637 = vpop.f32.mrb[0].mxu0
      %v1638 = vadd.f32 0.0, %v1637
      %v1639 = vpop.f32.mrb[0].mxu0
      %1640 = vmatprep.mubr.bf16.mxu0 0
      %1641 = vmatmul.mubr.bf16.gmra.mrb[0].mxu0 %v1570
      %v1642 = vpop.f32.mrb[0].mxu0
      %v1643 = vadd.f32 0.0, %v1642
      %v1644 = vpop.f32.mrb[0].mxu0
      %v1645 = vpop.f32.mrb[0].mxu0
      %v1646 = vadd.f32 0.0, %v1645
      %v1647 = vpop.f32.mrb[0].mxu0
      %1648 = vdwg.mxu0
      %v1650 = vsel %vm1470, %v1430, 0
      %v1653 = vsel %vm1470, %v1431, 0
      %v1656 = vsel %vm1470, %v1432, 0
      %v1659 = vsel %vm1470, %v1433, 0
      %v1662 = vsel %vm1470, %v1446, 0
      %v1665 = vsel %vm1470, %v1447, 0
      %v1668 = vsel %vm1470, %v1448, 0
      %v1671 = vsel %vm1470, %v1449, 0
      %1673 = vmatprep.subr.bf16.mxu0 0
      %1674 = vmatpush1.bf16.xpose.msra.mxu0 %v1662
      %1675 = vmatprep.subr.bf16.mxu0 0
      %1676 = vmatpush1.bf16.xpose.msra.mxu0 %v1665
      %1677 = vmatprep.subr.bf16.mxu0 0
      %1678 = vmatpush1.bf16.xpose.msra.mxu0 %v1668
      %1679 = vmatprep.subr.bf16.mxu0 0
      %1680 = vmatpush1.bf16.xpose.msra.mxu0 %v1671
      %1681 = vmatprep.subr.bf16.mxu0 0
      %1682 = vmatpush1.bf16.xpose.msra.mxu0 0
      %1683 = vmatprep.subr.bf16.mxu0 0
      %1684 = vmatpush1.bf16.xpose.msra.mxu0 0
      %1685 = vmatprep.subr.bf16.mxu0 0
      %1686 = vmatpush1.bf16.xpose.msra.mxu0 0
      %1687 = vmatprep.subr.bf16.mxu0 0
      %1688 = vmatpush1.bf16.xpose.msra.mxu0 0
      %1689 = vmatprep.subr.bf16.mxu0 0
      %1690 = vmatpush1.bf16.xpose.msra.mxu0 0
      %1691 = vmatprep.subr.bf16.mxu0 0
      %1692 = vmatpush1.bf16.xpose.msra.mxu0 0
      %1693 = vmatprep.subr.bf16.mxu0 0
      %1694 = vmatpush1.bf16.xpose.msra.mxu0 0
      %1695 = vmatprep.subr.bf16.mxu0 0
      %1696 = vmatpush1.bf16.xpose.msra.mxu0 0
      %1697 = vmatprep.subr.bf16.mxu0 0
      %1698 = vmatpush1.bf16.xpose.msra.mxu0 0
      %1699 = vmatprep.subr.bf16.mxu0 0
      %1700 = vmatpush1.bf16.xpose.msra.mxu0 0
      %1701 = vmatprep.subr.bf16.mxu0 0
      %1702 = vmatpush1.bf16.xpose.msra.mxu0 0
      %1703 = vmatprep.subr.bf16.mxu0 0
      %1704 = vmatpush1.bf16.xpose.msra.mxu0 0
      %1705 = vmatprep.mubr.bf16.mxu0 0
      %1706 = vmatmul.mubr.bf16.gmra.mrb[0].mxu0 %v1650
      %v1707 = vpop.f32.mrb[0].mxu0
      %v1708 = vadd.f32 0.0, %v1707
      %v1709 = vpop.f32.mrb[0].mxu0
      %v1710 = vpop.f32.mrb[0].mxu0
      %v1711 = vadd.f32 0.0, %v1710
      %v1712 = vpop.f32.mrb[0].mxu0
      %1713 = vmatprep.mubr.bf16.mxu0 0
      %1714 = vmatmul.mubr.bf16.gmra.mrb[0].mxu0 %v1653
      %v1715 = vpop.f32.mrb[0].mxu0
      %v1716 = vadd.f32 0.0, %v1715
      %v1717 = vpop.f32.mrb[0].mxu0
      %v1718 = vpop.f32.mrb[0].mxu0
      %v1719 = vadd.f32 0.0, %v1718
      %v1720 = vpop.f32.mrb[0].mxu0
      %1721 = vmatprep.mubr.bf16.mxu0 0
      %1722 = vmatmul.mubr.bf16.gmra.mrb[0].mxu0 %v1656
      %v1723 = vpop.f32.mrb[0].mxu0
      %v1724 = vadd.f32 0.0, %v1723
      %v1725 = vpop.f32.mrb[0].mxu0
      %v1726 = vpop.f32.mrb[0].mxu0
      %v1727 = vadd.f32 0.0, %v1726
      %v1728 = vpop.f32.mrb[0].mxu0
      %1729 = vmatprep.mubr.bf16.mxu0 0
      %1730 = vmatmul.mubr.bf16.gmra.mrb[0].mxu0 %v1659
      %v1731 = vpop.f32.mrb[0].mxu0
      %v1732 = vadd.f32 0.0, %v1731
      %v1733 = vpop.f32.mrb[0].mxu0
      %v1734 = vpop.f32.mrb[0].mxu0
      %v1735 = vadd.f32 0.0, %v1734
      %v1736 = vpop.f32.mrb[0].mxu0
      %1737 = vdwg.mxu0
      %v1739 = vsel %vm1470, %v1434, 0
      %v1742 = vsel %vm1470, %v1435, 0
      %v1745 = vsel %vm1470, %v1436, 0
      %v1748 = vsel %vm1470, %v1437, 0
      %v1751 = vsel %vm1470, %v1450, 0
      %v1754 = vsel %vm1470, %v1451, 0
      %v1757 = vsel %vm1470, %v1452, 0
      %v1760 = vsel %vm1470, %v1453, 0
      %1762 = vmatprep.subr.bf16.mxu0 0
      %1763 = vmatpush1.bf16.xpose.msra.mxu0 %v1751
      %1764 = vmatprep.subr.bf16.mxu0 0
      %1765 = vmatpush1.bf16.xpose.msra.mxu0 %v1754
      %1766 = vmatprep.subr.bf16.mxu0 0
      %1767 = vmatpush1.bf16.xpose.msra.mxu0 %v1757
      %1768 = vmatprep.subr.bf16.mxu0 0
      %1769 = vmatpush1.bf16.xpose.msra.mxu0 %v1760
      %1770 = vmatprep.subr.bf16.mxu0 0
      %1771 = vmatpush1.bf16.xpose.msra.mxu0 0
      %1772 = vmatprep.subr.bf16.mxu0 0
      %1773 = vmatpush1.bf16.xpose.msra.mxu0 0
      %1774 = vmatprep.subr.bf16.mxu0 0
      %1775 = vmatpush1.bf16.xpose.msra.mxu0 0
      %1776 = vmatprep.subr.bf16.mxu0 0
      %1777 = vmatpush1.bf16.xpose.msra.mxu0 0
      %1778 = vmatprep.subr.bf16.mxu0 0
      %1779 = vmatpush1.bf16.xpose.msra.mxu0 0
      %1780 = vmatprep.subr.bf16.mxu0 0
      %1781 = vmatpush1.bf16.xpose.msra.mxu0 0
      %1782 = vmatprep.subr.bf16.mxu0 0
      %1783 = vmatpush1.bf16.xpose.msra.mxu0 0
      %1784 = vmatprep.subr.bf16.mxu0 0
      %1785 = vmatpush1.bf16.xpose.msra.mxu0 0
      %1786 = vmatprep.subr.bf16.mxu0 0
      %1787 = vmatpush1.bf16.xpose.msra.mxu0 0
      %1788 = vmatprep.subr.bf16.mxu0 0
      %1789 = vmatpush1.bf16.xpose.msra.mxu0 0
      %1790 = vmatprep.subr.bf16.mxu0 0
      %1791 = vmatpush1.bf16.xpose.msra.mxu0 0
      %1792 = vmatprep.subr.bf16.mxu0 0
      %1793 = vmatpush1.bf16.xpose.msra.mxu0 0
      %1794 = vmatprep.mubr.bf16.mxu0 0
      %1795 = vmatmul.mubr.bf16.gmra.mrb[0].mxu0 %v1739
      %v1796 = vpop.f32.mrb[0].mxu0
      %v1797 = vadd.f32 0.0, %v1796
      %v1798 = vpop.f32.mrb[0].mxu0
      %v1799 = vpop.f32.mrb[0].mxu0
      %v1800 = vadd.f32 0.0, %v1799
      %v1801 = vpop.f32.mrb[0].mxu0
      %1802 = vmatprep.mubr.bf16.mxu0 0
      %1803 = vmatmul.mubr.bf16.gmra.mrb[0].mxu0 %v1742
      %v1804 = vpop.f32.mrb[0].mxu0
      %v1805 = vadd.f32 0.0, %v1804
      %v1806 = vpop.f32.mrb[0].mxu0
      %v1807 = vpop.f32.mrb[0].mxu0
      %v1808 = vadd.f32 0.0, %v1807
      %v1809 = vpop.f32.mrb[0].mxu0
      %1810 = vmatprep.mubr.bf16.mxu0 0
      %1811 = vmatmul.mubr.bf16.gmra.mrb[0].mxu0 %v1745
      %v1812 = vpop.f32.mrb[0].mxu0
      %v1813 = vadd.f32 0.0, %v1812
      %v1814 = vpop.f32.mrb[0].mxu0
      %v1815 = vpop.f32.mrb[0].mxu0
      %v1816 = vadd.f32 0.0, %v1815
      %v1817 = vpop.f32.mrb[0].mxu0
      %1818 = vmatprep.mubr.bf16.mxu0 0
      %1819 = vmatmul.mubr.bf16.gmra.mrb[0].mxu0 %v1748
      %v1820 = vpop.f32.mrb[0].mxu0
      %v1821 = vadd.f32 0.0, %v1820
      %v1822 = vpop.f32.mrb[0].mxu0
      %v1823 = vpop.f32.mrb[0].mxu0
      %v1824 = vadd.f32 0.0, %v1823
      %v1825 = vpop.f32.mrb[0].mxu0
      %1826 = vdwg.mxu0
      %vm1827 = vcmask 523264
      %v1828 = vsel %vm1827, %v1530, -inf
      %1829 = vmax.xlane.f32.xlu0 %v1828
      %v1830 = vpop.xlane.xlu0 %1829
      %v1831 = vsel %vm1827, %v1533, -inf
      %1832 = vmax.xlane.f32.xlu0 %v1831
      %v1833 = vpop.xlane.xlu0 %1832
      %v1834 = vsel %vm1827, %v1538, -inf
      %1835 = vmax.xlane.f32.xlu0 %v1834
      %v1836 = vpop.xlane.xlu0 %1835
      %v1837 = vsel %vm1827, %v1541, -inf
      %1838 = vmax.xlane.f32.xlu0 %v1837
      %v1839 = vpop.xlane.xlu0 %1838
      %v1840 = vsel %vm1827, %v1546, -inf
      %1841 = vmax.xlane.f32.xlu0 %v1840
      %v1842 = vpop.xlane.xlu0 %1841
      %v1843 = vsel %vm1827, %v1549, -inf
      %1844 = vmax.xlane.f32.xlu0 %v1843
      %v1845 = vpop.xlane.xlu0 %1844
      %v1846 = vsel %vm1827, %v1554, -inf
      %1847 = vmax.xlane.f32.xlu0 %v1846
      %v1848 = vpop.xlane.xlu0 %1847
      %v1849 = vsel %vm1827, %v1557, -inf
      %1850 = vmax.xlane.f32.xlu0 %v1849
      %v1851 = vpop.xlane.xlu0 %1850
      %v1852 = vsel %vm1827, %v1619, -inf
      %1853 = vmax.xlane.f32.xlu0 %v1852
      %v1854 = vpop.xlane.xlu0 %1853
      %v1855 = vsel %vm1827, %v1622, -inf
      %1856 = vmax.xlane.f32.xlu0 %v1855
      %v1857 = vpop.xlane.xlu0 %1856
      %v1858 = vsel %vm1827, %v1627, -inf
      %1859 = vmax.xlane.f32.xlu0 %v1858
      %v1860 = vpop.xlane.xlu0 %1859
      %v1861 = vsel %vm1827, %v1630, -inf
      %1862 = vmax.xlane.f32.xlu0 %v1861
      %v1863 = vpop.xlane.xlu0 %1862
      %v1864 = vsel %vm1827, %v1635, -inf
      %1865 = vmax.xlane.f32.xlu0 %v1864
      %v1866 = vpop.xlane.xlu0 %1865
      %v1867 = vsel %vm1827, %v1638, -inf
      %1868 = vmax.xlane.f32.xlu0 %v1867
      %v1869 = vpop.xlane.xlu0 %1868
      %v1870 = vsel %vm1827, %v1643, -inf
      %1871 = vmax.xlane.f32.xlu0 %v1870
      %v1872 = vpop.xlane.xlu0 %1871
      %v1873 = vsel %vm1827, %v1646, -inf
      %1874 = vmax.xlane.f32.xlu0 %v1873
      %v1875 = vpop.xlane.xlu0 %1874
      %v1876 = vsel %vm1827, %v1708, -inf
      %1877 = vmax.xlane.f32.xlu0 %v1876
      %v1878 = vpop.xlane.xlu0 %1877
      %v1879 = vsel %vm1827, %v1711, -inf
      %1880 = vmax.xlane.f32.xlu0 %v1879
      %v1881 = vpop.xlane.xlu0 %1880
      %v1882 = vsel %vm1827, %v1716, -inf
      %1883 = vmax.xlane.f32.xlu0 %v1882
      %v1884 = vpop.xlane.xlu0 %1883
      %v1885 = vsel %vm1827, %v1719, -inf
      %1886 = vmax.xlane.f32.xlu0 %v1885
      %v1887 = vpop.xlane.xlu0 %1886
      %v1888 = vsel %vm1827, %v1724, -inf
      %1889 = vmax.xlane.f32.xlu0 %v1888
      %v1890 = vpop.xlane.xlu0 %1889
      %v1891 = vsel %vm1827, %v1727, -inf
      %1892 = vmax.xlane.f32.xlu0 %v1891
      %v1893 = vpop.xlane.xlu0 %1892
      %v1894 = vsel %vm1827, %v1732, -inf
      %1895 = vmax.xlane.f32.xlu0 %v1894
      %v1896 = vpop.xlane.xlu0 %1895
      %v1897 = vsel %vm1827, %v1735, -inf
      %1898 = vmax.xlane.f32.xlu0 %v1897
      %v1899 = vpop.xlane.xlu0 %1898
      %v1900 = vsel %vm1827, %v1797, -inf
      %1901 = vmax.xlane.f32.xlu0 %v1900
      %v1902 = vpop.xlane.xlu0 %1901
      %v1903 = vsel %vm1827, %v1800, -inf
      %1904 = vmax.xlane.f32.xlu0 %v1903
      %v1905 = vpop.xlane.xlu0 %1904
      %v1906 = vsel %vm1827, %v1805, -inf
      %1907 = vmax.xlane.f32.xlu0 %v1906
      %v1908 = vpop.xlane.xlu0 %1907
      %v1909 = vsel %vm1827, %v1808, -inf
      %1910 = vmax.xlane.f32.xlu0 %v1909
      %v1911 = vpop.xlane.xlu0 %1910
      %v1912 = vsel %vm1827, %v1813, -inf
      %1913 = vmax.xlane.f32.xlu0 %v1912
      %v1914 = vpop.xlane.xlu0 %1913
      %v1915 = vsel %vm1827, %v1816, -inf
      %1916 = vmax.xlane.f32.xlu0 %v1915
      %v1917 = vpop.xlane.xlu0 %1916
      %v1918 = vsel %vm1827, %v1821, -inf
      %1919 = vmax.xlane.f32.xlu0 %v1918
      %v1920 = vpop.xlane.xlu0 %1919
      %v1921 = vsel %vm1827, %v1824, -inf
      %1922 = vmax.xlane.f32.xlu0 %v1921
      %v1923 = vpop.xlane.xlu0 %1922
      %v1924 = vsub.f32 %v1530, %v1830
      %v1925 = vsub.f32 %v1533, %v1833
      %v1926 = vsub.f32 %v1538, %v1836
      %v1927 = vsub.f32 %v1541, %v1839
      %v1928 = vsub.f32 %v1546, %v1842
      %v1929 = vsub.f32 %v1549, %v1845
      %v1930 = vsub.f32 %v1554, %v1848
      %v1931 = vsub.f32 %v1557, %v1851
      %v1932 = vsub.f32 %v1619, %v1854
      %v1933 = vsub.f32 %v1622, %v1857
      %v1934 = vsub.f32 %v1627, %v1860
      %v1935 = vsub.f32 %v1630, %v1863
      %v1936 = vsub.f32 %v1635, %v1866
      %v1937 = vsub.f32 %v1638, %v1869
      %v1938 = vsub.f32 %v1643, %v1872
      %v1939 = vsub.f32 %v1646, %v1875
      %v1940 = vsub.f32 %v1708, %v1878
      %v1941 = vsub.f32 %v1711, %v1881
      %v1942 = vsub.f32 %v1716, %v1884
      %v1943 = vsub.f32 %v1719, %v1887
      %v1944 = vsub.f32 %v1724, %v1890
      %v1945 = vsub.f32 %v1727, %v1893
      %v1946 = vsub.f32 %v1732, %v1896
      %v1947 = vsub.f32 %v1735, %v1899
      %v1948 = vsub.f32 %v1797, %v1902
      %v1949 = vsub.f32 %v1800, %v1905
      %v1950 = vsub.f32 %v1805, %v1908
      %v1951 = vsub.f32 %v1808, %v1911
      %v1952 = vsub.f32 %v1813, %v1914
      %v1953 = vsub.f32 %v1816, %v1917
      %v1954 = vsub.f32 %v1821, %v1920
      %v1955 = vsub.f32 %v1824, %v1923
      %v1956 = vmul.f32 %v1924, 1.442695
      %v1957 = vpow.pop %v1956
      %v1958 = vmul.f32 %v1925, 1.442695
      %v1959 = vpow.pop %v1958
      %v1960 = vmul.f32 %v1926, 1.442695
      %v1961 = vpow.pop %v1960
      %v1962 = vmul.f32 %v1927, 1.442695
      %v1963 = vpow.pop %v1962
      %v1964 = vmul.f32 %v1928, 1.442695
      %v1965 = vpow.pop %v1964
      %v1966 = vmul.f32 %v1929, 1.442695
      %v1967 = vpow.pop %v1966
      %v1968 = vmul.f32 %v1930, 1.442695
      %v1969 = vpow.pop %v1968
      %v1970 = vmul.f32 %v1931, 1.442695
      %v1971 = vpow.pop %v1970
      %v1972 = vmul.f32 %v1932, 1.442695
      %v1973 = vpow.pop %v1972
      %v1974 = vmul.f32 %v1933, 1.442695
      %v1975 = vpow.pop %v1974
      %v1976 = vmul.f32 %v1934, 1.442695
      %v1977 = vpow.pop %v1976
      %v1978 = vmul.f32 %v1935, 1.442695
      %v1979 = vpow.pop %v1978
      %v1980 = vmul.f32 %v1936, 1.442695
      %v1981 = vpow.pop %v1980
      %v1982 = vmul.f32 %v1937, 1.442695
      %v1983 = vpow.pop %v1982
      %v1984 = vmul.f32 %v1938, 1.442695
      %v1985 = vpow.pop %v1984
      %v1986 = vmul.f32 %v1939, 1.442695
      %v1987 = vpow.pop %v1986
      %v1988 = vmul.f32 %v1940, 1.442695
      %v1989 = vpow.pop %v1988
      %v1990 = vmul.f32 %v1941, 1.442695
      %v1991 = vpow.pop %v1990
      %v1992 = vmul.f32 %v1942, 1.442695
      %v1993 = vpow.pop %v1992
      %v1994 = vmul.f32 %v1943, 1.442695
      %v1995 = vpow.pop %v1994
      %v1996 = vmul.f32 %v1944, 1.442695
      %v1997 = vpow.pop %v1996
      %v1998 = vmul.f32 %v1945, 1.442695
      %v1999 = vpow.pop %v1998
      %v2000 = vmul.f32 %v1946, 1.442695
      %v2001 = vpow.pop %v2000
      %v2002 = vmul.f32 %v1947, 1.442695
      %v2003 = vpow.pop %v2002
      %v2004 = vmul.f32 %v1948, 1.442695
      %v2005 = vpow.pop %v2004
      %v2006 = vmul.f32 %v1949, 1.442695
      %v2007 = vpow.pop %v2006
      %v2008 = vmul.f32 %v1950, 1.442695
      %v2009 = vpow.pop %v2008
      %v2010 = vmul.f32 %v1951, 1.442695
      %v2011 = vpow.pop %v2010
      %v2012 = vmul.f32 %v1952, 1.442695
      %v2013 = vpow.pop %v2012
      %v2014 = vmul.f32 %v1953, 1.442695
      %v2015 = vpow.pop %v2014
      %v2016 = vmul.f32 %v1954, 1.442695
      %v2017 = vpow.pop %v2016
      %v2018 = vmul.f32 %v1955, 1.442695
      %v2019 = vpow.pop %v2018
      %v2020 = vsel %vm1827, %v1957, 0.0
      %2021 = vadd.xlane.f32.xlu0 %v2020
      %v2022 = vpop.xlane.xlu0 %2021
      %v2023 = vsel %vm1827, %v1959, 0.0
      %2024 = vadd.xlane.f32.xlu0 %v2023
      %v2025 = vpop.xlane.xlu0 %2024
      %v2026 = vsel %vm1827, %v1961, 0.0
      %2027 = vadd.xlane.f32.xlu0 %v2026
      %v2028 = vpop.xlane.xlu0 %2027
      %v2029 = vsel %vm1827, %v1963, 0.0
      %2030 = vadd.xlane.f32.xlu0 %v2029
      %v2031 = vpop.xlane.xlu0 %2030
      %v2032 = vsel %vm1827, %v1965, 0.0
      %2033 = vadd.xlane.f32.xlu0 %v2032
      %v2034 = vpop.xlane.xlu0 %2033
      %v2035 = vsel %vm1827, %v1967, 0.0
      %2036 = vadd.xlane.f32.xlu0 %v2035
      %v2037 = vpop.xlane.xlu0 %2036
      %v2038 = vsel %vm1827, %v1969, 0.0
      %2039 = vadd.xlane.f32.xlu0 %v2038
      %v2040 = vpop.xlane.xlu0 %2039
      %v2041 = vsel %vm1827, %v1971, 0.0
      %2042 = vadd.xlane.f32.xlu0 %v2041
      %v2043 = vpop.xlane.xlu0 %2042
      %v2044 = vsel %vm1827, %v1973, 0.0
      %2045 = vadd.xlane.f32.xlu0 %v2044
      %v2046 = vpop.xlane.xlu0 %2045
      %v2047 = vsel %vm1827, %v1975, 0.0
      %2048 = vadd.xlane.f32.xlu0 %v2047
      %v2049 = vpop.xlane.xlu0 %2048
      %v2050 = vsel %vm1827, %v1977, 0.0
      %2051 = vadd.xlane.f32.xlu0 %v2050
      %v2052 = vpop.xlane.xlu0 %2051
      %v2053 = vsel %vm1827, %v1979, 0.0
      %2054 = vadd.xlane.f32.xlu0 %v2053
      %v2055 = vpop.xlane.xlu0 %2054
      %v2056 = vsel %vm1827, %v1981, 0.0
      %2057 = vadd.xlane.f32.xlu0 %v2056
      %v2058 = vpop.xlane.xlu0 %2057
      %v2059 = vsel %vm1827, %v1983, 0.0
      %2060 = vadd.xlane.f32.xlu0 %v2059
      %v2061 = vpop.xlane.xlu0 %2060
      %v2062 = vsel %vm1827, %v1985, 0.0
      %2063 = vadd.xlane.f32.xlu0 %v2062
      %v2064 = vpop.xlane.xlu0 %2063
      %v2065 = vsel %vm1827, %v1987, 0.0
      %2066 = vadd.xlane.f32.xlu0 %v2065
      %v2067 = vpop.xlane.xlu0 %2066
      %v2068 = vsel %vm1827, %v1989, 0.0
      %2069 = vadd.xlane.f32.xlu0 %v2068
      %v2070 = vpop.xlane.xlu0 %2069
      %v2071 = vsel %vm1827, %v1991, 0.0
      %2072 = vadd.xlane.f32.xlu0 %v2071
      %v2073 = vpop.xlane.xlu0 %2072
      %v2074 = vsel %vm1827, %v1993, 0.0
      %2075 = vadd.xlane.f32.xlu0 %v2074
      %v2076 = vpop.xlane.xlu0 %2075
      %v2077 = vsel %vm1827, %v1995, 0.0
      %2078 = vadd.xlane.f32.xlu0 %v2077
      %v2079 = vpop.xlane.xlu0 %2078
      %v2080 = vsel %vm1827, %v1997, 0.0
      %2081 = vadd.xlane.f32.xlu0 %v2080
      %v2082 = vpop.xlane.xlu0 %2081
      %v2083 = vsel %vm1827, %v1999, 0.0
      %2084 = vadd.xlane.f32.xlu0 %v2083
      %v2085 = vpop.xlane.xlu0 %2084
      %v2086 = vsel %vm1827, %v2001, 0.0
      %2087 = vadd.xlane.f32.xlu0 %v2086
      %v2088 = vpop.xlane.xlu0 %2087
      %v2089 = vsel %vm1827, %v2003, 0.0
      %2090 = vadd.xlane.f32.xlu0 %v2089
      %v2091 = vpop.xlane.xlu0 %2090
      %v2092 = vsel %vm1827, %v2005, 0.0
      %2093 = vadd.xlane.f32.xlu0 %v2092
      %v2094 = vpop.xlane.xlu0 %2093
      %v2095 = vsel %vm1827, %v2007, 0.0
      %2096 = vadd.xlane.f32.xlu0 %v2095
      %v2097 = vpop.xlane.xlu0 %2096
      %v2098 = vsel %vm1827, %v2009, 0.0
      %2099 = vadd.xlane.f32.xlu0 %v2098
      %v2100 = vpop.xlane.xlu0 %2099
      %v2101 = vsel %vm1827, %v2011, 0.0
      %2102 = vadd.xlane.f32.xlu0 %v2101
      %v2103 = vpop.xlane.xlu0 %2102
      %v2104 = vsel %vm1827, %v2013, 0.0
      %2105 = vadd.xlane.f32.xlu0 %v2104
      %v2106 = vpop.xlane.xlu0 %2105
      %v2107 = vsel %vm1827, %v2015, 0.0
      %2108 = vadd.xlane.f32.xlu0 %v2107
      %v2109 = vpop.xlane.xlu0 %2108
      %v2110 = vsel %vm1827, %v2017, 0.0
      %2111 = vadd.xlane.f32.xlu0 %v2110
      %v2112 = vpop.xlane.xlu0 %2111
      %v2113 = vsel %vm1827, %v2019, 0.0
      %2114 = vadd.xlane.f32.xlu0 %v2113
      %v2115 = vpop.xlane.xlu0 %2114
      %v2116 = vrcp.pop %v2022
      %v2117 = vrcp.pop %v2025
      %v2118 = vrcp.pop %v2028
      %v2119 = vrcp.pop %v2031
      %v2120 = vrcp.pop %v2034
      %v2121 = vrcp.pop %v2037
      %v2122 = vrcp.pop %v2040
      %v2123 = vrcp.pop %v2043
      %v2124 = vrcp.pop %v2046
      %v2125 = vrcp.pop %v2049
      %v2126 = vrcp.pop %v2052
      %v2127 = vrcp.pop %v2055
      %v2128 = vrcp.pop %v2058
      %v2129 = vrcp.pop %v2061
      %v2130 = vrcp.pop %v2064
      %v2131 = vrcp.pop %v2067
      %v2132 = vrcp.pop %v2070
      %v2133 = vrcp.pop %v2073
      %v2134 = vrcp.pop %v2076
      %v2135 = vrcp.pop %v2079
      %v2136 = vrcp.pop %v2082
      %v2137 = vrcp.pop %v2085
      %v2138 = vrcp.pop %v2088
      %v2139 = vrcp.pop %v2091
      %v2140 = vrcp.pop %v2094
      %v2141 = vrcp.pop %v2097
      %v2142 = vrcp.pop %v2100
      %v2143 = vrcp.pop %v2103
      %v2144 = vrcp.pop %v2106
      %v2145 = vrcp.pop %v2109
      %v2146 = vrcp.pop %v2112
      %v2147 = vrcp.pop %v2115
      %v2148 = vmul.f32 %v1957, %v2116
      %v2149 = vmul.f32 %v1959, %v2117
      %v2150 = vmul.f32 %v1961, %v2118
      %v2151 = vmul.f32 %v1963, %v2119
      %v2152 = vmul.f32 %v1965, %v2120
      %v2153 = vmul.f32 %v1967, %v2121
      %v2154 = vmul.f32 %v1969, %v2122
      %v2155 = vmul.f32 %v1971, %v2123
      %v2156 = vmul.f32 %v1973, %v2124
      %v2157 = vmul.f32 %v1975, %v2125
      %v2158 = vmul.f32 %v1977, %v2126
      %v2159 = vmul.f32 %v1979, %v2127
      %v2160 = vmul.f32 %v1981, %v2128
      %v2161 = vmul.f32 %v1983, %v2129
      %v2162 = vmul.f32 %v1985, %v2130
      %v2163 = vmul.f32 %v1987, %v2131
      %v2164 = vmul.f32 %v1989, %v2132
      %v2165 = vmul.f32 %v1991, %v2133
      %v2166 = vmul.f32 %v1993, %v2134
      %v2167 = vmul.f32 %v1995, %v2135
      %v2168 = vmul.f32 %v1997, %v2136
      %v2169 = vmul.f32 %v1999, %v2137
      %v2170 = vmul.f32 %v2001, %v2138
      %v2171 = vmul.f32 %v2003, %v2139
      %v2172 = vmul.f32 %v2005, %v2140
      %v2173 = vmul.f32 %v2007, %v2141
      %v2174 = vmul.f32 %v2009, %v2142
      %v2175 = vmul.f32 %v2011, %v2143
      %v2176 = vmul.f32 %v2013, %v2144
      %v2177 = vmul.f32 %v2015, %v2145
      %v2178 = vmul.f32 %v2017, %v2146
      %v2179 = vmul.f32 %v2019, %v2147
      %v2180 = vpack.c.bf16 %v2149, %v2148
      %v2181 = vpack.c.bf16 %v2151, %v2150
      %v2182 = vpack.c.bf16 %v2153, %v2152
      %v2183 = vpack.c.bf16 %v2155, %v2154
      %v2184 = vpack.c.bf16 %v2157, %v2156
      %v2185 = vpack.c.bf16 %v2159, %v2158
      %v2186 = vpack.c.bf16 %v2161, %v2160
      %v2187 = vpack.c.bf16 %v2163, %v2162
      %v2188 = vpack.c.bf16 %v2165, %v2164
      %v2189 = vpack.c.bf16 %v2167, %v2166
      %v2190 = vpack.c.bf16 %v2169, %v2168
      %v2191 = vpack.c.bf16 %v2171, %v2170
      %v2192 = vpack.c.bf16 %v2173, %v2172
      %v2193 = vpack.c.bf16 %v2175, %v2174
      %v2194 = vpack.c.bf16 %v2177, %v2176
      %v2195 = vpack.c.bf16 %v2179, %v2178
      %v2197 = vsel %vm1827, %v2180, 0
      %v2200 = vsel %vm1827, %v2181, 0
      %v2203 = vsel %vm1827, %v2182, 0
      %v2206 = vsel %vm1827, %v2183, 0
      %2208 = vmatprep.subr.bf16.mxu0 0
      %2209 = vmatpush1.bf16.msra.mxu0 %v1454
      %2210 = vmatprep.subr.bf16.mxu0 0
      %2211 = vmatpush1.bf16.msra.mxu0 %v1455
      %2212 = vmatprep.subr.bf16.mxu0 0
      %2213 = vmatpush1.bf16.msra.mxu0 %v1456
      %2214 = vmatprep.subr.bf16.mxu0 0
      %2215 = vmatpush1.bf16.msra.mxu0 %v1457
      %2216 = vmatprep.subr.bf16.mxu0 0
      %2217 = vmatpush1.bf16.msra.mxu0 0
      %2218 = vmatprep.subr.bf16.mxu0 0
      %2219 = vmatpush1.bf16.msra.mxu0 0
      %2220 = vmatprep.subr.bf16.mxu0 0
      %2221 = vmatpush1.bf16.msra.mxu0 0
      %2222 = vmatprep.subr.bf16.mxu0 0
      %2223 = vmatpush1.bf16.msra.mxu0 0
      %2224 = vmatprep.subr.bf16.mxu0 0
      %2225 = vmatpush1.bf16.msra.mxu0 0
      %2226 = vmatprep.subr.bf16.mxu0 0
      %2227 = vmatpush1.bf16.msra.mxu0 0
      %2228 = vmatprep.subr.bf16.mxu0 0
      %2229 = vmatpush1.bf16.msra.mxu0 0
      %2230 = vmatprep.subr.bf16.mxu0 0
      %2231 = vmatpush1.bf16.msra.mxu0 0
      %2232 = vmatprep.subr.bf16.mxu0 0
      %2233 = vmatpush1.bf16.msra.mxu0 0
      %2234 = vmatprep.subr.bf16.mxu0 0
      %2235 = vmatpush1.bf16.msra.mxu0 0
      %2236 = vmatprep.subr.bf16.mxu0 0
      %2237 = vmatpush1.bf16.msra.mxu0 0
      %2238 = vmatprep.subr.bf16.mxu0 0
      %2239 = vmatpush1.bf16.msra.mxu0 0
      %2240 = vmatprep.mubr.bf16.mxu0 0
      %2241 = vmatmul.mubr.bf16.gmra.mrb[0].mxu0 %v2197
      %v2242 = vpop.f32.mrb[0].mxu0
      %v2243 = vadd.f32 0.0, %v2242
      %v2244 = vpop.f32.mrb[0].mxu0
      %v2245 = vpop.f32.mrb[0].mxu0
      %v2246 = vadd.f32 0.0, %v2245
      %v2247 = vpop.f32.mrb[0].mxu0
      %2248 = vmatprep.mubr.bf16.mxu0 0
      %2249 = vmatmul.mubr.bf16.gmra.mrb[0].mxu0 %v2200
      %v2250 = vpop.f32.mrb[0].mxu0
      %v2251 = vadd.f32 0.0, %v2250
      %v2252 = vpop.f32.mrb[0].mxu0
      %v2253 = vpop.f32.mrb[0].mxu0
      %v2254 = vadd.f32 0.0, %v2253
      %v2255 = vpop.f32.mrb[0].mxu0
      %2256 = vmatprep.mubr.bf16.mxu0 0
      %2257 = vmatmul.mubr.bf16.gmra.mrb[0].mxu0 %v2203
      %v2258 = vpop.f32.mrb[0].mxu0
      %v2259 = vadd.f32 0.0, %v2258
      %v2260 = vpop.f32.mrb[0].mxu0
      %v2261 = vpop.f32.mrb[0].mxu0
      %v2262 = vadd.f32 0.0, %v2261
      %v2263 = vpop.f32.mrb[0].mxu0
      %2264 = vmatprep.mubr.bf16.mxu0 0
      %2265 = vmatmul.mubr.bf16.gmra.mrb[0].mxu0 %v2206
      %v2266 = vpop.f32.mrb[0].mxu0
      %v2267 = vadd.f32 0.0, %v2266
      %v2268 = vpop.f32.mrb[0].mxu0
      %v2269 = vpop.f32.mrb[0].mxu0
      %v2270 = vadd.f32 0.0, %v2269
      %v2271 = vpop.f32.mrb[0].mxu0
      %2272 = vdwg.mxu0
      %v2274 = vsel %vm1827, %v2184, 0
      %v2277 = vsel %vm1827, %v2185, 0
      %v2280 = vsel %vm1827, %v2186, 0
      %v2283 = vsel %vm1827, %v2187, 0
      %2285 = vmatprep.subr.bf16.mxu0 0
      %2286 = vmatpush1.bf16.msra.mxu0 %v1458
      %2287 = vmatprep.subr.bf16.mxu0 0
      %2288 = vmatpush1.bf16.msra.mxu0 %v1459
      %2289 = vmatprep.subr.bf16.mxu0 0
      %2290 = vmatpush1.bf16.msra.mxu0 %v1460
      %2291 = vmatprep.subr.bf16.mxu0 0
      %2292 = vmatpush1.bf16.msra.mxu0 %v1461
      %2293 = vmatprep.subr.bf16.mxu0 0
      %2294 = vmatpush1.bf16.msra.mxu0 0
      %2295 = vmatprep.subr.bf16.mxu0 0
      %2296 = vmatpush1.bf16.msra.mxu0 0
      %2297 = vmatprep.subr.bf16.mxu0 0
      %2298 = vmatpush1.bf16.msra.mxu0 0
      %2299 = vmatprep.subr.bf16.mxu0 0
      %2300 = vmatpush1.bf16.msra.mxu0 0
      %2301 = vmatprep.subr.bf16.mxu0 0
      %2302 = vmatpush1.bf16.msra.mxu0 0
      %2303 = vmatprep.subr.bf16.mxu0 0
      %2304 = vmatpush1.bf16.msra.mxu0 0
      %2305 = vmatprep.subr.bf16.mxu0 0
      %2306 = vmatpush1.bf16.msra.mxu0 0
      %2307 = vmatprep.subr.bf16.mxu0 0
      %2308 = vmatpush1.bf16.msra.mxu0 0
      %2309 = vmatprep.subr.bf16.mxu0 0
      %2310 = vmatpush1.bf16.msra.mxu0 0
      %2311 = vmatprep.subr.bf16.mxu0 0
      %2312 = vmatpush1.bf16.msra.mxu0 0
      %2313 = vmatprep.subr.bf16.mxu0 0
      %2314 = vmatpush1.bf16.msra.mxu0 0
      %2315 = vmatprep.subr.bf16.mxu0 0
      %2316 = vmatpush1.bf16.msra.mxu0 0
      %2317 = vmatprep.mubr.bf16.mxu0 0
      %2318 = vmatmul.mubr.bf16.gmra.mrb[0].mxu0 %v2274
      %v2319 = vpop.f32.mrb[0].mxu0
      %v2320 = vadd.f32 0.0, %v2319
      %v2321 = vpop.f32.mrb[0].mxu0
      %v2322 = vpop.f32.mrb[0].mxu0
      %v2323 = vadd.f32 0.0, %v2322
      %v2324 = vpop.f32.mrb[0].mxu0
      %2325 = vmatprep.mubr.bf16.mxu0 0
      %2326 = vmatmul.mubr.bf16.gmra.mrb[0].mxu0 %v2277
      %v2327 = vpop.f32.mrb[0].mxu0
      %v2328 = vadd.f32 0.0, %v2327
      %v2329 = vpop.f32.mrb[0].mxu0
      %v2330 = vpop.f32.mrb[0].mxu0
      %v2331 = vadd.f32 0.0, %v2330
      %v2332 = vpop.f32.mrb[0].mxu0
      %2333 = vmatprep.mubr.bf16.mxu0 0
      %2334 = vmatmul.mubr.bf16.gmra.mrb[0].mxu0 %v2280
      %v2335 = vpop.f32.mrb[0].mxu0
      %v2336 = vadd.f32 0.0, %v2335
      %v2337 = vpop.f32.mrb[0].mxu0
      %v2338 = vpop.f32.mrb[0].mxu0
      %v2339 = vadd.f32 0.0, %v2338
      %v2340 = vpop.f32.mrb[0].mxu0
      %2341 = vmatprep.mubr.bf16.mxu0 0
      %2342 = vmatmul.mubr.bf16.gmra.mrb[0].mxu0 %v2283
      %v2343 = vpop.f32.mrb[0].mxu0
      %v2344 = vadd.f32 0.0, %v2343
      %v2345 = vpop.f32.mrb[0].mxu0
      %v2346 = vpop.f32.mrb[0].mxu0
      %v2347 = vadd.f32 0.0, %v2346
      %v2348 = vpop.f32.mrb[0].mxu0
      %2349 = vdwg.mxu0
      %v2351 = vsel %vm1827, %v2188, 0
      %v2354 = vsel %vm1827, %v2189, 0
      %v2357 = vsel %vm1827, %v2190, 0
      %v2360 = vsel %vm1827, %v2191, 0
      %2362 = vmatprep.subr.bf16.mxu0 0
      %2363 = vmatpush1.bf16.msra.mxu0 %v1462
      %2364 = vmatprep.subr.bf16.mxu0 0
      %2365 = vmatpush1.bf16.msra.mxu0 %v1463
      %2366 = vmatprep.subr.bf16.mxu0 0
      %2367 = vmatpush1.bf16.msra.mxu0 %v1464
      %2368 = vmatprep.subr.bf16.mxu0 0
      %2369 = vmatpush1.bf16.msra.mxu0 %v1465
      %2370 = vmatprep.subr.bf16.mxu0 0
      %2371 = vmatpush1.bf16.msra.mxu0 0
      %2372 = vmatprep.subr.bf16.mxu0 0
      %2373 = vmatpush1.bf16.msra.mxu0 0
      %2374 = vmatprep.subr.bf16.mxu0 0
      %2375 = vmatpush1.bf16.msra.mxu0 0
      %2376 = vmatprep.subr.bf16.mxu0 0
      %2377 = vmatpush1.bf16.msra.mxu0 0
      %2378 = vmatprep.subr.bf16.mxu0 0
      %2379 = vmatpush1.bf16.msra.mxu0 0
      %2380 = vmatprep.subr.bf16.mxu0 0
      %2381 = vmatpush1.bf16.msra.mxu0 0
      %2382 = vmatprep.subr.bf16.mxu0 0
      %2383 = vmatpush1.bf16.msra.mxu0 0
      %2384 = vmatprep.subr.bf16.mxu0 0
      %2385 = vmatpush1.bf16.msra.mxu0 0
      %2386 = vmatprep.subr.bf16.mxu0 0
      %2387 = vmatpush1.bf16.msra.mxu0 0
      %2388 = vmatprep.subr.bf16.mxu0 0
      %2389 = vmatpush1.bf16.msra.mxu0 0
      %2390 = vmatprep.subr.bf16.mxu0 0
      %2391 = vmatpush1.bf16.msra.mxu0 0
      %2392 = vmatprep.subr.bf16.mxu0 0
      %2393 = vmatpush1.bf16.msra.mxu0 0
      %2394 = vmatprep.mubr.bf16.mxu0 0
      %2395 = vmatmul.mubr.bf16.gmra.mrb[0].mxu0 %v2351
      %v2396 = vpop.f32.mrb[0].mxu0
      %v2397 = vadd.f32 0.0, %v2396
      %v2398 = vpop.f32.mrb[0].mxu0
      %v2399 = vpop.f32.mrb[0].mxu0
      %v2400 = vadd.f32 0.0, %v2399
      %v2401 = vpop.f32.mrb[0].mxu0
      %2402 = vmatprep.mubr.bf16.mxu0 0
      %2403 = vmatmul.mubr.bf16.gmra.mrb[0].mxu0 %v2354
      %v2404 = vpop.f32.mrb[0].mxu0
      %v2405 = vadd.f32 0.0, %v2404
      %v2406 = vpop.f32.mrb[0].mxu0
      %v2407 = vpop.f32.mrb[0].mxu0
      %v2408 = vadd.f32 0.0, %v2407
      %v2409 = vpop.f32.mrb[0].mxu0
      %2410 = vmatprep.mubr.bf16.mxu0 0
      %2411 = vmatmul.mubr.bf16.gmra.mrb[0].mxu0 %v2357
      %v2412 = vpop.f32.mrb[0].mxu0
      %v2413 = vadd.f32 0.0, %v2412
      %v2414 = vpop.f32.mrb[0].mxu0
      %v2415 = vpop.f32.mrb[0].mxu0
      %v2416 = vadd.f32 0.0, %v2415
      %v2417 = vpop.f32.mrb[0].mxu0
      %2418 = vmatprep.mubr.bf16.mxu0 0
      %2419 = vmatmul.mubr.bf16.gmra.mrb[0].mxu0 %v2360
      %v2420 = vpop.f32.mrb[0].mxu0
      %v2421 = vadd.f32 0.0, %v2420
      %v2422 = vpop.f32.mrb[0].mxu0
      %v2423 = vpop.f32.mrb[0].mxu0
      %v2424 = vadd.f32 0.0, %v2423
      %v2425 = vpop.f32.mrb[0].mxu0
      %2426 = vdwg.mxu0
      %v2428 = vsel %vm1827, %v2192, 0
      %v2431 = vsel %vm1827, %v2193, 0
      %v2434 = vsel %vm1827, %v2194, 0
      %v2437 = vsel %vm1827, %v2195, 0
      %2439 = vmatprep.subr.bf16.mxu0 0
      %2440 = vmatpush1.bf16.msra.mxu0 %v1466
      %2441 = vmatprep.subr.bf16.mxu0 0
      %2442 = vmatpush1.bf16.msra.mxu0 %v1467
      %2443 = vmatprep.subr.bf16.mxu0 0
      %2444 = vmatpush1.bf16.msra.mxu0 %v1468
      %2445 = vmatprep.subr.bf16.mxu0 0
      %2446 = vmatpush1.bf16.msra.mxu0 %v1469
      %2447 = vmatprep.subr.bf16.mxu0 0
      %2448 = vmatpush1.bf16.msra.mxu0 0
      %2449 = vmatprep.subr.bf16.mxu0 0
      %2450 = vmatpush1.bf16.msra.mxu0 0
      %2451 = vmatprep.subr.bf16.mxu0 0
      %2452 = vmatpush1.bf16.msra.mxu0 0
      %2453 = vmatprep.subr.bf16.mxu0 0
      %2454 = vmatpush1.bf16.msra.mxu0 0
      %2455 = vmatprep.subr.bf16.mxu0 0
      %2456 = vmatpush1.bf16.msra.mxu0 0
      %2457 = vmatprep.subr.bf16.mxu0 0
      %2458 = vmatpush1.bf16.msra.mxu0 0
      %2459 = vmatprep.subr.bf16.mxu0 0
      %2460 = vmatpush1.bf16.msra.mxu0 0
      %2461 = vmatprep.subr.bf16.mxu0 0
      %2462 = vmatpush1.bf16.msra.mxu0 0
      %2463 = vmatprep.subr.bf16.mxu0 0
      %2464 = vmatpush1.bf16.msra.mxu0 0
      %2465 = vmatprep.subr.bf16.mxu0 0
      %2466 = vmatpush1.bf16.msra.mxu0 0
      %2467 = vmatprep.subr.bf16.mxu0 0
      %2468 = vmatpush1.bf16.msra.mxu0 0
      %2469 = vmatprep.subr.bf16.mxu0 0
      %2470 = vmatpush1.bf16.msra.mxu0 0
      %2471 = vmatprep.mubr.bf16.mxu0 0
      %2472 = vmatmul.mubr.bf16.gmra.mrb[0].mxu0 %v2428
      %v2473 = vpop.f32.mrb[0].mxu0
      %v2474 = vadd.f32 0.0, %v2473
      %v2475 = vpop.f32.mrb[0].mxu0
      %v2476 = vpop.f32.mrb[0].mxu0
      %v2477 = vadd.f32 0.0, %v2476
      %v2478 = vpop.f32.mrb[0].mxu0
      %2479 = vmatprep.mubr.bf16.mxu0 0
      %2480 = vmatmul.mubr.bf16.gmra.mrb[0].mxu0 %v2431
      %v2481 = vpop.f32.mrb[0].mxu0
      %v2482 = vadd.f32 0.0, %v2481
      %v2483 = vpop.f32.mrb[0].mxu0
      %v2484 = vpop.f32.mrb[0].mxu0
      %v2485 = vadd.f32 0.0, %v2484
      %v2486 = vpop.f32.mrb[0].mxu0
      %2487 = vmatprep.mubr.bf16.mxu0 0
      %2488 = vmatmul.mubr.bf16.gmra.mrb[0].mxu0 %v2434
      %v2489 = vpop.f32.mrb[0].mxu0
      %v2490 = vadd.f32 0.0, %v2489
      %v2491 = vpop.f32.mrb[0].mxu0
      %v2492 = vpop.f32.mrb[0].mxu0
      %v2493 = vadd.f32 0.0, %v2492
      %v2494 = vpop.f32.mrb[0].mxu0
      %2495 = vmatprep.mubr.bf16.mxu0 0
      %2496 = vmatmul.mubr.bf16.gmra.mrb[0].mxu0 %v2437
      %v2497 = vpop.f32.mrb[0].mxu0
      %v2498 = vadd.f32 0.0, %v2497
      %v2499 = vpop.f32.mrb[0].mxu0
      %v2500 = vpop.f32.mrb[0].mxu0
      %v2501 = vadd.f32 0.0, %v2500
      %v2502 = vpop.f32.mrb[0].mxu0
      %2503 = vdwg.mxu0
      %2508 = vrot.lane.b32.xlu0 %v1422, 112
      %v2509 = vpop.permute.xlu0 %2508
      %2510 = vrot.lane.b32.xlu0 %v1423, 112
      %v2511 = vpop.permute.xlu0 %2510
      %2512 = vrot.lane.b32.xlu0 %v1424, 112
      %v2513 = vpop.permute.xlu0 %2512
      %2514 = vrot.lane.b32.xlu0 %v1425, 112
      %v2515 = vpop.permute.xlu0 %2514
      %2520 = vrot.lane.b32.xlu0 %v1438, 112
      %v2521 = vpop.permute.xlu0 %2520
      %2522 = vrot.lane.b32.xlu0 %v1439, 112
      %v2523 = vpop.permute.xlu0 %2522
      %2524 = vrot.lane.b32.xlu0 %v1440, 112
      %v2525 = vpop.permute.xlu0 %2524
      %2526 = vrot.lane.b32.xlu0 %v1441, 112
      %v2527 = vpop.permute.xlu0 %2526
      %v2529 = vsel %vm1470, %v2509, 0
      %v2532 = vsel %vm1470, %v2511, 0
      %v2535 = vsel %vm1470, %v2513, 0
      %v2538 = vsel %vm1470, %v2515, 0
      %v2541 = vsel %vm1470, %v2521, 0
      %v2544 = vsel %vm1470, %v2523, 0
      %v2547 = vsel %vm1470, %v2525, 0
      %v2550 = vsel %vm1470, %v2527, 0
      %2552 = vmatprep.subr.bf16.mxu0 0
      %2553 = vmatpush1.bf16.xpose.msra.mxu0 %v2541
      %2554 = vmatprep.subr.bf16.mxu0 0
      %2555 = vmatpush1.bf16.xpose.msra.mxu0 %v2544
      %2556 = vmatprep.subr.bf16.mxu0 0
      %2557 = vmatpush1.bf16.xpose.msra.mxu0 %v2547
      %2558 = vmatprep.subr.bf16.mxu0 0
      %2559 = vmatpush1.bf16.xpose.msra.mxu0 %v2550
      %2560 = vmatprep.subr.bf16.mxu0 0
      %2561 = vmatpush1.bf16.xpose.msra.mxu0 0
      %2562 = vmatprep.subr.bf16.mxu0 0
      %2563 = vmatpush1.bf16.xpose.msra.mxu0 0
      %2564 = vmatprep.subr.bf16.mxu0 0
      %2565 = vmatpush1.bf16.xpose.msra.mxu0 0
      %2566 = vmatprep.subr.bf16.mxu0 0
      %2567 = vmatpush1.bf16.xpose.msra.mxu0 0
      %2568 = vmatprep.subr.bf16.mxu0 0
      %2569 = vmatpush1.bf16.xpose.msra.mxu0 0
      %2570 = vmatprep.subr.bf16.mxu0 0
      %2571 = vmatpush1.bf16.xpose.msra.mxu0 0
      %2572 = vmatprep.subr.bf16.mxu0 0
      %2573 = vmatpush1.bf16.xpose.msra.mxu0 0
      %2574 = vmatprep.subr.bf16.mxu0 0
      %2575 = vmatpush1.bf16.xpose.msra.mxu0 0
      %2576 = vmatprep.subr.bf16.mxu0 0
      %2577 = vmatpush1.bf16.xpose.msra.mxu0 0
      %2578 = vmatprep.subr.bf16.mxu0 0
      %2579 = vmatpush1.bf16.xpose.msra.mxu0 0
      %2580 = vmatprep.subr.bf16.mxu0 0
      %2581 = vmatpush1.bf16.xpose.msra.mxu0 0
      %2582 = vmatprep.subr.bf16.mxu0 0
      %2583 = vmatpush1.bf16.xpose.msra.mxu0 0
      %2584 = vmatprep.mubr.bf16.mxu0 0
      %2585 = vmatmul.mubr.bf16.gmra.mrb[0].mxu0 %v2529
      %v2586 = vpop.f32.mrb[0].mxu0
      %v2587 = vadd.f32 0.0, %v2586
      %v2588 = vpop.f32.mrb[0].mxu0
      %v2589 = vpop.f32.mrb[0].mxu0
      %v2590 = vadd.f32 0.0, %v2589
      %v2591 = vpop.f32.mrb[0].mxu0
      %2592 = vmatprep.mubr.bf16.mxu0 0
      %2593 = vmatmul.mubr.bf16.gmra.mrb[0].mxu0 %v2532
      %v2594 = vpop.f32.mrb[0].mxu0
      %v2595 = vadd.f32 0.0, %v2594
      %v2596 = vpop.f32.mrb[0].mxu0
      %v2597 = vpop.f32.mrb[0].mxu0
      %v2598 = vadd.f32 0.0, %v2597
      %v2599 = vpop.f32.mrb[0].mxu0
      %2600 = vmatprep.mubr.bf16.mxu0 0
      %2601 = vmatmul.mubr.bf16.gmra.mrb[0].mxu0 %v2535
      %v2602 = vpop.f32.mrb[0].mxu0
      %v2603 = vadd.f32 0.0, %v2602
      %v2604 = vpop.f32.mrb[0].mxu0
      %v2605 = vpop.f32.mrb[0].mxu0
      %v2606 = vadd.f32 0.0, %v2605
      %v2607 = vpop.f32.mrb[0].mxu0
      %2608 = vmatprep.mubr.bf16.mxu0 0
      %2609 = vmatmul.mubr.bf16.gmra.mrb[0].mxu0 %v2538
      %v2610 = vpop.f32.mrb[0].mxu0
      %v2611 = vadd.f32 0.0, %v2610
      %v2612 = vpop.f32.mrb[0].mxu0
      %v2613 = vpop.f32.mrb[0].mxu0
      %v2614 = vadd.f32 0.0, %v2613
      %v2615 = vpop.f32.mrb[0].mxu0
      %2616 = vdwg.mxu0
      %2621 = vrot.lane.b32.xlu0 %v1426, 112
      %v2622 = vpop.permute.xlu0 %2621
      %2623 = vrot.lane.b32.xlu0 %v1427, 112
      %v2624 = vpop.permute.xlu0 %2623
      %2625 = vrot.lane.b32.xlu0 %v1428, 112
      %v2626 = vpop.permute.xlu0 %2625
      %2627 = vrot.lane.b32.xlu0 %v1429, 112
      %v2628 = vpop.permute.xlu0 %2627
      %2633 = vrot.lane.b32.xlu0 %v1442, 112
      %v2634 = vpop.permute.xlu0 %2633
      %2635 = vrot.lane.b32.xlu0 %v1443, 112
      %v2636 = vpop.permute.xlu0 %2635
      %2637 = vrot.lane.b32.xlu0 %v1444, 112
      %v2638 = vpop.permute.xlu0 %2637
      %2639 = vrot.lane.b32.xlu0 %v1445, 112
      %v2640 = vpop.permute.xlu0 %2639
      %v2642 = vsel %vm1470, %v2622, 0
      %v2645 = vsel %vm1470, %v2624, 0
      %v2648 = vsel %vm1470, %v2626, 0
      %v2651 = vsel %vm1470, %v2628, 0
      %v2654 = vsel %vm1470, %v2634, 0
      %v2657 = vsel %vm1470, %v2636, 0
      %v2660 = vsel %vm1470, %v2638, 0
      %v2663 = vsel %vm1470, %v2640, 0
      %2665 = vmatprep.subr.bf16.mxu0 0
      %2666 = vmatpush1.bf16.xpose.msra.mxu0 %v2654
      %2667 = vmatprep.subr.bf16.mxu0 0
      %2668 = vmatpush1.bf16.xpose.msra.mxu0 %v2657
      %2669 = vmatprep.subr.bf16.mxu0 0
      %2670 = vmatpush1.bf16.xpose.msra.mxu0 %v2660
      %2671 = vmatprep.subr.bf16.mxu0 0
      %2672 = vmatpush1.bf16.xpose.msra.mxu0 %v2663
      %2673 = vmatprep.subr.bf16.mxu0 0
      %2674 = vmatpush1.bf16.xpose.msra.mxu0 0
      %2675 = vmatprep.subr.bf16.mxu0 0
      %2676 = vmatpush1.bf16.xpose.msra.mxu0 0
      %2677 = vmatprep.subr.bf16.mxu0 0
      %2678 = vmatpush1.bf16.xpose.msra.mxu0 0
      %2679 = vmatprep.subr.bf16.mxu0 0
      %2680 = vmatpush1.bf16.xpose.msra.mxu0 0
      %2681 = vmatprep.subr.bf16.mxu0 0
      %2682 = vmatpush1.bf16.xpose.msra.mxu0 0
      %2683 = vmatprep.subr.bf16.mxu0 0
      %2684 = vmatpush1.bf16.xpose.msra.mxu0 0
      %2685 = vmatprep.subr.bf16.mxu0 0
      %2686 = vmatpush1.bf16.xpose.msra.mxu0 0
      %2687 = vmatprep.subr.bf16.mxu0 0
      %2688 = vmatpush1.bf16.xpose.msra.mxu0 0
      %2689 = vmatprep.subr.bf16.mxu0 0
      %2690 = vmatpush1.bf16.xpose.msra.mxu0 0
      %2691 = vmatprep.subr.bf16.mxu0 0
      %2692 = vmatpush1.bf16.xpose.msra.mxu0 0
      %2693 = vmatprep.subr.bf16.mxu0 0
      %2694 = vmatpush1.bf16.xpose.msra.mxu0 0
      %2695 = vmatprep.subr.bf16.mxu0 0
      %2696 = vmatpush1.bf16.xpose.msra.mxu0 0
      %2697 = vmatprep.mubr.bf16.mxu0 0
      %2698 = vmatmul.mubr.bf16.gmra.mrb[0].mxu0 %v2642
      %v2699 = vpop.f32.mrb[0].mxu0
      %v2700 = vadd.f32 0.0, %v2699
      %v2701 = vpop.f32.mrb[0].mxu0
      %v2702 = vpop.f32.mrb[0].mxu0
      %v2703 = vadd.f32 0.0, %v2702
      %v2704 = vpop.f32.mrb[0].mxu0
      %2705 = vmatprep.mubr.bf16.mxu0 0
      %2706 = vmatmul.mubr.bf16.gmra.mrb[0].mxu0 %v2645
      %v2707 = vpop.f32.mrb[0].mxu0
      %v2708 = vadd.f32 0.0, %v2707
      %v2709 = vpop.f32.mrb[0].mxu0
      %v2710 = vpop.f32.mrb[0].mxu0
      %v2711 = vadd.f32 0.0, %v2710
      %v2712 = vpop.f32.mrb[0].mxu0
      %2713 = vmatprep.mubr.bf16.mxu0 0
      %2714 = vmatmul.mubr.bf16.gmra.mrb[0].mxu0 %v2648
      %v2715 = vpop.f32.mrb[0].mxu0
      %v2716 = vadd.f32 0.0, %v2715
      %v2717 = vpop.f32.mrb[0].mxu0
      %v2718 = vpop.f32.mrb[0].mxu0
      %v2719 = vadd.f32 0.0, %v2718
      %v2720 = vpop.f32.mrb[0].mxu0
      %2721 = vmatprep.mubr.bf16.mxu0 0
      %2722 = vmatmul.mubr.bf16.gmra.mrb[0].mxu0 %v2651
      %v2723 = vpop.f32.mrb[0].mxu0
      %v2724 = vadd.f32 0.0, %v2723
      %v2725 = vpop.f32.mrb[0].mxu0
      %v2726 = vpop.f32.mrb[0].mxu0
      %v2727 = vadd.f32 0.0, %v2726
      %v2728 = vpop.f32.mrb[0].mxu0
      %2729 = vdwg.mxu0
      %2734 = vrot.lane.b32.xlu0 %v1430, 112
      %v2735 = vpop.permute.xlu0 %2734
      %2736 = vrot.lane.b32.xlu0 %v1431, 112
      %v2737 = vpop.permute.xlu0 %2736
      %2738 = vrot.lane.b32.xlu0 %v1432, 112
      %v2739 = vpop.permute.xlu0 %2738
      %2740 = vrot.lane.b32.xlu0 %v1433, 112
      %v2741 = vpop.permute.xlu0 %2740
      %2746 = vrot.lane.b32.xlu0 %v1446, 112
      %v2747 = vpop.permute.xlu0 %2746
      %2748 = vrot.lane.b32.xlu0 %v1447, 112
      %v2749 = vpop.permute.xlu0 %2748
      %2750 = vrot.lane.b32.xlu0 %v1448, 112
      %v2751 = vpop.permute.xlu0 %2750
      %2752 = vrot.lane.b32.xlu0 %v1449, 112
      %v2753 = vpop.permute.xlu0 %2752
      %v2755 = vsel %vm1470, %v2735, 0
      %v2758 = vsel %vm1470, %v2737, 0
      %v2761 = vsel %vm1470, %v2739, 0
      %v2764 = vsel %vm1470, %v2741, 0
      %v2767 = vsel %vm1470, %v2747, 0
      %v2770 = vsel %vm1470, %v2749, 0
      %v2773 = vsel %vm1470, %v2751, 0
      %v2776 = vsel %vm1470, %v2753, 0
      %2778 = vmatprep.subr.bf16.mxu0 0
      %2779 = vmatpush1.bf16.xpose.msra.mxu0 %v2767
      %2780 = vmatprep.subr.bf16.mxu0 0
      %2781 = vmatpush1.bf16.xpose.msra.mxu0 %v2770
      %2782 = vmatprep.subr.bf16.mxu0 0
      %2783 = vmatpush1.bf16.xpose.msra.mxu0 %v2773
      %2784 = vmatprep.subr.bf16.mxu0 0
      %2785 = vmatpush1.bf16.xpose.msra.mxu0 %v2776
      %2786 = vmatprep.subr.bf16.mxu0 0
      %2787 = vmatpush1.bf16.xpose.msra.mxu0 0
      %2788 = vmatprep.subr.bf16.mxu0 0
      %2789 = vmatpush1.bf16.xpose.msra.mxu0 0
      %2790 = vmatprep.subr.bf16.mxu0 0
      %2791 = vmatpush1.bf16.xpose.msra.mxu0 0
      %2792 = vmatprep.subr.bf16.mxu0 0
      %2793 = vmatpush1.bf16.xpose.msra.mxu0 0
      %2794 = vmatprep.subr.bf16.mxu0 0
      %2795 = vmatpush1.bf16.xpose.msra.mxu0 0
      %2796 = vmatprep.subr.bf16.mxu0 0
      %2797 = vmatpush1.bf16.xpose.msra.mxu0 0
      %2798 = vmatprep.subr.bf16.mxu0 0
      %2799 = vmatpush1.bf16.xpose.msra.mxu0 0
      %2800 = vmatprep.subr.bf16.mxu0 0
      %2801 = vmatpush1.bf16.xpose.msra.mxu0 0
      %2802 = vmatprep.subr.bf16.mxu0 0
      %2803 = vmatpush1.bf16.xpose.msra.mxu0 0
      %2804 = vmatprep.subr.bf16.mxu0 0
      %2805 = vmatpush1.bf16.xpose.msra.mxu0 0
      %2806 = vmatprep.subr.bf16.mxu0 0
      %2807 = vmatpush1.bf16.xpose.msra.mxu0 0
      %2808 = vmatprep.subr.bf16.mxu0 0
      %2809 = vmatpush1.bf16.xpose.msra.mxu0 0
      %2810 = vmatprep.mubr.bf16.mxu0 0
      %2811 = vmatmul.mubr.bf16.gmra.mrb[0].mxu0 %v2755
      %v2812 = vpop.f32.mrb[0].mxu0
      %v2813 = vadd.f32 0.0, %v2812
      %v2814 = vpop.f32.mrb[0].mxu0
      %v2815 = vpop.f32.mrb[0].mxu0
      %v2816 = vadd.f32 0.0, %v2815
      %v2817 = vpop.f32.mrb[0].mxu0
      %2818 = vmatprep.mubr.bf16.mxu0 0
      %2819 = vmatmul.mubr.bf16.gmra.mrb[0].mxu0 %v2758
      %v2820 = vpop.f32.mrb[0].mxu0
      %v2821 = vadd.f32 0.0, %v2820
      %v2822 = vpop.f32.mrb[0].mxu0
      %v2823 = vpop.f32.mrb[0].mxu0
      %v2824 = vadd.f32 0.0, %v2823
      %v2825 = vpop.f32.mrb[0].mxu0
      %2826 = vmatprep.mubr.bf16.mxu0 0
      %2827 = vmatmul.mubr.bf16.gmra.mrb[0].mxu0 %v2761
      %v2828 = vpop.f32.mrb[0].mxu0
      %v2829 = vadd.f32 0.0, %v2828
      %v2830 = vpop.f32.mrb[0].mxu0
      %v2831 = vpop.f32.mrb[0].mxu0
      %v2832 = vadd.f32 0.0, %v2831
      %v2833 = vpop.f32.mrb[0].mxu0
      %2834 = vmatprep.mubr.bf16.mxu0 0
      %2835 = vmatmul.mubr.bf16.gmra.mrb[0].mxu0 %v2764
      %v2836 = vpop.f32.mrb[0].mxu0
      %v2837 = vadd.f32 0.0, %v2836
      %v2838 = vpop.f32.mrb[0].mxu0
      %v2839 = vpop.f32.mrb[0].mxu0
      %v2840 = vadd.f32 0.0, %v2839
      %v2841 = vpop.f32.mrb[0].mxu0
      %2842 = vdwg.mxu0
      %2847 = vrot.lane.b32.xlu0 %v1434, 112
      %v2848 = vpop.permute.xlu0 %2847
      %2849 = vrot.lane.b32.xlu0 %v1435, 112
      %v2850 = vpop.permute.xlu0 %2849
      %2851 = vrot.lane.b32.xlu0 %v1436, 112
      %v2852 = vpop.permute.xlu0 %2851
      %2853 = vrot.lane.b32.xlu0 %v1437, 112
      %v2854 = vpop.permute.xlu0 %2853
      %2859 = vrot.lane.b32.xlu0 %v1450, 112
      %v2860 = vpop.permute.xlu0 %2859
      %2861 = vrot.lane.b32.xlu0 %v1451, 112
      %v2862 = vpop.permute.xlu0 %2861
      %2863 = vrot.lane.b32.xlu0 %v1452, 112
      %v2864 = vpop.permute.xlu0 %2863
      %2865 = vrot.lane.b32.xlu0 %v1453, 112
      %v2866 = vpop.permute.xlu0 %2865
      %v2868 = vsel %vm1470, %v2848, 0
      %v2871 = vsel %vm1470, %v2850, 0
      %v2874 = vsel %vm1470, %v2852, 0
      %v2877 = vsel %vm1470, %v2854, 0
      %v2880 = vsel %vm1470, %v2860, 0
      %v2883 = vsel %vm1470, %v2862, 0
      %v2886 = vsel %vm1470, %v2864, 0
      %v2889 = vsel %vm1470, %v2866, 0
      %2891 = vmatprep.subr.bf16.mxu0 0
      %2892 = vmatpush1.bf16.xpose.msra.mxu0 %v2880
      %2893 = vmatprep.subr.bf16.mxu0 0
      %2894 = vmatpush1.bf16.xpose.msra.mxu0 %v2883
      %2895 = vmatprep.subr.bf16.mxu0 0
      %2896 = vmatpush1.bf16.xpose.msra.mxu0 %v2886
      %2897 = vmatprep.subr.bf16.mxu0 0
      %2898 = vmatpush1.bf16.xpose.msra.mxu0 %v2889
      %2899 = vmatprep.subr.bf16.mxu0 0
      %2900 = vmatpush1.bf16.xpose.msra.mxu0 0
      %2901 = vmatprep.subr.bf16.mxu0 0
      %2902 = vmatpush1.bf16.xpose.msra.mxu0 0
      %2903 = vmatprep.subr.bf16.mxu0 0
      %2904 = vmatpush1.bf16.xpose.msra.mxu0 0
      %2905 = vmatprep.subr.bf16.mxu0 0
      %2906 = vmatpush1.bf16.xpose.msra.mxu0 0
      %2907 = vmatprep.subr.bf16.mxu0 0
      %2908 = vmatpush1.bf16.xpose.msra.mxu0 0
      %2909 = vmatprep.subr.bf16.mxu0 0
      %2910 = vmatpush1.bf16.xpose.msra.mxu0 0
      %2911 = vmatprep.subr.bf16.mxu0 0
      %2912 = vmatpush1.bf16.xpose.msra.mxu0 0
      %2913 = vmatprep.subr.bf16.mxu0 0
      %2914 = vmatpush1.bf16.xpose.msra.mxu0 0
      %2915 = vmatprep.subr.bf16.mxu0 0
      %2916 = vmatpush1.bf16.xpose.msra.mxu0 0
      %2917 = vmatprep.subr.bf16.mxu0 0
      %2918 = vmatpush1.bf16.xpose.msra.mxu0 0
      %2919 = vmatprep.subr.bf16.mxu0 0
      %2920 = vmatpush1.bf16.xpose.msra.mxu0 0
      %2921 = vmatprep.subr.bf16.mxu0 0
      %2922 = vmatpush1.bf16.xpose.msra.mxu0 0
      %2923 = vmatprep.mubr.bf16.mxu0 0
      %2924 = vmatmul.mubr.bf16.gmra.mrb[0].mxu0 %v2868
      %v2925 = vpop.f32.mrb[0].mxu0
      %v2926 = vadd.f32 0.0, %v2925
      %v2927 = vpop.f32.mrb[0].mxu0
      %v2928 = vpop.f32.mrb[0].mxu0
      %v2929 = vadd.f32 0.0, %v2928
      %v2930 = vpop.f32.mrb[0].mxu0
      %2931 = vmatprep.mubr.bf16.mxu0 0
      %2932 = vmatmul.mubr.bf16.gmra.mrb[0].mxu0 %v2871
      %v2933 = vpop.f32.mrb[0].mxu0
      %v2934 = vadd.f32 0.0, %v2933
      %v2935 = vpop.f32.mrb[0].mxu0
      %v2936 = vpop.f32.mrb[0].mxu0
      %v2937 = vadd.f32 0.0, %v2936
      %v2938 = vpop.f32.mrb[0].mxu0
      %2939 = vmatprep.mubr.bf16.mxu0 0
      %2940 = vmatmul.mubr.bf16.gmra.mrb[0].mxu0 %v2874
      %v2941 = vpop.f32.mrb[0].mxu0
      %v2942 = vadd.f32 0.0, %v2941
      %v2943 = vpop.f32.mrb[0].mxu0
      %v2944 = vpop.f32.mrb[0].mxu0
      %v2945 = vadd.f32 0.0, %v2944
      %v2946 = vpop.f32.mrb[0].mxu0
      %2947 = vmatprep.mubr.bf16.mxu0 0
      %2948 = vmatmul.mubr.bf16.gmra.mrb[0].mxu0 %v2877
      %v2949 = vpop.f32.mrb[0].mxu0
      %v2950 = vadd.f32 0.0, %v2949
      %v2951 = vpop.f32.mrb[0].mxu0
      %v2952 = vpop.f32.mrb[0].mxu0
      %v2953 = vadd.f32 0.0, %v2952
      %v2954 = vpop.f32.mrb[0].mxu0
      %2955 = vdwg.mxu0
      %v2956 = vsel %vm1827, %v2587, -inf
      %2957 = vmax.xlane.f32.xlu0 %v2956
      %v2958 = vpop.xlane.xlu0 %2957
      %v2959 = vsel %vm1827, %v2590, -inf
      %2960 = vmax.xlane.f32.xlu0 %v2959
      %v2961 = vpop.xlane.xlu0 %2960
      %v2962 = vsel %vm1827, %v2595, -inf
      %2963 = vmax.xlane.f32.xlu0 %v2962
      %v2964 = vpop.xlane.xlu0 %2963
      %v2965 = vsel %vm1827, %v2598, -inf
      %2966 = vmax.xlane.f32.xlu0 %v2965
      %v2967 = vpop.xlane.xlu0 %2966
      %v2968 = vsel %vm1827, %v2603, -inf
      %2969 = vmax.xlane.f32.xlu0 %v2968
      %v2970 = vpop.xlane.xlu0 %2969
      %v2971 = vsel %vm1827, %v2606, -inf
      %2972 = vmax.xlane.f32.xlu0 %v2971
      %v2973 = vpop.xlane.xlu0 %2972
      %v2974 = vsel %vm1827, %v2611, -inf
      %2975 = vmax.xlane.f32.xlu0 %v2974
      %v2976 = vpop.xlane.xlu0 %2975
      %v2977 = vsel %vm1827, %v2614, -inf
      %2978 = vmax.xlane.f32.xlu0 %v2977
      %v2979 = vpop.xlane.xlu0 %2978
      %v2980 = vsel %vm1827, %v2700, -inf
      %2981 = vmax.xlane.f32.xlu0 %v2980
      %v2982 = vpop.xlane.xlu0 %2981
      %v2983 = vsel %vm1827, %v2703, -inf
      %2984 = vmax.xlane.f32.xlu0 %v2983
      %v2985 = vpop.xlane.xlu0 %2984
      %v2986 = vsel %vm1827, %v2708, -inf
      %2987 = vmax.xlane.f32.xlu0 %v2986
      %v2988 = vpop.xlane.xlu0 %2987
      %v2989 = vsel %vm1827, %v2711, -inf
      %2990 = vmax.xlane.f32.xlu0 %v2989
      %v2991 = vpop.xlane.xlu0 %2990
      %v2992 = vsel %vm1827, %v2716, -inf
      %2993 = vmax.xlane.f32.xlu0 %v2992
      %v2994 = vpop.xlane.xlu0 %2993
      %v2995 = vsel %vm1827, %v2719, -inf
      %2996 = vmax.xlane.f32.xlu0 %v2995
      %v2997 = vpop.xlane.xlu0 %2996
      %v2998 = vsel %vm1827, %v2724, -inf
      %2999 = vmax.xlane.f32.xlu0 %v2998
      %v3000 = vpop.xlane.xlu0 %2999
      %v3001 = vsel %vm1827, %v2727, -inf
      %3002 = vmax.xlane.f32.xlu0 %v3001
      %v3003 = vpop.xlane.xlu0 %3002
      %v3004 = vsel %vm1827, %v2813, -inf
      %3005 = vmax.xlane.f32.xlu0 %v3004
      %v3006 = vpop.xlane.xlu0 %3005
      %v3007 = vsel %vm1827, %v2816, -inf
      %3008 = vmax.xlane.f32.xlu0 %v3007
      %v3009 = vpop.xlane.xlu0 %3008
      %v3010 = vsel %vm1827, %v2821, -inf
      %3011 = vmax.xlane.f32.xlu0 %v3010
      %v3012 = vpop.xlane.xlu0 %3011
      %v3013 = vsel %vm1827, %v2824, -inf
      %3014 = vmax.xlane.f32.xlu0 %v3013
      %v3015 = vpop.xlane.xlu0 %3014
      %v3016 = vsel %vm1827, %v2829, -inf
      %3017 = vmax.xlane.f32.xlu0 %v3016
      %v3018 = vpop.xlane.xlu0 %3017
      %v3019 = vsel %vm1827, %v2832, -inf
      %3020 = vmax.xlane.f32.xlu0 %v3019
      %v3021 = vpop.xlane.xlu0 %3020
      %v3022 = vsel %vm1827, %v2837, -inf
      %3023 = vmax.xlane.f32.xlu0 %v3022
      %v3024 = vpop.xlane.xlu0 %3023
      %v3025 = vsel %vm1827, %v2840, -inf
      %3026 = vmax.xlane.f32.xlu0 %v3025
      %v3027 = vpop.xlane.xlu0 %3026
      %v3028 = vsel %vm1827, %v2926, -inf
      %3029 = vmax.xlane.f32.xlu0 %v3028
      %v3030 = vpop.xlane.xlu0 %3029
      %v3031 = vsel %vm1827, %v2929, -inf
      %3032 = vmax.xlane.f32.xlu0 %v3031
      %v3033 = vpop.xlane.xlu0 %3032
      %v3034 = vsel %vm1827, %v2934, -inf
      %3035 = vmax.xlane.f32.xlu0 %v3034
      %v3036 = vpop.xlane.xlu0 %3035
      %v3037 = vsel %vm1827, %v2937, -inf
      %3038 = vmax.xlane.f32.xlu0 %v3037
      %v3039 = vpop.xlane.xlu0 %3038
      %v3040 = vsel %vm1827, %v2942, -inf
      %3041 = vmax.xlane.f32.xlu0 %v3040
      %v3042 = vpop.xlane.xlu0 %3041
      %v3043 = vsel %vm1827, %v2945, -inf
      %3044 = vmax.xlane.f32.xlu0 %v3043
      %v3045 = vpop.xlane.xlu0 %3044
      %v3046 = vsel %vm1827, %v2950, -inf
      %3047 = vmax.xlane.f32.xlu0 %v3046
      %v3048 = vpop.xlane.xlu0 %3047
      %v3049 = vsel %vm1827, %v2953, -inf
      %3050 = vmax.xlane.f32.xlu0 %v3049
      %v3051 = vpop.xlane.xlu0 %3050
      %v3052 = vsub.f32 %v2587, %v2958
      %v3053 = vsub.f32 %v2590, %v2961
      %v3054 = vsub.f32 %v2595, %v2964
      %v3055 = vsub.f32 %v2598, %v2967
      %v3056 = vsub.f32 %v2603, %v2970
      %v3057 = vsub.f32 %v2606, %v2973
      %v3058 = vsub.f32 %v2611, %v2976
      %v3059 = vsub.f32 %v2614, %v2979
      %v3060 = vsub.f32 %v2700, %v2982
      %v3061 = vsub.f32 %v2703, %v2985
      %v3062 = vsub.f32 %v2708, %v2988
      %v3063 = vsub.f32 %v2711, %v2991
      %v3064 = vsub.f32 %v2716, %v2994
      %v3065 = vsub.f32 %v2719, %v2997
      %v3066 = vsub.f32 %v2724, %v3000
      %v3067 = vsub.f32 %v2727, %v3003
      %v3068 = vsub.f32 %v2813, %v3006
      %v3069 = vsub.f32 %v2816, %v3009
      %v3070 = vsub.f32 %v2821, %v3012
      %v3071 = vsub.f32 %v2824, %v3015
      %v3072 = vsub.f32 %v2829, %v3018
      %v3073 = vsub.f32 %v2832, %v3021
      %v3074 = vsub.f32 %v2837, %v3024
      %v3075 = vsub.f32 %v2840, %v3027
      %v3076 = vsub.f32 %v2926, %v3030
      %v3077 = vsub.f32 %v2929, %v3033
      %v3078 = vsub.f32 %v2934, %v3036
      %v3079 = vsub.f32 %v2937, %v3039
      %v3080 = vsub.f32 %v2942, %v3042
      %v3081 = vsub.f32 %v2945, %v3045
      %v3082 = vsub.f32 %v2950, %v3048
      %v3083 = vsub.f32 %v2953, %v3051
      %v3084 = vmul.f32 %v3052, 1.442695
      %v3085 = vpow.pop %v3084
      %v3086 = vmul.f32 %v3053, 1.442695
      %v3087 = vpow.pop %v3086
      %v3088 = vmul.f32 %v3054, 1.442695
      %v3089 = vpow.pop %v3088
      %v3090 = vmul.f32 %v3055, 1.442695
      %v3091 = vpow.pop %v3090
      %v3092 = vmul.f32 %v3056, 1.442695
      %v3093 = vpow.pop %v3092
      %v3094 = vmul.f32 %v3057, 1.442695
      %v3095 = vpow.pop %v3094
      %v3096 = vmul.f32 %v3058, 1.442695
      %v3097 = vpow.pop %v3096
      %v3098 = vmul.f32 %v3059, 1.442695
      %v3099 = vpow.pop %v3098
      %v3100 = vmul.f32 %v3060, 1.442695
      %v3101 = vpow.pop %v3100
      %v3102 = vmul.f32 %v3061, 1.442695
      %v3103 = vpow.pop %v3102
      %v3104 = vmul.f32 %v3062, 1.442695
      %v3105 = vpow.pop %v3104
      %v3106 = vmul.f32 %v3063, 1.442695
      %v3107 = vpow.pop %v3106
      %v3108 = vmul.f32 %v3064, 1.442695
      %v3109 = vpow.pop %v3108
      %v3110 = vmul.f32 %v3065, 1.442695
      %v3111 = vpow.pop %v3110
      %v3112 = vmul.f32 %v3066, 1.442695
      %v3113 = vpow.pop %v3112
      %v3114 = vmul.f32 %v3067, 1.442695
      %v3115 = vpow.pop %v3114
      %v3116 = vmul.f32 %v3068, 1.442695
      %v3117 = vpow.pop %v3116
      %v3118 = vmul.f32 %v3069, 1.442695
      %v3119 = vpow.pop %v3118
      %v3120 = vmul.f32 %v3070, 1.442695
      %v3121 = vpow.pop %v3120
      %v3122 = vmul.f32 %v3071, 1.442695
      %v3123 = vpow.pop %v3122
      %v3124 = vmul.f32 %v3072, 1.442695
      %v3125 = vpow.pop %v3124
      %v3126 = vmul.f32 %v3073, 1.442695
      %v3127 = vpow.pop %v3126
      %v3128 = vmul.f32 %v3074, 1.442695
      %v3129 = vpow.pop %v3128
      %v3130 = vmul.f32 %v3075, 1.442695
      %v3131 = vpow.pop %v3130
      %v3132 = vmul.f32 %v3076, 1.442695
      %v3133 = vpow.pop %v3132
      %v3134 = vmul.f32 %v3077, 1.442695
      %v3135 = vpow.pop %v3134
      %v3136 = vmul.f32 %v3078, 1.442695
      %v3137 = vpow.pop %v3136
      %v3138 = vmul.f32 %v3079, 1.442695
      %v3139 = vpow.pop %v3138
      %v3140 = vmul.f32 %v3080, 1.442695
      %v3141 = vpow.pop %v3140
      %v3142 = vmul.f32 %v3081, 1.442695
      %v3143 = vpow.pop %v3142
      %v3144 = vmul.f32 %v3082, 1.442695
      %v3145 = vpow.pop %v3144
      %v3146 = vmul.f32 %v3083, 1.442695
      %v3147 = vpow.pop %v3146
      %v3148 = vsel %vm1827, %v3085, 0.0
      %3149 = vadd.xlane.f32.xlu0 %v3148
      %v3150 = vpop.xlane.xlu0 %3149
      %v3151 = vsel %vm1827, %v3087, 0.0
      %3152 = vadd.xlane.f32.xlu0 %v3151
      %v3153 = vpop.xlane.xlu0 %3152
      %v3154 = vsel %vm1827, %v3089, 0.0
      %3155 = vadd.xlane.f32.xlu0 %v3154
      %v3156 = vpop.xlane.xlu0 %3155
      %v3157 = vsel %vm1827, %v3091, 0.0
      %3158 = vadd.xlane.f32.xlu0 %v3157
      %v3159 = vpop.xlane.xlu0 %3158
      %v3160 = vsel %vm1827, %v3093, 0.0
      %3161 = vadd.xlane.f32.xlu0 %v3160
      %v3162 = vpop.xlane.xlu0 %3161
      %v3163 = vsel %vm1827, %v3095, 0.0
      %3164 = vadd.xlane.f32.xlu0 %v3163
      %v3165 = vpop.xlane.xlu0 %3164
      %v3166 = vsel %vm1827, %v3097, 0.0
      %3167 = vadd.xlane.f32.xlu0 %v3166
      %v3168 = vpop.xlane.xlu0 %3167
      %v3169 = vsel %vm1827, %v3099, 0.0
      %3170 = vadd.xlane.f32.xlu0 %v3169
      %v3171 = vpop.xlane.xlu0 %3170
      %v3172 = vsel %vm1827, %v3101, 0.0
      %3173 = vadd.xlane.f32.xlu0 %v3172
      %v3174 = vpop.xlane.xlu0 %3173
      %v3175 = vsel %vm1827, %v3103, 0.0
      %3176 = vadd.xlane.f32.xlu0 %v3175
      %v3177 = vpop.xlane.xlu0 %3176
      %v3178 = vsel %vm1827, %v3105, 0.0
      %3179 = vadd.xlane.f32.xlu0 %v3178
      %v3180 = vpop.xlane.xlu0 %3179
      %v3181 = vsel %vm1827, %v3107, 0.0
      %3182 = vadd.xlane.f32.xlu0 %v3181
      %v3183 = vpop.xlane.xlu0 %3182
      %v3184 = vsel %vm1827, %v3109, 0.0
      %3185 = vadd.xlane.f32.xlu0 %v3184
      %v3186 = vpop.xlane.xlu0 %3185
      %v3187 = vsel %vm1827, %v3111, 0.0
      %3188 = vadd.xlane.f32.xlu0 %v3187
      %v3189 = vpop.xlane.xlu0 %3188
      %v3190 = vsel %vm1827, %v3113, 0.0
      %3191 = vadd.xlane.f32.xlu0 %v3190
      %v3192 = vpop.xlane.xlu0 %3191
      %v3193 = vsel %vm1827, %v3115, 0.0
      %3194 = vadd.xlane.f32.xlu0 %v3193
      %v3195 = vpop.xlane.xlu0 %3194
      %v3196 = vsel %vm1827, %v3117, 0.0
      %3197 = vadd.xlane.f32.xlu0 %v3196
      %v3198 = vpop.xlane.xlu0 %3197
      %v3199 = vsel %vm1827, %v3119, 0.0
      %3200 = vadd.xlane.f32.xlu0 %v3199
      %v3201 = vpop.xlane.xlu0 %3200
      %v3202 = vsel %vm1827, %v3121, 0.0
      %3203 = vadd.xlane.f32.xlu0 %v3202
      %v3204 = vpop.xlane.xlu0 %3203
      %v3205 = vsel %vm1827, %v3123, 0.0
      %3206 = vadd.xlane.f32.xlu0 %v3205
      %v3207 = vpop.xlane.xlu0 %3206
      %v3208 = vsel %vm1827, %v3125, 0.0
      %3209 = vadd.xlane.f32.xlu0 %v3208
      %v3210 = vpop.xlane.xlu0 %3209
      %v3211 = vsel %vm1827, %v3127, 0.0
      %3212 = vadd.xlane.f32.xlu0 %v3211
      %v3213 = vpop.xlane.xlu0 %3212
      %v3214 = vsel %vm1827, %v3129, 0.0
      %3215 = vadd.xlane.f32.xlu0 %v3214
      %v3216 = vpop.xlane.xlu0 %3215
      %v3217 = vsel %vm1827, %v3131, 0.0
      %3218 = vadd.xlane.f32.xlu0 %v3217
      %v3219 = vpop.xlane.xlu0 %3218
      %v3220 = vsel %vm1827, %v3133, 0.0
      %3221 = vadd.xlane.f32.xlu0 %v3220
      %v3222 = vpop.xlane.xlu0 %3221
      %v3223 = vsel %vm1827, %v3135, 0.0
      %3224 = vadd.xlane.f32.xlu0 %v3223
      %v3225 = vpop.xlane.xlu0 %3224
      %v3226 = vsel %vm1827, %v3137, 0.0
      %3227 = vadd.xlane.f32.xlu0 %v3226
      %v3228 = vpop.xlane.xlu0 %3227
      %v3229 = vsel %vm1827, %v3139, 0.0
      %3230 = vadd.xlane.f32.xlu0 %v3229
      %v3231 = vpop.xlane.xlu0 %3230
      %v3232 = vsel %vm1827, %v3141, 0.0
      %3233 = vadd.xlane.f32.xlu0 %v3232
      %v3234 = vpop.xlane.xlu0 %3233
      %v3235 = vsel %vm1827, %v3143, 0.0
      %3236 = vadd.xlane.f32.xlu0 %v3235
      %v3237 = vpop.xlane.xlu0 %3236
      %v3238 = vsel %vm1827, %v3145, 0.0
      %3239 = vadd.xlane.f32.xlu0 %v3238
      %v3240 = vpop.xlane.xlu0 %3239
      %v3241 = vsel %vm1827, %v3147, 0.0
      %3242 = vadd.xlane.f32.xlu0 %v3241
      %v3243 = vpop.xlane.xlu0 %3242
      %v3244 = vrcp.pop %v3150
      %v3245 = vrcp.pop %v3153
      %v3246 = vrcp.pop %v3156
      %v3247 = vrcp.pop %v3159
      %v3248 = vrcp.pop %v3162
      %v3249 = vrcp.pop %v3165
      %v3250 = vrcp.pop %v3168
      %v3251 = vrcp.pop %v3171
      %v3252 = vrcp.pop %v3174
      %v3253 = vrcp.pop %v3177
      %v3254 = vrcp.pop %v3180
      %v3255 = vrcp.pop %v3183
      %v3256 = vrcp.pop %v3186
      %v3257 = vrcp.pop %v3189
      %v3258 = vrcp.pop %v3192
      %v3259 = vrcp.pop %v3195
      %v3260 = vrcp.pop %v3198
      %v3261 = vrcp.pop %v3201
      %v3262 = vrcp.pop %v3204
      %v3263 = vrcp.pop %v3207
      %v3264 = vrcp.pop %v3210
      %v3265 = vrcp.pop %v3213
      %v3266 = vrcp.pop %v3216
      %v3267 = vrcp.pop %v3219
      %v3268 = vrcp.pop %v3222
      %v3269 = vrcp.pop %v3225
      %v3270 = vrcp.pop %v3228
      %v3271 = vrcp.pop %v3231
      %v3272 = vrcp.pop %v3234
      %v3273 = vrcp.pop %v3237
      %v3274 = vrcp.pop %v3240
      %v3275 = vrcp.pop %v3243
      %v3276 = vmul.f32 %v3085, %v3244
      %v3277 = vmul.f32 %v3087, %v3245
      %v3278 = vmul.f32 %v3089, %v3246
      %v3279 = vmul.f32 %v3091, %v3247
      %v3280 = vmul.f32 %v3093, %v3248
      %v3281 = vmul.f32 %v3095, %v3249
      %v3282 = vmul.f32 %v3097, %v3250
      %v3283 = vmul.f32 %v3099, %v3251
      %v3284 = vmul.f32 %v3101, %v3252
      %v3285 = vmul.f32 %v3103, %v3253
      %v3286 = vmul.f32 %v3105, %v3254
      %v3287 = vmul.f32 %v3107, %v3255
      %v3288 = vmul.f32 %v3109, %v3256
      %v3289 = vmul.f32 %v3111, %v3257
      %v3290 = vmul.f32 %v3113, %v3258
      %v3291 = vmul.f32 %v3115, %v3259
      %v3292 = vmul.f32 %v3117, %v3260
      %v3293 = vmul.f32 %v3119, %v3261
      %v3294 = vmul.f32 %v3121, %v3262
      %v3295 = vmul.f32 %v3123, %v3263
      %v3296 = vmul.f32 %v3125, %v3264
      %v3297 = vmul.f32 %v3127, %v3265
      %v3298 = vmul.f32 %v3129, %v3266
      %v3299 = vmul.f32 %v3131, %v3267
      %v3300 = vmul.f32 %v3133, %v3268
      %v3301 = vmul.f32 %v3135, %v3269
      %v3302 = vmul.f32 %v3137, %v3270
      %v3303 = vmul.f32 %v3139, %v3271
      %v3304 = vmul.f32 %v3141, %v3272
      %v3305 = vmul.f32 %v3143, %v3273
      %v3306 = vmul.f32 %v3145, %v3274
      %v3307 = vmul.f32 %v3147, %v3275
      %v3308 = vpack.c.bf16 %v3277, %v3276
      %v3309 = vpack.c.bf16 %v3279, %v3278
      %v3310 = vpack.c.bf16 %v3281, %v3280
      %v3311 = vpack.c.bf16 %v3283, %v3282
      %v3312 = vpack.c.bf16 %v3285, %v3284
      %v3313 = vpack.c.bf16 %v3287, %v3286
      %v3314 = vpack.c.bf16 %v3289, %v3288
      %v3315 = vpack.c.bf16 %v3291, %v3290
      %v3316 = vpack.c.bf16 %v3293, %v3292
      %v3317 = vpack.c.bf16 %v3295, %v3294
      %v3318 = vpack.c.bf16 %v3297, %v3296
      %v3319 = vpack.c.bf16 %v3299, %v3298
      %v3320 = vpack.c.bf16 %v3301, %v3300
      %v3321 = vpack.c.bf16 %v3303, %v3302
      %v3322 = vpack.c.bf16 %v3305, %v3304
      %v3323 = vpack.c.bf16 %v3307, %v3306
      %3328 = vrot.lane.b32.xlu0 %v1454, 112
      %v3329 = vpop.permute.xlu0 %3328
      %3330 = vrot.lane.b32.xlu0 %v1455, 112
      %v3331 = vpop.permute.xlu0 %3330
      %3332 = vrot.lane.b32.xlu0 %v1456, 112
      %v3333 = vpop.permute.xlu0 %3332
      %3334 = vrot.lane.b32.xlu0 %v1457, 112
      %v3335 = vpop.permute.xlu0 %3334
      %v3341 = vsel %vm1827, %v3308, 0
      %v3344 = vsel %vm1827, %v3309, 0
      %v3347 = vsel %vm1827, %v3310, 0
      %v3350 = vsel %vm1827, %v3311, 0
      %3352 = vmatprep.subr.bf16.mxu0 0
      %3353 = vmatpush1.bf16.msra.mxu0 %v3329
      %3354 = vmatprep.subr.bf16.mxu0 0
      %3355 = vmatpush1.bf16.msra.mxu0 %v3331
      %3356 = vmatprep.subr.bf16.mxu0 0
      %3357 = vmatpush1.bf16.msra.mxu0 %v3333
      %3358 = vmatprep.subr.bf16.mxu0 0
      %3359 = vmatpush1.bf16.msra.mxu0 %v3335
      %3360 = vmatprep.subr.bf16.mxu0 0
      %3361 = vmatpush1.bf16.msra.mxu0 0
      %3362 = vmatprep.subr.bf16.mxu0 0
      %3363 = vmatpush1.bf16.msra.mxu0 0
      %3364 = vmatprep.subr.bf16.mxu0 0
      %3365 = vmatpush1.bf16.msra.mxu0 0
      %3366 = vmatprep.subr.bf16.mxu0 0
      %3367 = vmatpush1.bf16.msra.mxu0 0
      %3368 = vmatprep.subr.bf16.mxu0 0
      %3369 = vmatpush1.bf16.msra.mxu0 0
      %3370 = vmatprep.subr.bf16.mxu0 0
      %3371 = vmatpush1.bf16.msra.mxu0 0
      %3372 = vmatprep.subr.bf16.mxu0 0
      %3373 = vmatpush1.bf16.msra.mxu0 0
      %3374 = vmatprep.subr.bf16.mxu0 0
      %3375 = vmatpush1.bf16.msra.mxu0 0
      %3376 = vmatprep.subr.bf16.mxu0 0
      %3377 = vmatpush1.bf16.msra.mxu0 0
      %3378 = vmatprep.subr.bf16.mxu0 0
      %3379 = vmatpush1.bf16.msra.mxu0 0
      %3380 = vmatprep.subr.bf16.mxu0 0
      %3381 = vmatpush1.bf16.msra.mxu0 0
      %3382 = vmatprep.subr.bf16.mxu0 0
      %3383 = vmatpush1.bf16.msra.mxu0 0
      %3384 = vmatprep.mubr.bf16.mxu0 0
      %3385 = vmatmul.mubr.bf16.gmra.mrb[0].mxu0 %v3341
      %v3386 = vpop.f32.mrb[0].mxu0
      %v3387 = vadd.f32 0.0, %v3386
      %v3388 = vpop.f32.mrb[0].mxu0
      %v3389 = vpop.f32.mrb[0].mxu0
      %v3390 = vadd.f32 0.0, %v3389
      %v3391 = vpop.f32.mrb[0].mxu0
      %3392 = vmatprep.mubr.bf16.mxu0 0
      %3393 = vmatmul.mubr.bf16.gmra.mrb[0].mxu0 %v3344
      %v3394 = vpop.f32.mrb[0].mxu0
      %v3395 = vadd.f32 0.0, %v3394
      %v3396 = vpop.f32.mrb[0].mxu0
      %v3397 = vpop.f32.mrb[0].mxu0
      %v3398 = vadd.f32 0.0, %v3397
      %v3399 = vpop.f32.mrb[0].mxu0
      %3400 = vmatprep.mubr.bf16.mxu0 0
      %3401 = vmatmul.mubr.bf16.gmra.mrb[0].mxu0 %v3347
      %v3402 = vpop.f32.mrb[0].mxu0
      %v3403 = vadd.f32 0.0, %v3402
      %v3404 = vpop.f32.mrb[0].mxu0
      %v3405 = vpop.f32.mrb[0].mxu0
      %v3406 = vadd.f32 0.0, %v3405
      %v3407 = vpop.f32.mrb[0].mxu0
      %3408 = vmatprep.mubr.bf16.mxu0 0
      %3409 = vmatmul.mubr.bf16.gmra.mrb[0].mxu0 %v3350
      %v3410 = vpop.f32.mrb[0].mxu0
      %v3411 = vadd.f32 0.0, %v3410
      %v3412 = vpop.f32.mrb[0].mxu0
      %v3413 = vpop.f32.mrb[0].mxu0
      %v3414 = vadd.f32 0.0, %v3413
      %v3415 = vpop.f32.mrb[0].mxu0
      %3416 = vdwg.mxu0
      %3421 = vrot.lane.b32.xlu0 %v1458, 112
      %v3422 = vpop.permute.xlu0 %3421
      %3423 = vrot.lane.b32.xlu0 %v1459, 112
      %v3424 = vpop.permute.xlu0 %3423
      %3425 = vrot.lane.b32.xlu0 %v1460, 112
      %v3426 = vpop.permute.xlu0 %3425
      %3427 = vrot.lane.b32.xlu0 %v1461, 112
      %v3428 = vpop.permute.xlu0 %3427
      %v3434 = vsel %vm1827, %v3312, 0
      %v3437 = vsel %vm1827, %v3313, 0
      %v3440 = vsel %vm1827, %v3314, 0
      %v3443 = vsel %vm1827, %v3315, 0
      %3445 = vmatprep.subr.bf16.mxu0 0
      %3446 = vmatpush1.bf16.msra.mxu0 %v3422
      %3447 = vmatprep.subr.bf16.mxu0 0
      %3448 = vmatpush1.bf16.msra.mxu0 %v3424
      %3449 = vmatprep.subr.bf16.mxu0 0
      %3450 = vmatpush1.bf16.msra.mxu0 %v3426
      %3451 = vmatprep.subr.bf16.mxu0 0
      %3452 = vmatpush1.bf16.msra.mxu0 %v3428
      %3453 = vmatprep.subr.bf16.mxu0 0
      %3454 = vmatpush1.bf16.msra.mxu0 0
      %3455 = vmatprep.subr.bf16.mxu0 0
      %3456 = vmatpush1.bf16.msra.mxu0 0
      %3457 = vmatprep.subr.bf16.mxu0 0
      %3458 = vmatpush1.bf16.msra.mxu0 0
      %3459 = vmatprep.subr.bf16.mxu0 0
      %3460 = vmatpush1.bf16.msra.mxu0 0
      %3461 = vmatprep.subr.bf16.mxu0 0
      %3462 = vmatpush1.bf16.msra.mxu0 0
      %3463 = vmatprep.subr.bf16.mxu0 0
      %3464 = vmatpush1.bf16.msra.mxu0 0
      %3465 = vmatprep.subr.bf16.mxu0 0
      %3466 = vmatpush1.bf16.msra.mxu0 0
      %3467 = vmatprep.subr.bf16.mxu0 0
      %3468 = vmatpush1.bf16.msra.mxu0 0
      %3469 = vmatprep.subr.bf16.mxu0 0
      %3470 = vmatpush1.bf16.msra.mxu0 0
      %3471 = vmatprep.subr.bf16.mxu0 0
      %3472 = vmatpush1.bf16.msra.mxu0 0
      %3473 = vmatprep.subr.bf16.mxu0 0
      %3474 = vmatpush1.bf16.msra.mxu0 0
      %3475 = vmatprep.subr.bf16.mxu0 0
      %3476 = vmatpush1.bf16.msra.mxu0 0
      %3477 = vmatprep.mubr.bf16.mxu0 0
      %3478 = vmatmul.mubr.bf16.gmra.mrb[0].mxu0 %v3434
      %v3479 = vpop.f32.mrb[0].mxu0
      %v3480 = vadd.f32 0.0, %v3479
      %v3481 = vpop.f32.mrb[0].mxu0
      %v3482 = vpop.f32.mrb[0].mxu0
      %v3483 = vadd.f32 0.0, %v3482
      %v3484 = vpop.f32.mrb[0].mxu0
      %3485 = vmatprep.mubr.bf16.mxu0 0
      %3486 = vmatmul.mubr.bf16.gmra.mrb[0].mxu0 %v3437
      %v3487 = vpop.f32.mrb[0].mxu0
      %v3488 = vadd.f32 0.0, %v3487
      %v3489 = vpop.f32.mrb[0].mxu0
      %v3490 = vpop.f32.mrb[0].mxu0
      %v3491 = vadd.f32 0.0, %v3490
      %v3492 = vpop.f32.mrb[0].mxu0
      %3493 = vmatprep.mubr.bf16.mxu0 0
      %3494 = vmatmul.mubr.bf16.gmra.mrb[0].mxu0 %v3440
      %v3495 = vpop.f32.mrb[0].mxu0
      %v3496 = vadd.f32 0.0, %v3495
      %v3497 = vpop.f32.mrb[0].mxu0
      %v3498 = vpop.f32.mrb[0].mxu0
      %v3499 = vadd.f32 0.0, %v3498
      %v3500 = vpop.f32.mrb[0].mxu0
      %3501 = vmatprep.mubr.bf16.mxu0 0
      %3502 = vmatmul.mubr.bf16.gmra.mrb[0].mxu0 %v3443
      %v3503 = vpop.f32.mrb[0].mxu0
      %v3504 = vadd.f32 0.0, %v3503
      %v3505 = vpop.f32.mrb[0].mxu0
      %v3506 = vpop.f32.mrb[0].mxu0
      %v3507 = vadd.f32 0.0, %v3506
      %v3508 = vpop.f32.mrb[0].mxu0
      %3509 = vdwg.mxu0
      %3514 = vrot.lane.b32.xlu0 %v1462, 112
      %v3515 = vpop.permute.xlu0 %3514
      %3516 = vrot.lane.b32.xlu0 %v1463, 112
      %v3517 = vpop.permute.xlu0 %3516
      %3518 = vrot.lane.b32.xlu0 %v1464, 112
      %v3519 = vpop.permute.xlu0 %3518
      %3520 = vrot.lane.b32.xlu0 %v1465, 112
      %v3521 = vpop.permute.xlu0 %3520
      %v3527 = vsel %vm1827, %v3316, 0
      %v3530 = vsel %vm1827, %v3317, 0
      %v3533 = vsel %vm1827, %v3318, 0
      %v3536 = vsel %vm1827, %v3319, 0
      %3538 = vmatprep.subr.bf16.mxu0 0
      %3539 = vmatpush1.bf16.msra.mxu0 %v3515
      %3540 = vmatprep.subr.bf16.mxu0 0
      %3541 = vmatpush1.bf16.msra.mxu0 %v3517
      %3542 = vmatprep.subr.bf16.mxu0 0
      %3543 = vmatpush1.bf16.msra.mxu0 %v3519
      %3544 = vmatprep.subr.bf16.mxu0 0
      %3545 = vmatpush1.bf16.msra.mxu0 %v3521
      %3546 = vmatprep.subr.bf16.mxu0 0
      %3547 = vmatpush1.bf16.msra.mxu0 0
      %3548 = vmatprep.subr.bf16.mxu0 0
      %3549 = vmatpush1.bf16.msra.mxu0 0
      %3550 = vmatprep.subr.bf16.mxu0 0
      %3551 = vmatpush1.bf16.msra.mxu0 0
      %3552 = vmatprep.subr.bf16.mxu0 0
      %3553 = vmatpush1.bf16.msra.mxu0 0
      %3554 = vmatprep.subr.bf16.mxu0 0
      %3555 = vmatpush1.bf16.msra.mxu0 0
      %3556 = vmatprep.subr.bf16.mxu0 0
      %3557 = vmatpush1.bf16.msra.mxu0 0
      %3558 = vmatprep.subr.bf16.mxu0 0
      %3559 = vmatpush1.bf16.msra.mxu0 0
      %3560 = vmatprep.subr.bf16.mxu0 0
      %3561 = vmatpush1.bf16.msra.mxu0 0
      %3562 = vmatprep.subr.bf16.mxu0 0
      %3563 = vmatpush1.bf16.msra.mxu0 0
      %3564 = vmatprep.subr.bf16.mxu0 0
      %3565 = vmatpush1.bf16.msra.mxu0 0
      %3566 = vmatprep.subr.bf16.mxu0 0
      %3567 = vmatpush1.bf16.msra.mxu0 0
      %3568 = vmatprep.subr.bf16.mxu0 0
      %3569 = vmatpush1.bf16.msra.mxu0 0
      %3570 = vmatprep.mubr.bf16.mxu0 0
      %3571 = vmatmul.mubr.bf16.gmra.mrb[0].mxu0 %v3527
      %v3572 = vpop.f32.mrb[0].mxu0
      %v3573 = vadd.f32 0.0, %v3572
      %v3574 = vpop.f32.mrb[0].mxu0
      %v3575 = vpop.f32.mrb[0].mxu0
      %v3576 = vadd.f32 0.0, %v3575
      %v3577 = vpop.f32.mrb[0].mxu0
      %3578 = vmatprep.mubr.bf16.mxu0 0
      %3579 = vmatmul.mubr.bf16.gmra.mrb[0].mxu0 %v3530
      %v3580 = vpop.f32.mrb[0].mxu0
      %v3581 = vadd.f32 0.0, %v3580
      %v3582 = vpop.f32.mrb[0].mxu0
      %v3583 = vpop.f32.mrb[0].mxu0
      %v3584 = vadd.f32 0.0, %v3583
      %v3585 = vpop.f32.mrb[0].mxu0
      %3586 = vmatprep.mubr.bf16.mxu0 0
      %3587 = vmatmul.mubr.bf16.gmra.mrb[0].mxu0 %v3533
      %v3588 = vpop.f32.mrb[0].mxu0
      %v3589 = vadd.f32 0.0, %v3588
      %v3590 = vpop.f32.mrb[0].mxu0
      %v3591 = vpop.f32.mrb[0].mxu0
      %v3592 = vadd.f32 0.0, %v3591
      %v3593 = vpop.f32.mrb[0].mxu0
      %3594 = vmatprep.mubr.bf16.mxu0 0
      %3595 = vmatmul.mubr.bf16.gmra.mrb[0].mxu0 %v3536
      %v3596 = vpop.f32.mrb[0].mxu0
      %v3597 = vadd.f32 0.0, %v3596
      %v3598 = vpop.f32.mrb[0].mxu0
      %v3599 = vpop.f32.mrb[0].mxu0
      %v3600 = vadd.f32 0.0, %v3599
      %v3601 = vpop.f32.mrb[0].mxu0
      %3602 = vdwg.mxu0
      %3607 = vrot.lane.b32.xlu0 %v1466, 112
      %v3608 = vpop.permute.xlu0 %3607
      %3609 = vrot.lane.b32.xlu0 %v1467, 112
      %v3610 = vpop.permute.xlu0 %3609
      %3611 = vrot.lane.b32.xlu0 %v1468, 112
      %v3612 = vpop.permute.xlu0 %3611
      %3613 = vrot.lane.b32.xlu0 %v1469, 112
      %v3614 = vpop.permute.xlu0 %3613
      %v3620 = vsel %vm1827, %v3320, 0
      %v3623 = vsel %vm1827, %v3321, 0
      %v3626 = vsel %vm1827, %v3322, 0
      %v3629 = vsel %vm1827, %v3323, 0
      %3631 = vmatprep.subr.bf16.mxu0 0
      %3632 = vmatpush1.bf16.msra.mxu0 %v3608
      %3633 = vmatprep.subr.bf16.mxu0 0
      %3634 = vmatpush1.bf16.msra.mxu0 %v3610
      %3635 = vmatprep.subr.bf16.mxu0 0
      %3636 = vmatpush1.bf16.msra.mxu0 %v3612
      %3637 = vmatprep.subr.bf16.mxu0 0
      %3638 = vmatpush1.bf16.msra.mxu0 %v3614
      %3639 = vmatprep.subr.bf16.mxu0 0
      %3640 = vmatpush1.bf16.msra.mxu0 0
      %3641 = vmatprep.subr.bf16.mxu0 0
      %3642 = vmatpush1.bf16.msra.mxu0 0
      %3643 = vmatprep.subr.bf16.mxu0 0
      %3644 = vmatpush1.bf16.msra.mxu0 0
      %3645 = vmatprep.subr.bf16.mxu0 0
      %3646 = vmatpush1.bf16.msra.mxu0 0
      %3647 = vmatprep.subr.bf16.mxu0 0
      %3648 = vmatpush1.bf16.msra.mxu0 0
      %3649 = vmatprep.subr.bf16.mxu0 0
      %3650 = vmatpush1.bf16.msra.mxu0 0
      %3651 = vmatprep.subr.bf16.mxu0 0
      %3652 = vmatpush1.bf16.msra.mxu0 0
      %3653 = vmatprep.subr.bf16.mxu0 0
      %3654 = vmatpush1.bf16.msra.mxu0 0
      %3655 = vmatprep.subr.bf16.mxu0 0
      %3656 = vmatpush1.bf16.msra.mxu0 0
      %3657 = vmatprep.subr.bf16.mxu0 0
      %3658 = vmatpush1.bf16.msra.mxu0 0
      %3659 = vmatprep.subr.bf16.mxu0 0
      %3660 = vmatpush1.bf16.msra.mxu0 0
      %3661 = vmatprep.subr.bf16.mxu0 0
      %3662 = vmatpush1.bf16.msra.mxu0 0
      %3663 = vmatprep.mubr.bf16.mxu0 0
      %3664 = vmatmul.mubr.bf16.gmra.mrb[0].mxu0 %v3620
      %v3665 = vpop.f32.mrb[0].mxu0
      %v3666 = vadd.f32 0.0, %v3665
      %v3667 = vpop.f32.mrb[0].mxu0
      %v3668 = vpop.f32.mrb[0].mxu0
      %v3669 = vadd.f32 0.0, %v3668
      %v3670 = vpop.f32.mrb[0].mxu0
      %3671 = vmatprep.mubr.bf16.mxu0 0
      %3672 = vmatmul.mubr.bf16.gmra.mrb[0].mxu0 %v3623
      %v3673 = vpop.f32.mrb[0].mxu0
      %v3674 = vadd.f32 0.0, %v3673
      %v3675 = vpop.f32.mrb[0].mxu0
      %v3676 = vpop.f32.mrb[0].mxu0
      %v3677 = vadd.f32 0.0, %v3676
      %v3678 = vpop.f32.mrb[0].mxu0
      %3679 = vmatprep.mubr.bf16.mxu0 0
      %3680 = vmatmul.mubr.bf16.gmra.mrb[0].mxu0 %v3626
      %v3681 = vpop.f32.mrb[0].mxu0
      %v3682 = vadd.f32 0.0, %v3681
      %v3683 = vpop.f32.mrb[0].mxu0
      %v3684 = vpop.f32.mrb[0].mxu0
      %v3685 = vadd.f32 0.0, %v3684
      %v3686 = vpop.f32.mrb[0].mxu0
      %3687 = vmatprep.mubr.bf16.mxu0 0
      %3688 = vmatmul.mubr.bf16.gmra.mrb[0].mxu0 %v3629
      %v3689 = vpop.f32.mrb[0].mxu0
      %v3690 = vadd.f32 0.0, %v3689
      %v3691 = vpop.f32.mrb[0].mxu0
      %v3692 = vpop.f32.mrb[0].mxu0
      %v3693 = vadd.f32 0.0, %v3692
      %v3694 = vpop.f32.mrb[0].mxu0
      %3695 = vdwg.mxu0
      %3728 = vrot.lane.b32.xlu0 %v3387, 16
      %v3729 = vpop.permute.xlu0 %3728
      %3730 = vrot.lane.b32.xlu0 %v3390, 16
      %v3731 = vpop.permute.xlu0 %3730
      %3732 = vrot.lane.b32.xlu0 %v3395, 16
      %v3733 = vpop.permute.xlu0 %3732
      %3734 = vrot.lane.b32.xlu0 %v3398, 16
      %v3735 = vpop.permute.xlu0 %3734
      %3736 = vrot.lane.b32.xlu0 %v3403, 16
      %v3737 = vpop.permute.xlu0 %3736
      %3738 = vrot.lane.b32.xlu0 %v3406, 16
      %v3739 = vpop.permute.xlu0 %3738
      %3740 = vrot.lane.b32.xlu0 %v3411, 16
      %v3741 = vpop.permute.xlu0 %3740
      %3742 = vrot.lane.b32.xlu0 %v3414, 16
      %v3743 = vpop.permute.xlu0 %3742
      %3744 = vrot.lane.b32.xlu0 %v3480, 16
      %v3745 = vpop.permute.xlu0 %3744
      %3746 = vrot.lane.b32.xlu0 %v3483, 16
      %v3747 = vpop.permute.xlu0 %3746
      %3748 = vrot.lane.b32.xlu0 %v3488, 16
      %v3749 = vpop.permute.xlu0 %3748
      %3750 = vrot.lane.b32.xlu0 %v3491, 16
      %v3751 = vpop.permute.xlu0 %3750
      %3752 = vrot.lane.b32.xlu0 %v3496, 16
      %v3753 = vpop.permute.xlu0 %3752
      %3754 = vrot.lane.b32.xlu0 %v3499, 16
      %v3755 = vpop.permute.xlu0 %3754
      %3756 = vrot.lane.b32.xlu0 %v3504, 16
      %v3757 = vpop.permute.xlu0 %3756
      %3758 = vrot.lane.b32.xlu0 %v3507, 16
      %v3759 = vpop.permute.xlu0 %3758
      %3760 = vrot.lane.b32.xlu0 %v3573, 16
      %v3761 = vpop.permute.xlu0 %3760
      %3762 = vrot.lane.b32.xlu0 %v3576, 16
      %v3763 = vpop.permute.xlu0 %3762
      %3764 = vrot.lane.b32.xlu0 %v3581, 16
      %v3765 = vpop.permute.xlu0 %3764
      %3766 = vrot.lane.b32.xlu0 %v3584, 16
      %v3767 = vpop.permute.xlu0 %3766
      %3768 = vrot.lane.b32.xlu0 %v3589, 16
      %v3769 = vpop.permute.xlu0 %3768
      %3770 = vrot.lane.b32.xlu0 %v3592, 16
      %v3771 = vpop.permute.xlu0 %3770
      %3772 = vrot.lane.b32.xlu0 %v3597, 16
      %v3773 = vpop.permute.xlu0 %3772
      %3774 = vrot.lane.b32.xlu0 %v3600, 16
      %v3775 = vpop.permute.xlu0 %3774
      %3776 = vrot.lane.b32.xlu0 %v3666, 16
      %v3777 = vpop.permute.xlu0 %3776
      %3778 = vrot.lane.b32.xlu0 %v3669, 16
      %v3779 = vpop.permute.xlu0 %3778
      %3780 = vrot.lane.b32.xlu0 %v3674, 16
      %v3781 = vpop.permute.xlu0 %3780
      %3782 = vrot.lane.b32.xlu0 %v3677, 16
      %v3783 = vpop.permute.xlu0 %3782
      %3784 = vrot.lane.b32.xlu0 %v3682, 16
      %v3785 = vpop.permute.xlu0 %3784
      %3786 = vrot.lane.b32.xlu0 %v3685, 16
      %v3787 = vpop.permute.xlu0 %3786
      %3788 = vrot.lane.b32.xlu0 %v3690, 16
      %v3789 = vpop.permute.xlu0 %3788
      %3790 = vrot.lane.b32.xlu0 %v3693, 16
      %v3791 = vpop.permute.xlu0 %3790
      %v3824 = vsel %vm1470, %v2243, %v3729
      %v3825 = vsel %vm1470, %v2246, %v3731
      %v3826 = vsel %vm1470, %v2251, %v3733
      %v3827 = vsel %vm1470, %v2254, %v3735
      %v3828 = vsel %vm1470, %v2259, %v3737
      %v3829 = vsel %vm1470, %v2262, %v3739
      %v3830 = vsel %vm1470, %v2267, %v3741
      %v3831 = vsel %vm1470, %v2270, %v3743
      %v3832 = vsel %vm1470, %v2320, %v3745
      %v3833 = vsel %vm1470, %v2323, %v3747
      %v3834 = vsel %vm1470, %v2328, %v3749
      %v3835 = vsel %vm1470, %v2331, %v3751
      %v3836 = vsel %vm1470, %v2336, %v3753
      %v3837 = vsel %vm1470, %v2339, %v3755
      %v3838 = vsel %vm1470, %v2344, %v3757
      %v3839 = vsel %vm1470, %v2347, %v3759
      %v3840 = vsel %vm1470, %v2397, %v3761
      %v3841 = vsel %vm1470, %v2400, %v3763
      %v3842 = vsel %vm1470, %v2405, %v3765
      %v3843 = vsel %vm1470, %v2408, %v3767
      %v3844 = vsel %vm1470, %v2413, %v3769
      %v3845 = vsel %vm1470, %v2416, %v3771
      %v3846 = vsel %vm1470, %v2421, %v3773
      %v3847 = vsel %vm1470, %v2424, %v3775
      %v3848 = vsel %vm1470, %v2474, %v3777
      %v3849 = vsel %vm1470, %v2477, %v3779
      %v3850 = vsel %vm1470, %v2482, %v3781
      %v3851 = vsel %vm1470, %v2485, %v3783
      %v3852 = vsel %vm1470, %v2490, %v3785
      %v3853 = vsel %vm1470, %v2493, %v3787
      %v3854 = vsel %vm1470, %v2498, %v3789
      %v3855 = vsel %vm1470, %v2501, %v3791
      %vm3856 = vcmask 261120
      %3857 = vst.msk [vmem:[%s389] sm:$0xff] %vm3856, %v3824
      %3858 = vst.msk [vmem:[%s389 + $0x8] sm:$0xff] %vm3856, %v3825
      %3859 = vst.msk [vmem:[%s389 + $0x10] sm:$0xff] %vm3856, %v3826
      %3860 = vst.msk [vmem:[%s389 + $0x18] sm:$0xff] %vm3856, %v3827
      %3861 = vst.msk [vmem:[%s389 + $0x20] sm:$0xff] %vm3856, %v3828
      %3862 = vst.msk [vmem:[%s389 + $0x28] sm:$0xff] %vm3856, %v3829
      %3863 = vst.msk [vmem:[%s389 + $0x30] sm:$0xff] %vm3856, %v3830
      %3864 = vst.msk [vmem:[%s389 + $0x38] sm:$0xff] %vm3856, %v3831
      %3865 = vst.msk [vmem:[%s389 + $0x40] sm:$0xff] %vm3856, %v3832
      %3866 = vst.msk [vmem:[%s389 + $0x48] sm:$0xff] %vm3856, %v3833
      %3867 = vst.msk [vmem:[%s389 + $0x50] sm:$0xff] %vm3856, %v3834
      %3868 = vst.msk [vmem:[%s389 + $0x58] sm:$0xff] %vm3856, %v3835
      %3869 = vst.msk [vmem:[%s389 + $0x60] sm:$0xff] %vm3856, %v3836
      %3870 = vst.msk [vmem:[%s389 + $0x68] sm:$0xff] %vm3856, %v3837
      %3871 = vst.msk [vmem:[%s389 + $0x70] sm:$0xff] %vm3856, %v3838
      %3872 = vst.msk [vmem:[%s389 + $0x78] sm:$0xff] %vm3856, %v3839
      %3873 = vst.msk [vmem:[%s389 + $0x80] sm:$0xff] %vm3856, %v3840
      %3874 = vst.msk [vmem:[%s389 + $0x88] sm:$0xff] %vm3856, %v3841
      %3875 = vst.msk [vmem:[%s389 + $0x90] sm:$0xff] %vm3856, %v3842
      %3876 = vst.msk [vmem:[%s389 + $0x98] sm:$0xff] %vm3856, %v3843
      %3877 = vst.msk [vmem:[%s389 + $0xa0] sm:$0xff] %vm3856, %v3844
      %3878 = vst.msk [vmem:[%s389 + $0xa8] sm:$0xff] %vm3856, %v3845
      %3879 = vst.msk [vmem:[%s389 + $0xb0] sm:$0xff] %vm3856, %v3846
      %3880 = vst.msk [vmem:[%s389 + $0xb8] sm:$0xff] %vm3856, %v3847
      %3881 = vst.msk [vmem:[%s389 + $0xc0] sm:$0xff] %vm3856, %v3848
      %3882 = vst.msk [vmem:[%s389 + $0xc8] sm:$0xff] %vm3856, %v3849
      %3883 = vst.msk [vmem:[%s389 + $0xd0] sm:$0xff] %vm3856, %v3850
      %3884 = vst.msk [vmem:[%s389 + $0xd8] sm:$0xff] %vm3856, %v3851
      %3885 = vst.msk [vmem:[%s389 + $0xe0] sm:$0xff] %vm3856, %v3852
      %3886 = vst.msk [vmem:[%s389 + $0xe8] sm:$0xff] %vm3856, %v3853
      %3887 = vst.msk [vmem:[%s389 + $0xf0] sm:$0xff] %vm3856, %v3854
      %3888 = vst.msk [vmem:[%s389 + $0xf8] sm:$0xff] %vm3856, %v3855
      %s3889 = smul.u32 4, %s20
      %p3890 = scmp.lt.s32.totalorder %s3889, 7
      %s3891 = scalar_select %p3890, %s3889, 7
      %s3892 = smul.addr %s3891, 8
      %s3893 = smul.addr %s3892, 8
      %s3894 = scalar_lea.vmem %s9, %s3893
      // Predicated region
      $region57: #{tpu_custom_call.1} parent=55 // pred_check
        %p3895 = pneg %p242
      $region58: #{tpu_custom_call.1} parent=55 // pred_check_branch
        %3897 = sbr.rel (%p3895) target = $region60
      $region59: #{tpu_custom_call.1} parent=55 // pred_region
        %s3898 = smul.u32 4, %s20
      $region60: #{tpu_custom_call.1} parent=55 // pred_fallthru
        _
    $region56: #{tpu_custom_call.1} parent=5 // pred_fallthru
      _
    %p3899 = scmp.le.s32.totalorder 2, %s15
    // Predicated region
    $region61: #{tpu_custom_call.1} parent=5 // pred_check
      %p3900 = pneg %p3899
    $region62: #{tpu_custom_call.1} parent=5 // pred_check_branch
      %3902 = sbr.rel (%p3900) target = $region64
    $region63: #{tpu_custom_call.1} parent=5 // pred_region
      %s3903 = ssub.s32 %s15, 2
      // Predicated region
      $region65: #{tpu_custom_call.1} parent=63 // pred_check
        %p3904 = pneg %p248
      $region66: #{tpu_custom_call.1} parent=63 // pred_check_branch
        %3906 = sbr.rel (%p3904) target = $region68
      $region67: #{tpu_custom_call.1} parent=63 // pred_region
        %s3907 = smul.u32 4, %s21
        %p3908 = scmp.lt.s32.totalorder %s3907, 7
        %s3909 = scalar_select %p3908, %s3907, 7
        %s3910 = smul.addr %s3909, 8
        %s3911 = smul.addr %s3910, 8
        %s3912 = scalar_lea.vmem %s9, %s3911
      $region68: #{tpu_custom_call.1} parent=63 // pred_fallthru
        _
    $region64: #{tpu_custom_call.1} parent=5 // pred_fallthru
      _
  $region6: #{tpu_custom_call.1} parent=0 // loop_footer
    %s19 = sadd.s32 1, %s15
  $region7: #{tpu_custom_call.1} parent=0 // loop_footer_branch
    %14 = sbr.rel target = $region3
  $region8: #{tpu_custom_call.1} parent=0 // loop_exit
    _

</llo_original>
